<compile_context>
chip_gen: v7x
topology: tpu7x:2x2x1
jax: 0.10.0
libtpu: 0.0.40
codegen_flags: <defaults>
</compile_context>

<pallas_src>
import jax
import jax.numpy as jnp
from jax.experimental import pallas as pl
from jax.experimental.pallas import tpu as pltpu


# --------------------------------------------------------------------------- #
# Kernel
# --------------------------------------------------------------------------- #
def _self_attn_kernel(x_ref, mask_ref, w1t_ref, w2t_ref, out_ref, a_ref):
    # x_ref:    (BB, T, D)  f32    BB batch rows per grid step
    # mask_ref: (BB, T, 1)  f32    (1.0 = keep, 0.0 = masked)
    # w1t_ref:  (D, H)      bf16   pre-transposed Linear1 weight
    # w2t_ref:  (H, K)      bf16   pre-transposed Linear2 weight
    # out_ref:  (BB, K*D)   f32    flattened bmm output (lane-dense tile)
    # a_ref:    (BB, T, K)  f32    attention (wrapper transposes to (B, K, T))
    BB, T, D = x_ref.shape
    K = w2t_ref.shape[1]

    x = x_ref[...]                                       # (BB, T, D) f32

    # ---- fused Linear1/Linear2 over all BB*T rows (one MXU matmul each) ----
    # bf16 operands (cast in-kernel), f32 accumulation; tanh stays f32.
    xb = x.reshape(BB * T, D).astype(w1t_ref.dtype)      # (BB*T, D) bf16
    h = jnp.tanh(jnp.dot(xb, w1t_ref[...],
                         preferred_element_type=jnp.float32))       # f32
    scores = jnp.dot(h.astype(w2t_ref.dtype), w2t_ref[...],
                     preferred_element_type=jnp.float32)            # (BB*T, K)
    scores = scores.reshape(BB, T, K)                    # leading split: free

    # ---- AllenNLP-style masked softmax over T (axis=1), (BB,T,K) layout ----
    m = mask_ref[...]                                    # (BB, T, 1) f32
    masked = scores * m
    mx = jnp.max(masked, axis=1, keepdims=True)          # (BB, 1, K)
    e = jnp.exp(masked - mx)
    z = jnp.sum(e, axis=1, keepdims=True)
    em = e * m
    # softmax(s*m)*m renormalized with +1e-13:
    #   (e/z * m) / (sum(e/z * m) + 1e-13)  ==  e*m / (sum(e*m) + 1e-13*z)
    # -> one EUP approx-reciprocal instead of two VALU divides.
    p = em * pl.reciprocal(jnp.sum(em, axis=1, keepdims=True) + 1e-13 * z,
                           approx=True)                  # (BB, T, K) f32

    a_ref[...] = p.astype(a_ref.dtype)

    # ---- attention-weighted sum on the VPU (f32), unrolled over K hops -----
    # out[:, k*D:(k+1)*D] = sum_t p[:, t, k] * x[:, t, :]
    for k in range(K):
        out_ref[:, k * D:(k + 1) * D] = jnp.sum(
            p[:, :, k:k + 1] * x, axis=1).astype(out_ref.dtype)


# --------------------------------------------------------------------------- #
# Block / VMEM accounting (padded (8,128)-tile sizes)
# --------------------------------------------------------------------------- #
def _rup(x, m):
    return -(-x // m) * m


def _pad_bytes(rows, cols, itemsize):
    """Bytes of a 2-D (rows, cols) slab padded to TPU tiles."""
    sublane = 8 * max(1, 4 // itemsize)      # f32: 8, bf16: 16
    return _rup(rows, sublane) * _rup(cols, 128) * itemsize


def _block_vmem_bytes(bb, T, D, H, K):
    """Padded VMEM footprint of one grid step (pipelined buffers + temps)."""
    x_blk = bb * _pad_bytes(T, D, 4)
    m_blk = bb * _pad_bytes(T, 1, 4)
    w1_blk = _pad_bytes(D, H, 2)
    w2_blk = _pad_bytes(H, K, 2)
    o_blk = _pad_bytes(bb, K * D, 4)
    a_blk = bb * _pad_bytes(T, K, 4)
    pipelined = 2 * (x_blk + m_blk + w1_blk + w2_blk + o_blk + a_blk)
    # In-kernel temporaries: xb (bf16), h (f32), h (bf16), scores (f32),
    # ~5 softmax-sized temps, the per-hop product, and the output slab.
    tmps = (bb * _pad_bytes(T, D, 2)
            + _rup(bb * T, 8) * (_rup(H, 128) * 4
                                 + _rup(H, 128) * 2
                                 + _rup(K, 128) * 4)
            + 5 * bb * _pad_bytes(T, K, 4)
            + bb * _pad_bytes(T, D, 4)
            + _pad_bytes(bb, K * D, 4))
    return pipelined + tmps


def _est_step_us(bb, T, D, H, K):
    """Crude per-grid-step time estimate (us): max(compute, HBM traffic)."""
    flops = 2.0 * bb * T * (D * H + H * K) + 2.0 * bb * K * T * D
    bytes_moved = (bb * _pad_bytes(T, D, 4) + bb * _pad_bytes(T, 1, 4)
                   + _pad_bytes(bb, K * D, 4) + bb * _pad_bytes(T, K, 4))
    return max(flops / 2e8, bytes_moved / 8e5)


def _tpu_generation_info():
    """(num_tensorcores, vmem_budget_bytes) — conservative, safe fallback."""
    num_tc, vmem_budget = 1, 24 << 20
    try:
        kind = jax.devices()[0].device_kind.lower()
        if "v7" in kind or "tpu7" in kind:
            num_tc, vmem_budget = 2, 16 << 20     # v7x: 64 MiB VMEM, 2 TCs
    except Exception:
        pass
    return num_tc, vmem_budget


def _pick_block_b(B, T, D, H, K, *, num_tc, vmem_budget):
    """Pick batch rows per grid step.

    Prefer a single grid step whenever one block fits the VMEM budget (the
    ~0.35us/step pipeline overhead dominates at small per-step work).  Only
    on multi-TensorCore chips (v7x), and only when per-step work is >= ~1us
    each, split into >=2 steps so the 2nd TC is worth its overhead.  Keep
    stored 2-D blocks sublane-aligned (bb % 8 == 0 or bb == B).
    """
    valid = [d for d in range(1, B + 1)
             if B % d == 0 and (d % 8 == 0 or d == B)]
    fitting = [d for d in valid
               if _block_vmem_bytes(d, T, D, H, K) <= vmem_budget]
    bb = max(fitting) if fitting else min(valid)
    if num_tc >= 2 and B // bb < 2 and _est_step_us(bb, T, D, H, K) > 2.0:
        smaller = [d for d in fitting if B // d >= 2]
        if smaller:
            bb = max(smaller)
    return bb


# --------------------------------------------------------------------------- #
# Wrapper
# --------------------------------------------------------------------------- #
def self_attention_encoder(x, mask, w1, w2, *, block_b=None):
    """x: (B, T, D); mask: (B, T); w1: (H, D); w2: (K, H) [PyTorch layout].

    Returns (output, A) with output (B, K*D) f32 and A (B, K, T) f32,
    matching the PyTorch module's forward().
    """
    B, T, D = x.shape
    K, H = w2.shape
    assert w1.shape == (H, D), (w1.shape, (H, D))

    num_tc, vmem_budget = _tpu_generation_info()
    bb = (_pick_block_b(B, T, D, H, K, num_tc=num_tc, vmem_budget=vmem_budget)
          if block_b is None else block_b)
    assert B % bb == 0

    # Pre-transpose + pre-cast the tiny weights once (grid-invariant blocks).
    w1t = jnp.asarray(w1).astype(jnp.bfloat16).T          # (D, H)
    w2t = jnp.asarray(w2).astype(jnp.bfloat16).T          # (H, K)
    x_f = jnp.asarray(x).astype(jnp.float32)              # no bf16 cast of x
    mask3 = jnp.asarray(mask).astype(jnp.float32)[:, :, None]   # (B, T, 1)

    # Derive the VMEM limit from the actual (padded) footprint; keep it well
    # under v7x's 64 MiB physical VMEM.
    vmem_limit = int(min(40 << 20,
                         max(16 << 20, 4 * _block_vmem_bytes(bb, T, D, H, K))))

    out, a_tk = pl.pallas_call(
        _self_attn_kernel,
        out_shape=(
            jax.ShapeDtypeStruct((B, K * D), jnp.float32),
            jax.ShapeDtypeStruct((B, T, K), jnp.float32),
        ),
        grid_spec=pltpu.PrefetchScalarGridSpec(
            num_scalar_prefetch=0,
            grid=(B // bb,),
            in_specs=[
                pl.BlockSpec((bb, T, D), lambda b: (b, 0, 0)),
                pl.BlockSpec((bb, T, 1), lambda b: (b, 0, 0)),
                pl.BlockSpec((D, H), lambda b: (0, 0)),     # grid-invariant
                pl.BlockSpec((H, K), lambda b: (0, 0)),     # grid-invariant
            ],
            out_specs=[
                pl.BlockSpec((bb, K * D), lambda b: (b, 0)),
                pl.BlockSpec((bb, T, K), lambda b: (b, 0, 0)),
            ],
        ),
        compiler_params=pltpu.CompilerParams(
            dimension_semantics=("parallel",),
            vmem_limit_bytes=vmem_limit,
        ),
    )(x_f, mask3, w1t, w2t)

    # Single tiny wrapper-side relayout to the module's (B, K, T) A layout.
    A = jnp.transpose(a_tk, (0, 2, 1))
    return out, A


# --------------------------------------------------------------------------- #
# References
# --------------------------------------------------------------------------- #
_HI = jax.lax.Precision.HIGHEST


def _reference_f32(x, mask, w1, w2):
    """Pure-JAX f32 reference mirroring the PyTorch forward exactly."""
    h = jnp.tanh(jnp.einsum("btd,hd->bth", x, w1, precision=_HI))
    scores = jnp.einsum("bth,kh->btk", h, w2, precision=_HI)
    st = jnp.transpose(scores, (0, 2, 1))                 # (B, K, T)
    m = mask[:, None, :]
    p = jax.nn.softmax(st * m, axis=-1) * m
    p = p / (jnp.sum(p, axis=-1, keepdims=True) + 1e-13)
    out = jnp.einsum("bkt,btd->bkd", p, x, precision=_HI)
    return out.reshape(x.shape[0], -1), p


def _reference_matched(x, mask, w1, w2):
    """Reference with the same precision choices as the kernel:
    bf16 operands for the two Linear matmuls (f32 accumulation), f32 softmax
    math, f32 attention-weighted sum."""
    f32 = jnp.float32
    xq = x.astype(jnp.bfloat16).astype(f32)
    w1b = w1.astype(jnp.bfloat16).astype(f32)
    w2b = w2.astype(jnp.bfloat16).astype(f32)
    h = jnp.tanh(jnp.einsum("btd,hd->bth", xq, w1b, precision=_HI))
    hq = h.astype(jnp.bfloat16).astype(f32)
    scores = jnp.einsum("bth,kh->btk", hq, w2b, precision=_HI)   # (B, T, K)
    m = mask[:, :, None].astype(f32)                             # (B, T, 1)
    masked = scores * m
    mx = jnp.max(masked, axis=1, keepdims=True)
    e = jnp.exp(masked - mx)
    z = jnp.sum(e, axis=1, keepdims=True)
    em = e * m
    p = em / (jnp.sum(em, axis=1, keepdims=True) + 1e-13 * z)    # (B, T, K)
    out = jnp.einsum("btk,btd->bkd", p, x, precision=_HI)        # f32
    A = jnp.transpose(p, (0, 2, 1))                              # (B, K, T)
    return out.reshape(x.shape[0], -1), A


# --------------------------------------------------------------------------- #
# Self-test
# --------------------------------------------------------------------------- #
if __name__ == "__main__":
    # Small shapes consistent with the module.
    B, T, D = 64, 8, 32          # batch, timesteps, input_dim
    H, K = 32, 4                 # hidden_dim, num_hops

    key = jax.random.PRNGKey(0)
    kx, kw1, kw2 = jax.random.split(key, 3)

    x = jax.random.normal(kx, (B, T, D), dtype=jnp.float32)
    # Mask out the last two timesteps of every other batch element.
    mask = jnp.ones((B, T), dtype=jnp.float32)
    mask = mask.at[1::2, T - 2:].set(0.0)

    # Deterministic Linear weights (PyTorch layout: (out_features, in_features)).
    w1 = jax.random.normal(kw1, (H, D), dtype=jnp.float32) * (1.0 / jnp.sqrt(D))
    w2 = jax.random.normal(kw2, (K, H), dtype=jnp.float32) * (1.0 / jnp.sqrt(H))

    out, A = self_attention_encoder(x, mask, w1, w2)
    out = jax.block_until_ready(out)
    A = jax.block_until_ready(A)

    assert out.shape == (B, K * D) and A.shape == (B, K, T)

    # Tight check vs a precision-matched reference (bf16 MXU operands for the
    # Linears, f32 everywhere else) -- catches structural/layout/masking bugs.
    m_out, m_A = _reference_matched(x, mask, w1, w2)
    assert jnp.allclose(out, m_out, atol=1e-2, rtol=1e-2), \
        float(jnp.max(jnp.abs(out - m_out)))
    assert jnp.allclose(A, m_A, atol=1e-2, rtol=1e-2), \
        float(jnp.max(jnp.abs(A - m_A)))

    # Coarse check vs the full-f32 reference (slack for bf16 quantization).
    f_out, f_A = _reference_f32(x, mask, w1, w2)
    assert jnp.allclose(out, f_out, atol=1e-1, rtol=1e-1), \
        float(jnp.max(jnp.abs(out - f_out)))
    assert jnp.allclose(A, f_A, atol=1e-1, rtol=1e-1), \
        float(jnp.max(jnp.abs(A - f_A)))

    print("KERNEL_OK")
</pallas_src>

<mosaic_0001>
module attributes {stable_mosaic.version = 11 : i64} {
  func.func @_self_attn_kernel(%arg0: i32, %arg1: memref<64x8x32xf32, #tpu.memory_space<vmem>>, %arg2: memref<64x8x1xf32, #tpu.memory_space<vmem>>, %arg3: memref<32x32xbf16, #tpu.memory_space<vmem>>, %arg4: memref<32x4xbf16, #tpu.memory_space<vmem>>, %arg5: memref<64x128xf32, #tpu.memory_space<vmem>>, %arg6: memref<64x8x4xf32, #tpu.memory_space<vmem>>) attributes {dimension_semantics = [#tpu.dimension_semantics<parallel>], iteration_bounds = array<i64: 1>, scalar_prefetch = 0 : i64, scratch_operands = 0 : i64, tpu.core_type = #tpu.core_type<tc>, window_params = [{transform_indices = @transform_0, window_bounds = array<i64: 64, 8, 32>}, {transform_indices = @transform_1, window_bounds = array<i64: 64, 8, 1>}, {pipeline_mode = #tpu.pipeline_mode<synchronous>, transform_indices = @transform_2, window_bounds = array<i64: 32, 32>}, {pipeline_mode = #tpu.pipeline_mode<synchronous>, transform_indices = @transform_3, window_bounds = array<i64: 32, 4>}, {transform_indices = @transform_4, window_bounds = array<i64: 64, 128>}, {transform_indices = @transform_5, window_bounds = array<i64: 64, 8, 4>}]} {
    %c0 = arith.constant 0 : index
    %c0_0 = arith.constant 0 : index
    %c0_1 = arith.constant 0 : index
    %0 = vector.load %arg1[%c0, %c0_0, %c0_1] : memref<64x8x32xf32, #tpu.memory_space<vmem>>, vector<64x8x32xf32>
    %1 = vector.shape_cast %0 : vector<64x8x32xf32> to vector<512x32xf32>
    %2 = arith.truncf %1 : vector<512x32xf32> to vector<512x32xbf16>
    %c0_2 = arith.constant 0 : index
    %c0_3 = arith.constant 0 : index
    %3 = vector.load %arg3[%c0_2, %c0_3] : memref<32x32xbf16, #tpu.memory_space<vmem>>, vector<32x32xbf16>
    %cst = arith.constant dense<0.000000e+00> : vector<512x32xf32>
    %4 = tpu.matmul %2, %3, %cst {dimension_numbers = #tpu.dot_dimension_numbers<[1], [0], [0], [1], [0, 0, 1, 1], [], []>} : vector<512x32xbf16>, vector<32x32xbf16>, vector<512x32xf32> -> vector<512x32xf32>
    %5 = math.tanh %4 : vector<512x32xf32>
    %6 = arith.truncf %5 : vector<512x32xf32> to vector<512x32xbf16>
    %c0_4 = arith.constant 0 : index
    %c0_5 = arith.constant 0 : index
    %7 = vector.load %arg4[%c0_4, %c0_5] : memref<32x4xbf16, #tpu.memory_space<vmem>>, vector<32x4xbf16>
    %cst_6 = arith.constant dense<0.000000e+00> : vector<512x4xf32>
    %8 = tpu.matmul %6, %7, %cst_6 {dimension_numbers = #tpu.dot_dimension_numbers<[1], [0], [0], [1], [0, 0, 1, 1], [], []>} : vector<512x32xbf16>, vector<32x4xbf16>, vector<512x4xf32> -> vector<512x4xf32>
    %9 = vector.shape_cast %8 : vector<512x4xf32> to vector<64x8x4xf32>
    %c0_7 = arith.constant 0 : index
    %c0_8 = arith.constant 0 : index
    %c0_9 = arith.constant 0 : index
    %10 = vector.load %arg2[%c0_7, %c0_8, %c0_9] : memref<64x8x1xf32, #tpu.memory_space<vmem>>, vector<64x8x1xf32>
    %11 = vector.broadcast %10 : vector<64x8x1xf32> to vector<64x8x4xf32>
    %12 = arith.mulf %9, %11 : vector<64x8x4xf32>
    %cst_10 = arith.constant dense<0xFF800000> : vector<64x4xf32>
    %13 = vector.multi_reduction <maximumf>, %12, %cst_10 [1] : vector<64x8x4xf32> to vector<64x4xf32>
    %14 = vector.shape_cast %13 : vector<64x4xf32> to vector<64x1x4xf32>
    %15 = vector.broadcast %14 : vector<64x1x4xf32> to vector<64x8x4xf32>
    %16 = arith.subf %12, %15 : vector<64x8x4xf32>
    %17 = math.exp %16 : vector<64x8x4xf32>
    %cst_11 = arith.constant dense<0.000000e+00> : vector<64x4xf32>
    %18 = vector.multi_reduction <add>, %17, %cst_11 [1] : vector<64x8x4xf32> to vector<64x4xf32>
    %19 = vector.shape_cast %18 : vector<64x4xf32> to vector<64x1x4xf32>
    %20 = vector.broadcast %10 : vector<64x8x1xf32> to vector<64x8x4xf32>
    %21 = arith.mulf %17, %20 : vector<64x8x4xf32>
    %cst_12 = arith.constant dense<0.000000e+00> : vector<64x4xf32>
    %22 = vector.multi_reduction <add>, %21, %cst_12 [1] : vector<64x8x4xf32> to vector<64x4xf32>
    %23 = vector.shape_cast %22 : vector<64x4xf32> to vector<64x1x4xf32>
    %cst_13 = arith.constant 9.99999982E-14 : f32
    %24 = vector.broadcast %cst_13 : f32 to vector<64x1x4xf32>
    %25 = arith.mulf %24, %19 : vector<64x1x4xf32>
    %26 = arith.addf %23, %25 : vector<64x1x4xf32>
    %27 = tpu.reciprocal %26 {approx = true} : vector<64x1x4xf32> -> vector<64x1x4xf32>
    %28 = vector.broadcast %27 : vector<64x1x4xf32> to vector<64x8x4xf32>
    %29 = arith.mulf %21, %28 : vector<64x8x4xf32>
    %c0_14 = arith.constant 0 : index
    %c0_15 = arith.constant 0 : index
    %c0_16 = arith.constant 0 : index
    %30 = vector.load %arg6[%c0_14, %c0_15, %c0_16] : memref<64x8x4xf32, #tpu.memory_space<vmem>>, vector<64x8x4xf32>
    tpu.vector_store %arg6[%c0_14, %c0_15, %c0_16], %29 {strides = array<i32>} : memref<64x8x4xf32, #tpu.memory_space<vmem>>, vector<64x8x4xf32>,
    %31 = vector.extract_strided_slice %29 {offsets = [0, 0, 0], sizes = [64, 8, 1], strides = [1, 1, 1]} : vector<64x8x4xf32> to vector<64x8x1xf32>
    %32 = vector.broadcast %31 : vector<64x8x1xf32> to vector<64x8x32xf32>
    %33 = arith.mulf %32, %0 : vector<64x8x32xf32>
    %cst_17 = arith.constant dense<0.000000e+00> : vector<64x32xf32>
    %34 = vector.multi_reduction <add>, %33, %cst_17 [1] : vector<64x8x32xf32> to vector<64x32xf32>
    %c0_18 = arith.constant 0 : index
    %c0_19 = arith.constant 0 : index
    %35 = vector.load %arg5[%c0_18, %c0_19] : memref<64x128xf32, #tpu.memory_space<vmem>>, vector<64x32xf32>
    tpu.vector_store %arg5[%c0_18, %c0_19], %34 {strides = array<i32>} : memref<64x128xf32, #tpu.memory_space<vmem>>, vector<64x32xf32>,
    %36 = vector.extract_strided_slice %29 {offsets = [0, 0, 1], sizes = [64, 8, 1], strides = [1, 1, 1]} : vector<64x8x4xf32> to vector<64x8x1xf32>
    %37 = vector.broadcast %36 : vector<64x8x1xf32> to vector<64x8x32xf32>
    %38 = arith.mulf %37, %0 : vector<64x8x32xf32>
    %cst_20 = arith.constant dense<0.000000e+00> : vector<64x32xf32>
    %39 = vector.multi_reduction <add>, %38, %cst_20 [1] : vector<64x8x32xf32> to vector<64x32xf32>
    %c0_21 = arith.constant 0 : index
    %c32 = arith.constant 32 : index
    %40 = vector.load %arg5[%c0_21, %c32] : memref<64x128xf32, #tpu.memory_space<vmem>>, vector<64x32xf32>
    tpu.vector_store %arg5[%c0_21, %c32], %39 {strides = array<i32>} : memref<64x128xf32, #tpu.memory_space<vmem>>, vector<64x32xf32>,
    %41 = vector.extract_strided_slice %29 {offsets = [0, 0, 2], sizes = [64, 8, 1], strides = [1, 1, 1]} : vector<64x8x4xf32> to vector<64x8x1xf32>
    %42 = vector.broadcast %41 : vector<64x8x1xf32> to vector<64x8x32xf32>
    %43 = arith.mulf %42, %0 : vector<64x8x32xf32>
    %cst_22 = arith.constant dense<0.000000e+00> : vector<64x32xf32>
    %44 = vector.multi_reduction <add>, %43, %cst_22 [1] : vector<64x8x32xf32> to vector<64x32xf32>
    %c0_23 = arith.constant 0 : index
    %c64 = arith.constant 64 : index
    %45 = vector.load %arg5[%c0_23, %c64] : memref<64x128xf32, #tpu.memory_space<vmem>>, vector<64x32xf32>
    tpu.vector_store %arg5[%c0_23, %c64], %44 {strides = array<i32>} : memref<64x128xf32, #tpu.memory_space<vmem>>, vector<64x32xf32>,
    %46 = vector.extract_strided_slice %29 {offsets = [0, 0, 3], sizes = [64, 8, 1], strides = [1, 1, 1]} : vector<64x8x4xf32> to vector<64x8x1xf32>
    %47 = vector.broadcast %46 : vector<64x8x1xf32> to vector<64x8x32xf32>
    %48 = arith.mulf %47, %0 : vector<64x8x32xf32>
    %cst_24 = arith.constant dense<0.000000e+00> : vector<64x32xf32>
    %49 = vector.multi_reduction <add>, %48, %cst_24 [1] : vector<64x8x32xf32> to vector<64x32xf32>
    %c0_25 = arith.constant 0 : index
    %c96 = arith.constant 96 : index
    %50 = vector.load %arg5[%c0_25, %c96] : memref<64x128xf32, #tpu.memory_space<vmem>>, vector<64x32xf32>
    tpu.vector_store %arg5[%c0_25, %c96], %49 {strides = array<i32>} : memref<64x128xf32, #tpu.memory_space<vmem>>, vector<64x32xf32>,
    return
  }
  func.func @transform_0(%arg0: i32) -> (i32, i32, i32) {
    %c0_i32 = arith.constant 0 : i32
    %c0_i32_0 = arith.constant 0 : i32
    %c0_i32_1 = arith.constant 0 : i32
    return %arg0, %c0_i32, %c0_i32_0 : i32, i32, i32
  }
  func.func @transform_1(%arg0: i32) -> (i32, i32, i32) {
    %c0_i32 = arith.constant 0 : i32
    %c0_i32_0 = arith.constant 0 : i32
    %c0_i32_1 = arith.constant 0 : i32
    return %arg0, %c0_i32, %c0_i32_0 : i32, i32, i32
  }
  func.func @transform_2(%arg0: i32) -> (i32, i32) {
    %c0_i32 = arith.constant 0 : i32
    %c0_i32_0 = arith.constant 0 : i32
    %c0_i32_1 = arith.constant 0 : i32
    return %c0_i32, %c0_i32_0 : i32, i32
  }
  func.func @transform_3(%arg0: i32) -> (i32, i32) {
    %c0_i32 = arith.constant 0 : i32
    %c0_i32_0 = arith.constant 0 : i32
    %c0_i32_1 = arith.constant 0 : i32
    return %c0_i32, %c0_i32_0 : i32, i32
  }
  func.func @transform_4(%arg0: i32) -> (i32, i32) {
    %c0_i32 = arith.constant 0 : i32
    %c0_i32_0 = arith.constant 0 : i32
    return %arg0, %c0_i32 : i32, i32
  }
  func.func @transform_5(%arg0: i32) -> (i32, i32, i32) {
    %c0_i32 = arith.constant 0 : i32
    %c0_i32_0 = arith.constant 0 : i32
    %c0_i32_1 = arith.constant 0 : i32
    return %arg0, %c0_i32, %c0_i32_0 : i32, i32, i32
  }
}

</mosaic_0001>

<llo_original>
// kernel: tpu_custom_call.1
$region0: #{tpu_custom_call.1}
  #allocation0 [shape = 'u32[]', space=smem, size = 0x4, offset = 0x4, fixed_abs, tag = 'smem constant byte address 0x4 - core index']
  #allocation1 [shape = 'u32[144,128]{1,0:T(1,128)}', space=vmem, size = 0x12000, scoped, tag = 'internal scratch']
  %s0 = inlined_call_operand.vmem [shape: f32[64,8,32], index: 0, kind: input, shape index: {}]
  %s1 = inlined_call_operand.vmem [shape: f32[64,8,1], index: 1, kind: input, shape index: {}]
  %s2 = inlined_call_operand.vmem [shape: bf16[32,32], index: 2, kind: input, shape index: {}]
  %s3 = inlined_call_operand.vmem [shape: bf16[32,4], index: 3, kind: input, shape index: {}]
  %s4 = inlined_call_operand.hbm [shape: f32[64,128], index: 4, kind: output, shape index: {0}]
  %s5 = inlined_call_operand.vmem [shape: f32[64,8,4], index: 5, kind: output, shape index: {1}]
  %6 = xla_tuple %s4, %s5
  %s7 = sld [smem:[#allocation0]]
  $region34: #{tpu_custom_call.1} parent=0
    _
  %s9 = ssub.s32 1, %s7
  %s10 = scalar_select 0, %s9, %s7
  $region1: #{tpu_custom_call.1} parent=0
    #allocation2 [shape = 'u8[32768]{0}', space=vmem, size = 0x8000, scoped, tag = 'output window, operand 0, single buffered']
    #allocation3 [shape = 's32[1]{0}', space=sflag, size = 0x4, scoped, tag = 'scoped memory for tpu_custom_call.1']
    %11 = vsyncpa [#allocation3], 0
    // Predicated region
    $region2: #{tpu_custom_call.1} parent=1 // pred_check
      _
    $region3: #{tpu_custom_call.1} parent=1 // pred_check_branch
      %13 = sbr.rel (0) target = $region5
    $region4: #{tpu_custom_call.1} parent=1 // pred_region
      _
    $region5: #{tpu_custom_call.1} parent=1 // pred_fallthru
      _
    // Predicated region
    $region6: #{tpu_custom_call.1} parent=1 // pred_check
      _
    $region7: #{tpu_custom_call.1} parent=1 // pred_check_branch
      %15 = sbr.rel (0) target = $region9
    $region8: #{tpu_custom_call.1} parent=1 // pred_region
      _
    $region9: #{tpu_custom_call.1} parent=1 // pred_fallthru
      _
    // Predicated region
    $region10: #{tpu_custom_call.1} parent=1 // pred_check
      _
    $region11: #{tpu_custom_call.1} parent=1 // pred_check_branch
      %17 = sbr.rel (0) target = $region13
    $region12: #{tpu_custom_call.1} parent=1 // pred_region
      _
    $region13: #{tpu_custom_call.1} parent=1 // pred_fallthru
      _
    // Predicated region
    $region14: #{tpu_custom_call.1} parent=1 // pred_check
      _
    $region15: #{tpu_custom_call.1} parent=1 // pred_check_branch
      %19 = sbr.rel (0) target = $region17
    $region16: #{tpu_custom_call.1} parent=1 // pred_region
      _
    $region17: #{tpu_custom_call.1} parent=1 // pred_fallthru
      _
    %v21 = vld [vmem:[%s0] sm:$0xff]
    %v22 = vld [vmem:[%s0 + $0x8] sm:$0xff]
    %v23 = vld [vmem:[%s0 + $0x10] sm:$0xff]
    %v24 = vld [vmem:[%s0 + $0x18] sm:$0xff]
    %v25 = vld [vmem:[%s0 + $0x20] sm:$0xff]
    %v26 = vld [vmem:[%s0 + $0x28] sm:$0xff]
    %v27 = vld [vmem:[%s0 + $0x30] sm:$0xff]
    %v28 = vld [vmem:[%s0 + $0x38] sm:$0xff]
    %v29 = vld [vmem:[%s0 + $0x40] sm:$0xff]
    %v30 = vld [vmem:[%s0 + $0x48] sm:$0xff]
    %v31 = vld [vmem:[%s0 + $0x50] sm:$0xff]
    %v32 = vld [vmem:[%s0 + $0x58] sm:$0xff]
    %v33 = vld [vmem:[%s0 + $0x60] sm:$0xff]
    %v34 = vld [vmem:[%s0 + $0x68] sm:$0xff]
    %v35 = vld [vmem:[%s0 + $0x70] sm:$0xff]
    %v36 = vld [vmem:[%s0 + $0x78] sm:$0xff]
    %v37 = vld [vmem:[%s0 + $0x80] sm:$0xff]
    %v38 = vld [vmem:[%s0 + $0x88] sm:$0xff]
    %v39 = vld [vmem:[%s0 + $0x90] sm:$0xff]
    %v40 = vld [vmem:[%s0 + $0x98] sm:$0xff]
    %v41 = vld [vmem:[%s0 + $0xa0] sm:$0xff]
    %v42 = vld [vmem:[%s0 + $0xa8] sm:$0xff]
    %v43 = vld [vmem:[%s0 + $0xb0] sm:$0xff]
    %v44 = vld [vmem:[%s0 + $0xb8] sm:$0xff]
    %v45 = vld [vmem:[%s0 + $0xc0] sm:$0xff]
    %v46 = vld [vmem:[%s0 + $0xc8] sm:$0xff]
    %v47 = vld [vmem:[%s0 + $0xd0] sm:$0xff]
    %v48 = vld [vmem:[%s0 + $0xd8] sm:$0xff]
    %v49 = vld [vmem:[%s0 + $0xe0] sm:$0xff]
    %v50 = vld [vmem:[%s0 + $0xe8] sm:$0xff]
    %v51 = vld [vmem:[%s0 + $0xf0] sm:$0xff]
    %v52 = vld [vmem:[%s0 + $0xf8] sm:$0xff]
    %v53 = vld [vmem:[%s0 + $0x100] sm:$0xff]
    %v54 = vld [vmem:[%s0 + $0x108] sm:$0xff]
    %v55 = vld [vmem:[%s0 + $0x110] sm:$0xff]
    %v56 = vld [vmem:[%s0 + $0x118] sm:$0xff]
    %v57 = vld [vmem:[%s0 + $0x120] sm:$0xff]
    %v58 = vld [vmem:[%s0 + $0x128] sm:$0xff]
    %v59 = vld [vmem:[%s0 + $0x130] sm:$0xff]
    %v60 = vld [vmem:[%s0 + $0x138] sm:$0xff]
    %v61 = vld [vmem:[%s0 + $0x140] sm:$0xff]
    %v62 = vld [vmem:[%s0 + $0x148] sm:$0xff]
    %v63 = vld [vmem:[%s0 + $0x150] sm:$0xff]
    %v64 = vld [vmem:[%s0 + $0x158] sm:$0xff]
    %v65 = vld [vmem:[%s0 + $0x160] sm:$0xff]
    %v66 = vld [vmem:[%s0 + $0x168] sm:$0xff]
    %v67 = vld [vmem:[%s0 + $0x170] sm:$0xff]
    %v68 = vld [vmem:[%s0 + $0x178] sm:$0xff]
    %v69 = vld [vmem:[%s0 + $0x180] sm:$0xff]
    %v70 = vld [vmem:[%s0 + $0x188] sm:$0xff]
    %v71 = vld [vmem:[%s0 + $0x190] sm:$0xff]
    %v72 = vld [vmem:[%s0 + $0x198] sm:$0xff]
    %v73 = vld [vmem:[%s0 + $0x1a0] sm:$0xff]
    %v74 = vld [vmem:[%s0 + $0x1a8] sm:$0xff]
    %v75 = vld [vmem:[%s0 + $0x1b0] sm:$0xff]
    %v76 = vld [vmem:[%s0 + $0x1b8] sm:$0xff]
    %v77 = vld [vmem:[%s0 + $0x1c0] sm:$0xff]
    %v78 = vld [vmem:[%s0 + $0x1c8] sm:$0xff]
    %v79 = vld [vmem:[%s0 + $0x1d0] sm:$0xff]
    %v80 = vld [vmem:[%s0 + $0x1d8] sm:$0xff]
    %v81 = vld [vmem:[%s0 + $0x1e0] sm:$0xff]
    %v82 = vld [vmem:[%s0 + $0x1e8] sm:$0xff]
    %v83 = vld [vmem:[%s0 + $0x1f0] sm:$0xff]
    %v84 = vld [vmem:[%s0 + $0x1f8] sm:$0xff]
    %v85 = vpack.c.bf16 %v22, %v21
    %v86 = vpack.c.bf16 %v24, %v23
    %v87 = vpack.c.bf16 %v26, %v25
    %v88 = vpack.c.bf16 %v28, %v27
    %v89 = vpack.c.bf16 %v30, %v29
    %v90 = vpack.c.bf16 %v32, %v31
    %v91 = vpack.c.bf16 %v34, %v33
    %v92 = vpack.c.bf16 %v36, %v35
    %v93 = vpack.c.bf16 %v38, %v37
    %v94 = vpack.c.bf16 %v40, %v39
    %v95 = vpack.c.bf16 %v42, %v41
    %v96 = vpack.c.bf16 %v44, %v43
    %v97 = vpack.c.bf16 %v46, %v45
    %v98 = vpack.c.bf16 %v48, %v47
    %v99 = vpack.c.bf16 %v50, %v49
    %v100 = vpack.c.bf16 %v52, %v51
    %v101 = vpack.c.bf16 %v54, %v53
    %v102 = vpack.c.bf16 %v56, %v55
    %v103 = vpack.c.bf16 %v58, %v57
    %v104 = vpack.c.bf16 %v60, %v59
    %v105 = vpack.c.bf16 %v62, %v61
    %v106 = vpack.c.bf16 %v64, %v63
    %v107 = vpack.c.bf16 %v66, %v65
    %v108 = vpack.c.bf16 %v68, %v67
    %v109 = vpack.c.bf16 %v70, %v69
    %v110 = vpack.c.bf16 %v72, %v71
    %v111 = vpack.c.bf16 %v74, %v73
    %v112 = vpack.c.bf16 %v76, %v75
    %v113 = vpack.c.bf16 %v78, %v77
    %v114 = vpack.c.bf16 %v80, %v79
    %v115 = vpack.c.bf16 %v82, %v81
    %v116 = vpack.c.bf16 %v84, %v83
    %v117 = vld [vmem:[%s2] sm:$0xf]
    %v118 = vld [vmem:[%s2 + $0x4] sm:$0xf]
    %v119 = vld [vmem:[%s2 + $0x8] sm:$0xf]
    %v120 = vld [vmem:[%s2 + $0xc] sm:$0xf]
    %v125 = vunpack.c.l.b16 %v117
    %v126 = vunpack.c.l.b16 %v118
    %v127 = vunpack.c.l.b16 %v119
    %v128 = vunpack.c.l.b16 %v120
    %v129 = vpack.c.b16 %v126, %v125
    %v130 = vpack.c.b16 %v128, %v127
    %vm133 = vcmask 261120
    %v135 = vsel %vm133, %v85, 0
    %v138 = vsel %vm133, %v86, 0
    %v141 = vsel %vm133, %v87, 0
    %v144 = vsel %vm133, %v88, 0
    %v147 = vsel %vm133, %v89, 0
    %v150 = vsel %vm133, %v90, 0
    %v153 = vsel %vm133, %v91, 0
    %v156 = vsel %vm133, %v92, 0
    %v159 = vsel %vm133, %v93, 0
    %v162 = vsel %vm133, %v94, 0
    %v165 = vsel %vm133, %v95, 0
    %v168 = vsel %vm133, %v96, 0
    %v171 = vsel %vm133, %v97, 0
    %v174 = vsel %vm133, %v98, 0
    %v177 = vsel %vm133, %v99, 0
    %v180 = vsel %vm133, %v100, 0
    %v183 = vsel %vm133, %v101, 0
    %v186 = vsel %vm133, %v102, 0
    %v189 = vsel %vm133, %v103, 0
    %v192 = vsel %vm133, %v104, 0
    %v195 = vsel %vm133, %v105, 0
    %v198 = vsel %vm133, %v106, 0
    %v201 = vsel %vm133, %v107, 0
    %v204 = vsel %vm133, %v108, 0
    %v207 = vsel %vm133, %v109, 0
    %v210 = vsel %vm133, %v110, 0
    %v213 = vsel %vm133, %v111, 0
    %v216 = vsel %vm133, %v112, 0
    %v219 = vsel %vm133, %v113, 0
    %v222 = vsel %vm133, %v114, 0
    %v225 = vsel %vm133, %v115, 0
    %v228 = vsel %vm133, %v116, 0
    %230 = vmatprep.subr.bf16.mxu0 0
    %231 = vmatpush1.bf16.msra.mxu0 %v129
    %232 = vmatprep.subr.bf16.mxu0 0
    %233 = vmatpush1.bf16.msra.mxu0 %v130
    %234 = vmatprep.subr.bf16.mxu0 0
    %235 = vmatpush1.bf16.msra.mxu0 0
    %236 = vmatprep.subr.bf16.mxu0 0
    %237 = vmatpush1.bf16.msra.mxu0 0
    %238 = vmatprep.subr.bf16.mxu0 0
    %239 = vmatpush1.bf16.msra.mxu0 0
    %240 = vmatprep.subr.bf16.mxu0 0
    %241 = vmatpush1.bf16.msra.mxu0 0
    %242 = vmatprep.subr.bf16.mxu0 0
    %243 = vmatpush1.bf16.msra.mxu0 0
    %244 = vmatprep.subr.bf16.mxu0 0
    %245 = vmatpush1.bf16.msra.mxu0 0
    %246 = vmatprep.subr.bf16.mxu0 0
    %247 = vmatpush1.bf16.msra.mxu0 0
    %248 = vmatprep.subr.bf16.mxu0 0
    %249 = vmatpush1.bf16.msra.mxu0 0
    %250 = vmatprep.subr.bf16.mxu0 0
    %251 = vmatpush1.bf16.msra.mxu0 0
    %252 = vmatprep.subr.bf16.mxu0 0
    %253 = vmatpush1.bf16.msra.mxu0 0
    %254 = vmatprep.subr.bf16.mxu0 0
    %255 = vmatpush1.bf16.msra.mxu0 0
    %256 = vmatprep.subr.bf16.mxu0 0
    %257 = vmatpush1.bf16.msra.mxu0 0
    %258 = vmatprep.subr.bf16.mxu0 0
    %259 = vmatpush1.bf16.msra.mxu0 0
    %260 = vmatprep.subr.bf16.mxu0 0
    %261 = vmatpush1.bf16.msra.mxu0 0
    %262 = vmatprep.mubr.bf16.mxu0 0
    %263 = vmatmul.mubr.bf16.gmra.mrb[0].mxu0 %v135
    %v264 = vpop.f32.mrb[0].mxu0
    %v265 = vadd.f32 0.0, %v264
    %v266 = vpop.f32.mrb[0].mxu0
    %v267 = vpop.f32.mrb[0].mxu0
    %v268 = vadd.f32 0.0, %v267
    %v269 = vpop.f32.mrb[0].mxu0
    %270 = vmatprep.mubr.bf16.mxu0 0
    %271 = vmatmul.mubr.bf16.gmra.mrb[0].mxu0 %v138
    %v272 = vpop.f32.mrb[0].mxu0
    %v273 = vadd.f32 0.0, %v272
    %v274 = vpop.f32.mrb[0].mxu0
    %v275 = vpop.f32.mrb[0].mxu0
    %v276 = vadd.f32 0.0, %v275
    %v277 = vpop.f32.mrb[0].mxu0
    %278 = vmatprep.mubr.bf16.mxu0 0
    %279 = vmatmul.mubr.bf16.gmra.mrb[0].mxu0 %v141
    %v280 = vpop.f32.mrb[0].mxu0
    %v281 = vadd.f32 0.0, %v280
    %v282 = vpop.f32.mrb[0].mxu0
    %v283 = vpop.f32.mrb[0].mxu0
    %v284 = vadd.f32 0.0, %v283
    %v285 = vpop.f32.mrb[0].mxu0
    %286 = vmatprep.mubr.bf16.mxu0 0
    %287 = vmatmul.mubr.bf16.gmra.mrb[0].mxu0 %v144
    %v288 = vpop.f32.mrb[0].mxu0
    %v289 = vadd.f32 0.0, %v288
    %v290 = vpop.f32.mrb[0].mxu0
    %v291 = vpop.f32.mrb[0].mxu0
    %v292 = vadd.f32 0.0, %v291
    %v293 = vpop.f32.mrb[0].mxu0
    %294 = vmatprep.mubr.bf16.mxu0 0
    %295 = vmatmul.mubr.bf16.gmra.mrb[0].mxu0 %v147
    %v296 = vpop.f32.mrb[0].mxu0
    %v297 = vadd.f32 0.0, %v296
    %v298 = vpop.f32.mrb[0].mxu0
    %v299 = vpop.f32.mrb[0].mxu0
    %v300 = vadd.f32 0.0, %v299
    %v301 = vpop.f32.mrb[0].mxu0
    %302 = vmatprep.mubr.bf16.mxu0 0
    %303 = vmatmul.mubr.bf16.gmra.mrb[0].mxu0 %v150
    %v304 = vpop.f32.mrb[0].mxu0
    %v305 = vadd.f32 0.0, %v304
    %v306 = vpop.f32.mrb[0].mxu0
    %v307 = vpop.f32.mrb[0].mxu0
    %v308 = vadd.f32 0.0, %v307
    %v309 = vpop.f32.mrb[0].mxu0
    %310 = vmatprep.mubr.bf16.mxu0 0
    %311 = vmatmul.mubr.bf16.gmra.mrb[0].mxu0 %v153
    %v312 = vpop.f32.mrb[0].mxu0
    %v313 = vadd.f32 0.0, %v312
    %v314 = vpop.f32.mrb[0].mxu0
    %v315 = vpop.f32.mrb[0].mxu0
    %v316 = vadd.f32 0.0, %v315
    %v317 = vpop.f32.mrb[0].mxu0
    %318 = vmatprep.mubr.bf16.mxu0 0
    %319 = vmatmul.mubr.bf16.gmra.mrb[0].mxu0 %v156
    %v320 = vpop.f32.mrb[0].mxu0
    %v321 = vadd.f32 0.0, %v320
    %v322 = vpop.f32.mrb[0].mxu0
    %v323 = vpop.f32.mrb[0].mxu0
    %v324 = vadd.f32 0.0, %v323
    %v325 = vpop.f32.mrb[0].mxu0
    %326 = vmatprep.mubr.bf16.mxu0 0
    %327 = vmatmul.mubr.bf16.gmra.mrb[0].mxu0 %v159
    %v328 = vpop.f32.mrb[0].mxu0
    %v329 = vadd.f32 0.0, %v328
    %v330 = vpop.f32.mrb[0].mxu0
    %v331 = vpop.f32.mrb[0].mxu0
    %v332 = vadd.f32 0.0, %v331
    %v333 = vpop.f32.mrb[0].mxu0
    %334 = vmatprep.mubr.bf16.mxu0 0
    %335 = vmatmul.mubr.bf16.gmra.mrb[0].mxu0 %v162
    %v336 = vpop.f32.mrb[0].mxu0
    %v337 = vadd.f32 0.0, %v336
    %v338 = vpop.f32.mrb[0].mxu0
    %v339 = vpop.f32.mrb[0].mxu0
    %v340 = vadd.f32 0.0, %v339
    %v341 = vpop.f32.mrb[0].mxu0
    %342 = vmatprep.mubr.bf16.mxu0 0
    %343 = vmatmul.mubr.bf16.gmra.mrb[0].mxu0 %v165
    %v344 = vpop.f32.mrb[0].mxu0
    %v345 = vadd.f32 0.0, %v344
    %v346 = vpop.f32.mrb[0].mxu0
    %v347 = vpop.f32.mrb[0].mxu0
    %v348 = vadd.f32 0.0, %v347
    %v349 = vpop.f32.mrb[0].mxu0
    %350 = vmatprep.mubr.bf16.mxu0 0
    %351 = vmatmul.mubr.bf16.gmra.mrb[0].mxu0 %v168
    %v352 = vpop.f32.mrb[0].mxu0
    %v353 = vadd.f32 0.0, %v352
    %v354 = vpop.f32.mrb[0].mxu0
    %v355 = vpop.f32.mrb[0].mxu0
    %v356 = vadd.f32 0.0, %v355
    %v357 = vpop.f32.mrb[0].mxu0
    %358 = vmatprep.mubr.bf16.mxu0 0
    %359 = vmatmul.mubr.bf16.gmra.mrb[0].mxu0 %v171
    %v360 = vpop.f32.mrb[0].mxu0
    %v361 = vadd.f32 0.0, %v360
    %v362 = vpop.f32.mrb[0].mxu0
    %v363 = vpop.f32.mrb[0].mxu0
    %v364 = vadd.f32 0.0, %v363
    %v365 = vpop.f32.mrb[0].mxu0
    %366 = vmatprep.mubr.bf16.mxu0 0
    %367 = vmatmul.mubr.bf16.gmra.mrb[0].mxu0 %v174
    %v368 = vpop.f32.mrb[0].mxu0
    %v369 = vadd.f32 0.0, %v368
    %v370 = vpop.f32.mrb[0].mxu0
    %v371 = vpop.f32.mrb[0].mxu0
    %v372 = vadd.f32 0.0, %v371
    %v373 = vpop.f32.mrb[0].mxu0
    %374 = vmatprep.mubr.bf16.mxu0 0
    %375 = vmatmul.mubr.bf16.gmra.mrb[0].mxu0 %v177
    %v376 = vpop.f32.mrb[0].mxu0
    %v377 = vadd.f32 0.0, %v376
    %v378 = vpop.f32.mrb[0].mxu0
    %v379 = vpop.f32.mrb[0].mxu0
    %v380 = vadd.f32 0.0, %v379
    %v381 = vpop.f32.mrb[0].mxu0
    %382 = vmatprep.mubr.bf16.mxu0 0
    %383 = vmatmul.mubr.bf16.gmra.mrb[0].mxu0 %v180
    %v384 = vpop.f32.mrb[0].mxu0
    %v385 = vadd.f32 0.0, %v384
    %v386 = vpop.f32.mrb[0].mxu0
    %v387 = vpop.f32.mrb[0].mxu0
    %v388 = vadd.f32 0.0, %v387
    %v389 = vpop.f32.mrb[0].mxu0
    %390 = vmatprep.mubr.bf16.mxu0 0
    %391 = vmatmul.mubr.bf16.gmra.mrb[0].mxu0 %v183
    %v392 = vpop.f32.mrb[0].mxu0
    %v393 = vadd.f32 0.0, %v392
    %v394 = vpop.f32.mrb[0].mxu0
    %v395 = vpop.f32.mrb[0].mxu0
    %v396 = vadd.f32 0.0, %v395
    %v397 = vpop.f32.mrb[0].mxu0
    %398 = vmatprep.mubr.bf16.mxu0 0
    %399 = vmatmul.mubr.bf16.gmra.mrb[0].mxu0 %v186
    %v400 = vpop.f32.mrb[0].mxu0
    %v401 = vadd.f32 0.0, %v400
    %v402 = vpop.f32.mrb[0].mxu0
    %v403 = vpop.f32.mrb[0].mxu0
    %v404 = vadd.f32 0.0, %v403
    %v405 = vpop.f32.mrb[0].mxu0
    %406 = vmatprep.mubr.bf16.mxu0 0
    %407 = vmatmul.mubr.bf16.gmra.mrb[0].mxu0 %v189
    %v408 = vpop.f32.mrb[0].mxu0
    %v409 = vadd.f32 0.0, %v408
    %v410 = vpop.f32.mrb[0].mxu0
    %v411 = vpop.f32.mrb[0].mxu0
    %v412 = vadd.f32 0.0, %v411
    %v413 = vpop.f32.mrb[0].mxu0
    %414 = vmatprep.mubr.bf16.mxu0 0
    %415 = vmatmul.mubr.bf16.gmra.mrb[0].mxu0 %v192
    %v416 = vpop.f32.mrb[0].mxu0
    %v417 = vadd.f32 0.0, %v416
    %v418 = vpop.f32.mrb[0].mxu0
    %v419 = vpop.f32.mrb[0].mxu0
    %v420 = vadd.f32 0.0, %v419
    %v421 = vpop.f32.mrb[0].mxu0
    %422 = vmatprep.mubr.bf16.mxu0 0
    %423 = vmatmul.mubr.bf16.gmra.mrb[0].mxu0 %v195
    %v424 = vpop.f32.mrb[0].mxu0
    %v425 = vadd.f32 0.0, %v424
    %v426 = vpop.f32.mrb[0].mxu0
    %v427 = vpop.f32.mrb[0].mxu0
    %v428 = vadd.f32 0.0, %v427
    %v429 = vpop.f32.mrb[0].mxu0
    %430 = vmatprep.mubr.bf16.mxu0 0
    %431 = vmatmul.mubr.bf16.gmra.mrb[0].mxu0 %v198
    %v432 = vpop.f32.mrb[0].mxu0
    %v433 = vadd.f32 0.0, %v432
    %v434 = vpop.f32.mrb[0].mxu0
    %v435 = vpop.f32.mrb[0].mxu0
    %v436 = vadd.f32 0.0, %v435
    %v437 = vpop.f32.mrb[0].mxu0
    %438 = vmatprep.mubr.bf16.mxu0 0
    %439 = vmatmul.mubr.bf16.gmra.mrb[0].mxu0 %v201
    %v440 = vpop.f32.mrb[0].mxu0
    %v441 = vadd.f32 0.0, %v440
    %v442 = vpop.f32.mrb[0].mxu0
    %v443 = vpop.f32.mrb[0].mxu0
    %v444 = vadd.f32 0.0, %v443
    %v445 = vpop.f32.mrb[0].mxu0
    %446 = vmatprep.mubr.bf16.mxu0 0
    %447 = vmatmul.mubr.bf16.gmra.mrb[0].mxu0 %v204
    %v448 = vpop.f32.mrb[0].mxu0
    %v449 = vadd.f32 0.0, %v448
    %v450 = vpop.f32.mrb[0].mxu0
    %v451 = vpop.f32.mrb[0].mxu0
    %v452 = vadd.f32 0.0, %v451
    %v453 = vpop.f32.mrb[0].mxu0
    %454 = vmatprep.mubr.bf16.mxu0 0
    %455 = vmatmul.mubr.bf16.gmra.mrb[0].mxu0 %v207
    %v456 = vpop.f32.mrb[0].mxu0
    %v457 = vadd.f32 0.0, %v456
    %v458 = vpop.f32.mrb[0].mxu0
    %v459 = vpop.f32.mrb[0].mxu0
    %v460 = vadd.f32 0.0, %v459
    %v461 = vpop.f32.mrb[0].mxu0
    %462 = vmatprep.mubr.bf16.mxu0 0
    %463 = vmatmul.mubr.bf16.gmra.mrb[0].mxu0 %v210
    %v464 = vpop.f32.mrb[0].mxu0
    %v465 = vadd.f32 0.0, %v464
    %v466 = vpop.f32.mrb[0].mxu0
    %v467 = vpop.f32.mrb[0].mxu0
    %v468 = vadd.f32 0.0, %v467
    %v469 = vpop.f32.mrb[0].mxu0
    %470 = vmatprep.mubr.bf16.mxu0 0
    %471 = vmatmul.mubr.bf16.gmra.mrb[0].mxu0 %v213
    %v472 = vpop.f32.mrb[0].mxu0
    %v473 = vadd.f32 0.0, %v472
    %v474 = vpop.f32.mrb[0].mxu0
    %v475 = vpop.f32.mrb[0].mxu0
    %v476 = vadd.f32 0.0, %v475
    %v477 = vpop.f32.mrb[0].mxu0
    %478 = vmatprep.mubr.bf16.mxu0 0
    %479 = vmatmul.mubr.bf16.gmra.mrb[0].mxu0 %v216
    %v480 = vpop.f32.mrb[0].mxu0
    %v481 = vadd.f32 0.0, %v480
    %v482 = vpop.f32.mrb[0].mxu0
    %v483 = vpop.f32.mrb[0].mxu0
    %v484 = vadd.f32 0.0, %v483
    %v485 = vpop.f32.mrb[0].mxu0
    %486 = vmatprep.mubr.bf16.mxu0 0
    %487 = vmatmul.mubr.bf16.gmra.mrb[0].mxu0 %v219
    %v488 = vpop.f32.mrb[0].mxu0
    %v489 = vadd.f32 0.0, %v488
    %v490 = vpop.f32.mrb[0].mxu0
    %v491 = vpop.f32.mrb[0].mxu0
    %v492 = vadd.f32 0.0, %v491
    %v493 = vpop.f32.mrb[0].mxu0
    %494 = vmatprep.mubr.bf16.mxu0 0
    %495 = vmatmul.mubr.bf16.gmra.mrb[0].mxu0 %v222
    %v496 = vpop.f32.mrb[0].mxu0
    %v497 = vadd.f32 0.0, %v496
    %v498 = vpop.f32.mrb[0].mxu0
    %v499 = vpop.f32.mrb[0].mxu0
    %v500 = vadd.f32 0.0, %v499
    %v501 = vpop.f32.mrb[0].mxu0
    %502 = vmatprep.mubr.bf16.mxu0 0
    %503 = vmatmul.mubr.bf16.gmra.mrb[0].mxu0 %v225
    %v504 = vpop.f32.mrb[0].mxu0
    %v505 = vadd.f32 0.0, %v504
    %v506 = vpop.f32.mrb[0].mxu0
    %v507 = vpop.f32.mrb[0].mxu0
    %v508 = vadd.f32 0.0, %v507
    %v509 = vpop.f32.mrb[0].mxu0
    %510 = vmatprep.mubr.bf16.mxu0 0
    %511 = vmatmul.mubr.bf16.gmra.mrb[0].mxu0 %v228
    %v512 = vpop.f32.mrb[0].mxu0
    %v513 = vadd.f32 0.0, %v512
    %v514 = vpop.f32.mrb[0].mxu0
    %v515 = vpop.f32.mrb[0].mxu0
    %v516 = vadd.f32 0.0, %v515
    %v517 = vpop.f32.mrb[0].mxu0
    %518 = vdwg.mxu0
    %v519 = vtanh.pop %v265
    %v520 = vtanh.pop %v268
    %v521 = vtanh.pop %v273
    %v522 = vtanh.pop %v276
    %v523 = vtanh.pop %v281
    %v524 = vtanh.pop %v284
    %v525 = vtanh.pop %v289
    %v526 = vtanh.pop %v292
    %v527 = vtanh.pop %v297
    %v528 = vtanh.pop %v300
    %v529 = vtanh.pop %v305
    %v530 = vtanh.pop %v308
    %v531 = vtanh.pop %v313
    %v532 = vtanh.pop %v316
    %v533 = vtanh.pop %v321
    %v534 = vtanh.pop %v324
    %v535 = vtanh.pop %v329
    %v536 = vtanh.pop %v332
    %v537 = vtanh.pop %v337
    %v538 = vtanh.pop %v340
    %v539 = vtanh.pop %v345
    %v540 = vtanh.pop %v348
    %v541 = vtanh.pop %v353
    %v542 = vtanh.pop %v356
    %v543 = vtanh.pop %v361
    %v544 = vtanh.pop %v364
    %v545 = vtanh.pop %v369
    %v546 = vtanh.pop %v372
    %v547 = vtanh.pop %v377
    %v548 = vtanh.pop %v380
    %v549 = vtanh.pop %v385
    %v550 = vtanh.pop %v388
    %v551 = vtanh.pop %v393
    %v552 = vtanh.pop %v396
    %v553 = vtanh.pop %v401
    %v554 = vtanh.pop %v404
    %v555 = vtanh.pop %v409
    %v556 = vtanh.pop %v412
    %v557 = vtanh.pop %v417
    %v558 = vtanh.pop %v420
    %v559 = vtanh.pop %v425
    %v560 = vtanh.pop %v428
    %v561 = vtanh.pop %v433
    %v562 = vtanh.pop %v436
    %v563 = vtanh.pop %v441
    %v564 = vtanh.pop %v444
    %v565 = vtanh.pop %v449
    %v566 = vtanh.pop %v452
    %v567 = vtanh.pop %v457
    %v568 = vtanh.pop %v460
    %v569 = vtanh.pop %v465
    %v570 = vtanh.pop %v468
    %v571 = vtanh.pop %v473
    %v572 = vtanh.pop %v476
    %v573 = vtanh.pop %v481
    %v574 = vtanh.pop %v484
    %v575 = vtanh.pop %v489
    %v576 = vtanh.pop %v492
    %v577 = vtanh.pop %v497
    %v578 = vtanh.pop %v500
    %v579 = vtanh.pop %v505
    %v580 = vtanh.pop %v508
    %v581 = vtanh.pop %v513
    %v582 = vtanh.pop %v516
    %v583 = vpack.c.bf16 %v520, %v519
    %v584 = vpack.c.bf16 %v522, %v521
    %v585 = vpack.c.bf16 %v524, %v523
    %v586 = vpack.c.bf16 %v526, %v525
    %v587 = vpack.c.bf16 %v528, %v527
    %v588 = vpack.c.bf16 %v530, %v529
    %v589 = vpack.c.bf16 %v532, %v531
    %v590 = vpack.c.bf16 %v534, %v533
    %v591 = vpack.c.bf16 %v536, %v535
    %v592 = vpack.c.bf16 %v538, %v537
    %v593 = vpack.c.bf16 %v540, %v539
    %v594 = vpack.c.bf16 %v542, %v541
    %v595 = vpack.c.bf16 %v544, %v543
    %v596 = vpack.c.bf16 %v546, %v545
    %v597 = vpack.c.bf16 %v548, %v547
    %v598 = vpack.c.bf16 %v550, %v549
    %v599 = vpack.c.bf16 %v552, %v551
    %v600 = vpack.c.bf16 %v554, %v553
    %v601 = vpack.c.bf16 %v556, %v555
    %v602 = vpack.c.bf16 %v558, %v557
    %v603 = vpack.c.bf16 %v560, %v559
    %v604 = vpack.c.bf16 %v562, %v561
    %v605 = vpack.c.bf16 %v564, %v563
    %v606 = vpack.c.bf16 %v566, %v565
    %v607 = vpack.c.bf16 %v568, %v567
    %v608 = vpack.c.bf16 %v570, %v569
    %v609 = vpack.c.bf16 %v572, %v571
    %v610 = vpack.c.bf16 %v574, %v573
    %v611 = vpack.c.bf16 %v576, %v575
    %v612 = vpack.c.bf16 %v578, %v577
    %v613 = vpack.c.bf16 %v580, %v579
    %v614 = vpack.c.bf16 %v582, %v581
    %v615 = vld [vmem:[%s3] sm:$0xf]
    %v616 = vld [vmem:[%s3 + $0x4] sm:$0xf]
    %v617 = vld [vmem:[%s3 + $0x8] sm:$0xf]
    %v618 = vld [vmem:[%s3 + $0xc] sm:$0xf]
    %v623 = vunpack.c.l.b16 %v615
    %v624 = vunpack.c.l.b16 %v616
    %v625 = vunpack.c.l.b16 %v617
    %v626 = vunpack.c.l.b16 %v618
    %v627 = vpack.c.b16 %v624, %v623
    %v628 = vpack.c.b16 %v626, %v625
    %v632 = vsel %vm133, %v583, 0
    %v635 = vsel %vm133, %v584, 0
    %v638 = vsel %vm133, %v585, 0
    %v641 = vsel %vm133, %v586, 0
    %v644 = vsel %vm133, %v587, 0
    %v647 = vsel %vm133, %v588, 0
    %v650 = vsel %vm133, %v589, 0
    %v653 = vsel %vm133, %v590, 0
    %v656 = vsel %vm133, %v591, 0
    %v659 = vsel %vm133, %v592, 0
    %v662 = vsel %vm133, %v593, 0
    %v665 = vsel %vm133, %v594, 0
    %v668 = vsel %vm133, %v595, 0
    %v671 = vsel %vm133, %v596, 0
    %v674 = vsel %vm133, %v597, 0
    %v677 = vsel %vm133, %v598, 0
    %v680 = vsel %vm133, %v599, 0
    %v683 = vsel %vm133, %v600, 0
    %v686 = vsel %vm133, %v601, 0
    %v689 = vsel %vm133, %v602, 0
    %v692 = vsel %vm133, %v603, 0
    %v695 = vsel %vm133, %v604, 0
    %v698 = vsel %vm133, %v605, 0
    %v701 = vsel %vm133, %v606, 0
    %v704 = vsel %vm133, %v607, 0
    %v707 = vsel %vm133, %v608, 0
    %v710 = vsel %vm133, %v609, 0
    %v713 = vsel %vm133, %v610, 0
    %v716 = vsel %vm133, %v611, 0
    %v719 = vsel %vm133, %v612, 0
    %v722 = vsel %vm133, %v613, 0
    %v725 = vsel %vm133, %v614, 0
    %727 = vmatprep.subr.bf16.mxu0 0
    %728 = vmatpush1.bf16.msra.mxu0 %v627
    %729 = vmatprep.subr.bf16.mxu0 0
    %730 = vmatpush1.bf16.msra.mxu0 %v628
    %731 = vmatprep.subr.bf16.mxu0 0
    %732 = vmatpush1.bf16.msra.mxu0 0
    %733 = vmatprep.subr.bf16.mxu0 0
    %734 = vmatpush1.bf16.msra.mxu0 0
    %735 = vmatprep.subr.bf16.mxu0 0
    %736 = vmatpush1.bf16.msra.mxu0 0
    %737 = vmatprep.subr.bf16.mxu0 0
    %738 = vmatpush1.bf16.msra.mxu0 0
    %739 = vmatprep.subr.bf16.mxu0 0
    %740 = vmatpush1.bf16.msra.mxu0 0
    %741 = vmatprep.subr.bf16.mxu0 0
    %742 = vmatpush1.bf16.msra.mxu0 0
    %743 = vmatprep.subr.bf16.mxu0 0
    %744 = vmatpush1.bf16.msra.mxu0 0
    %745 = vmatprep.subr.bf16.mxu0 0
    %746 = vmatpush1.bf16.msra.mxu0 0
    %747 = vmatprep.subr.bf16.mxu0 0
    %748 = vmatpush1.bf16.msra.mxu0 0
    %749 = vmatprep.subr.bf16.mxu0 0
    %750 = vmatpush1.bf16.msra.mxu0 0
    %751 = vmatprep.subr.bf16.mxu0 0
    %752 = vmatpush1.bf16.msra.mxu0 0
    %753 = vmatprep.subr.bf16.mxu0 0
    %754 = vmatpush1.bf16.msra.mxu0 0
    %755 = vmatprep.subr.bf16.mxu0 0
    %756 = vmatpush1.bf16.msra.mxu0 0
    %757 = vmatprep.subr.bf16.mxu0 0
    %758 = vmatpush1.bf16.msra.mxu0 0
    %759 = vmatprep.mubr.bf16.mxu0 0
    %760 = vmatmul.mubr.bf16.gmra.mrb[0].mxu0 %v632
    %v761 = vpop.f32.mrb[0].mxu0
    %v762 = vadd.f32 0.0, %v761
    %v763 = vpop.f32.mrb[0].mxu0
    %v764 = vpop.f32.mrb[0].mxu0
    %v765 = vadd.f32 0.0, %v764
    %v766 = vpop.f32.mrb[0].mxu0
    %767 = vmatprep.mubr.bf16.mxu0 0
    %768 = vmatmul.mubr.bf16.gmra.mrb[0].mxu0 %v635
    %v769 = vpop.f32.mrb[0].mxu0
    %v770 = vadd.f32 0.0, %v769
    %v771 = vpop.f32.mrb[0].mxu0
    %v772 = vpop.f32.mrb[0].mxu0
    %v773 = vadd.f32 0.0, %v772
    %v774 = vpop.f32.mrb[0].mxu0
    %775 = vmatprep.mubr.bf16.mxu0 0
    %776 = vmatmul.mubr.bf16.gmra.mrb[0].mxu0 %v638
    %v777 = vpop.f32.mrb[0].mxu0
    %v778 = vadd.f32 0.0, %v777
    %v779 = vpop.f32.mrb[0].mxu0
    %v780 = vpop.f32.mrb[0].mxu0
    %v781 = vadd.f32 0.0, %v780
    %v782 = vpop.f32.mrb[0].mxu0
    %783 = vmatprep.mubr.bf16.mxu0 0
    %784 = vmatmul.mubr.bf16.gmra.mrb[0].mxu0 %v641
    %v785 = vpop.f32.mrb[0].mxu0
    %v786 = vadd.f32 0.0, %v785
    %v787 = vpop.f32.mrb[0].mxu0
    %v788 = vpop.f32.mrb[0].mxu0
    %v789 = vadd.f32 0.0, %v788
    %v790 = vpop.f32.mrb[0].mxu0
    %791 = vmatprep.mubr.bf16.mxu0 0
    %792 = vmatmul.mubr.bf16.gmra.mrb[0].mxu0 %v644
    %v793 = vpop.f32.mrb[0].mxu0
    %v794 = vadd.f32 0.0, %v793
    %v795 = vpop.f32.mrb[0].mxu0
    %v796 = vpop.f32.mrb[0].mxu0
    %v797 = vadd.f32 0.0, %v796
    %v798 = vpop.f32.mrb[0].mxu0
    %799 = vmatprep.mubr.bf16.mxu0 0
    %800 = vmatmul.mubr.bf16.gmra.mrb[0].mxu0 %v647
    %v801 = vpop.f32.mrb[0].mxu0
    %v802 = vadd.f32 0.0, %v801
    %v803 = vpop.f32.mrb[0].mxu0
    %v804 = vpop.f32.mrb[0].mxu0
    %v805 = vadd.f32 0.0, %v804
    %v806 = vpop.f32.mrb[0].mxu0
    %807 = vmatprep.mubr.bf16.mxu0 0
    %808 = vmatmul.mubr.bf16.gmra.mrb[0].mxu0 %v650
    %v809 = vpop.f32.mrb[0].mxu0
    %v810 = vadd.f32 0.0, %v809
    %v811 = vpop.f32.mrb[0].mxu0
    %v812 = vpop.f32.mrb[0].mxu0
    %v813 = vadd.f32 0.0, %v812
    %v814 = vpop.f32.mrb[0].mxu0
    %815 = vmatprep.mubr.bf16.mxu0 0
    %816 = vmatmul.mubr.bf16.gmra.mrb[0].mxu0 %v653
    %v817 = vpop.f32.mrb[0].mxu0
    %v818 = vadd.f32 0.0, %v817
    %v819 = vpop.f32.mrb[0].mxu0
    %v820 = vpop.f32.mrb[0].mxu0
    %v821 = vadd.f32 0.0, %v820
    %v822 = vpop.f32.mrb[0].mxu0
    %823 = vmatprep.mubr.bf16.mxu0 0
    %824 = vmatmul.mubr.bf16.gmra.mrb[0].mxu0 %v656
    %v825 = vpop.f32.mrb[0].mxu0
    %v826 = vadd.f32 0.0, %v825
    %v827 = vpop.f32.mrb[0].mxu0
    %v828 = vpop.f32.mrb[0].mxu0
    %v829 = vadd.f32 0.0, %v828
    %v830 = vpop.f32.mrb[0].mxu0
    %831 = vmatprep.mubr.bf16.mxu0 0
    %832 = vmatmul.mubr.bf16.gmra.mrb[0].mxu0 %v659
    %v833 = vpop.f32.mrb[0].mxu0
    %v834 = vadd.f32 0.0, %v833
    %v835 = vpop.f32.mrb[0].mxu0
    %v836 = vpop.f32.mrb[0].mxu0
    %v837 = vadd.f32 0.0, %v836
    %v838 = vpop.f32.mrb[0].mxu0
    %839 = vmatprep.mubr.bf16.mxu0 0
    %840 = vmatmul.mubr.bf16.gmra.mrb[0].mxu0 %v662
    %v841 = vpop.f32.mrb[0].mxu0
    %v842 = vadd.f32 0.0, %v841
    %v843 = vpop.f32.mrb[0].mxu0
    %v844 = vpop.f32.mrb[0].mxu0
    %v845 = vadd.f32 0.0, %v844
    %v846 = vpop.f32.mrb[0].mxu0
    %847 = vmatprep.mubr.bf16.mxu0 0
    %848 = vmatmul.mubr.bf16.gmra.mrb[0].mxu0 %v665
    %v849 = vpop.f32.mrb[0].mxu0
    %v850 = vadd.f32 0.0, %v849
    %v851 = vpop.f32.mrb[0].mxu0
    %v852 = vpop.f32.mrb[0].mxu0
    %v853 = vadd.f32 0.0, %v852
    %v854 = vpop.f32.mrb[0].mxu0
    %855 = vmatprep.mubr.bf16.mxu0 0
    %856 = vmatmul.mubr.bf16.gmra.mrb[0].mxu0 %v668
    %v857 = vpop.f32.mrb[0].mxu0
    %v858 = vadd.f32 0.0, %v857
    %v859 = vpop.f32.mrb[0].mxu0
    %v860 = vpop.f32.mrb[0].mxu0
    %v861 = vadd.f32 0.0, %v860
    %v862 = vpop.f32.mrb[0].mxu0
    %863 = vmatprep.mubr.bf16.mxu0 0
    %864 = vmatmul.mubr.bf16.gmra.mrb[0].mxu0 %v671
    %v865 = vpop.f32.mrb[0].mxu0
    %v866 = vadd.f32 0.0, %v865
    %v867 = vpop.f32.mrb[0].mxu0
    %v868 = vpop.f32.mrb[0].mxu0
    %v869 = vadd.f32 0.0, %v868
    %v870 = vpop.f32.mrb[0].mxu0
    %871 = vmatprep.mubr.bf16.mxu0 0
    %872 = vmatmul.mubr.bf16.gmra.mrb[0].mxu0 %v674
    %v873 = vpop.f32.mrb[0].mxu0
    %v874 = vadd.f32 0.0, %v873
    %v875 = vpop.f32.mrb[0].mxu0
    %v876 = vpop.f32.mrb[0].mxu0
    %v877 = vadd.f32 0.0, %v876
    %v878 = vpop.f32.mrb[0].mxu0
    %879 = vmatprep.mubr.bf16.mxu0 0
    %880 = vmatmul.mubr.bf16.gmra.mrb[0].mxu0 %v677
    %v881 = vpop.f32.mrb[0].mxu0
    %v882 = vadd.f32 0.0, %v881
    %v883 = vpop.f32.mrb[0].mxu0
    %v884 = vpop.f32.mrb[0].mxu0
    %v885 = vadd.f32 0.0, %v884
    %v886 = vpop.f32.mrb[0].mxu0
    %887 = vmatprep.mubr.bf16.mxu0 0
    %888 = vmatmul.mubr.bf16.gmra.mrb[0].mxu0 %v680
    %v889 = vpop.f32.mrb[0].mxu0
    %v890 = vadd.f32 0.0, %v889
    %v891 = vpop.f32.mrb[0].mxu0
    %v892 = vpop.f32.mrb[0].mxu0
    %v893 = vadd.f32 0.0, %v892
    %v894 = vpop.f32.mrb[0].mxu0
    %895 = vmatprep.mubr.bf16.mxu0 0
    %896 = vmatmul.mubr.bf16.gmra.mrb[0].mxu0 %v683
    %v897 = vpop.f32.mrb[0].mxu0
    %v898 = vadd.f32 0.0, %v897
    %v899 = vpop.f32.mrb[0].mxu0
    %v900 = vpop.f32.mrb[0].mxu0
    %v901 = vadd.f32 0.0, %v900
    %v902 = vpop.f32.mrb[0].mxu0
    %903 = vmatprep.mubr.bf16.mxu0 0
    %904 = vmatmul.mubr.bf16.gmra.mrb[0].mxu0 %v686
    %v905 = vpop.f32.mrb[0].mxu0
    %v906 = vadd.f32 0.0, %v905
    %v907 = vpop.f32.mrb[0].mxu0
    %v908 = vpop.f32.mrb[0].mxu0
    %v909 = vadd.f32 0.0, %v908
    %v910 = vpop.f32.mrb[0].mxu0
    %911 = vmatprep.mubr.bf16.mxu0 0
    %912 = vmatmul.mubr.bf16.gmra.mrb[0].mxu0 %v689
    %v913 = vpop.f32.mrb[0].mxu0
    %v914 = vadd.f32 0.0, %v913
    %v915 = vpop.f32.mrb[0].mxu0
    %v916 = vpop.f32.mrb[0].mxu0
    %v917 = vadd.f32 0.0, %v916
    %v918 = vpop.f32.mrb[0].mxu0
    %919 = vmatprep.mubr.bf16.mxu0 0
    %920 = vmatmul.mubr.bf16.gmra.mrb[0].mxu0 %v692
    %v921 = vpop.f32.mrb[0].mxu0
    %v922 = vadd.f32 0.0, %v921
    %v923 = vpop.f32.mrb[0].mxu0
    %v924 = vpop.f32.mrb[0].mxu0
    %v925 = vadd.f32 0.0, %v924
    %v926 = vpop.f32.mrb[0].mxu0
    %927 = vmatprep.mubr.bf16.mxu0 0
    %928 = vmatmul.mubr.bf16.gmra.mrb[0].mxu0 %v695
    %v929 = vpop.f32.mrb[0].mxu0
    %v930 = vadd.f32 0.0, %v929
    %v931 = vpop.f32.mrb[0].mxu0
    %v932 = vpop.f32.mrb[0].mxu0
    %v933 = vadd.f32 0.0, %v932
    %v934 = vpop.f32.mrb[0].mxu0
    %935 = vmatprep.mubr.bf16.mxu0 0
    %936 = vmatmul.mubr.bf16.gmra.mrb[0].mxu0 %v698
    %v937 = vpop.f32.mrb[0].mxu0
    %v938 = vadd.f32 0.0, %v937
    %v939 = vpop.f32.mrb[0].mxu0
    %v940 = vpop.f32.mrb[0].mxu0
    %v941 = vadd.f32 0.0, %v940
    %v942 = vpop.f32.mrb[0].mxu0
    %943 = vmatprep.mubr.bf16.mxu0 0
    %944 = vmatmul.mubr.bf16.gmra.mrb[0].mxu0 %v701
    %v945 = vpop.f32.mrb[0].mxu0
    %v946 = vadd.f32 0.0, %v945
    %v947 = vpop.f32.mrb[0].mxu0
    %v948 = vpop.f32.mrb[0].mxu0
    %v949 = vadd.f32 0.0, %v948
    %v950 = vpop.f32.mrb[0].mxu0
    %951 = vmatprep.mubr.bf16.mxu0 0
    %952 = vmatmul.mubr.bf16.gmra.mrb[0].mxu0 %v704
    %v953 = vpop.f32.mrb[0].mxu0
    %v954 = vadd.f32 0.0, %v953
    %v955 = vpop.f32.mrb[0].mxu0
    %v956 = vpop.f32.mrb[0].mxu0
    %v957 = vadd.f32 0.0, %v956
    %v958 = vpop.f32.mrb[0].mxu0
    %959 = vmatprep.mubr.bf16.mxu0 0
    %960 = vmatmul.mubr.bf16.gmra.mrb[0].mxu0 %v707
    %v961 = vpop.f32.mrb[0].mxu0
    %v962 = vadd.f32 0.0, %v961
    %v963 = vpop.f32.mrb[0].mxu0
    %v964 = vpop.f32.mrb[0].mxu0
    %v965 = vadd.f32 0.0, %v964
    %v966 = vpop.f32.mrb[0].mxu0
    %967 = vmatprep.mubr.bf16.mxu0 0
    %968 = vmatmul.mubr.bf16.gmra.mrb[0].mxu0 %v710
    %v969 = vpop.f32.mrb[0].mxu0
    %v970 = vadd.f32 0.0, %v969
    %v971 = vpop.f32.mrb[0].mxu0
    %v972 = vpop.f32.mrb[0].mxu0
    %v973 = vadd.f32 0.0, %v972
    %v974 = vpop.f32.mrb[0].mxu0
    %975 = vmatprep.mubr.bf16.mxu0 0
    %976 = vmatmul.mubr.bf16.gmra.mrb[0].mxu0 %v713
    %v977 = vpop.f32.mrb[0].mxu0
    %v978 = vadd.f32 0.0, %v977
    %v979 = vpop.f32.mrb[0].mxu0
    %v980 = vpop.f32.mrb[0].mxu0
    %v981 = vadd.f32 0.0, %v980
    %v982 = vpop.f32.mrb[0].mxu0
    %983 = vmatprep.mubr.bf16.mxu0 0
    %984 = vmatmul.mubr.bf16.gmra.mrb[0].mxu0 %v716
    %v985 = vpop.f32.mrb[0].mxu0
    %v986 = vadd.f32 0.0, %v985
    %v987 = vpop.f32.mrb[0].mxu0
    %v988 = vpop.f32.mrb[0].mxu0
    %v989 = vadd.f32 0.0, %v988
    %v990 = vpop.f32.mrb[0].mxu0
    %991 = vmatprep.mubr.bf16.mxu0 0
    %992 = vmatmul.mubr.bf16.gmra.mrb[0].mxu0 %v719
    %v993 = vpop.f32.mrb[0].mxu0
    %v994 = vadd.f32 0.0, %v993
    %v995 = vpop.f32.mrb[0].mxu0
    %v996 = vpop.f32.mrb[0].mxu0
    %v997 = vadd.f32 0.0, %v996
    %v998 = vpop.f32.mrb[0].mxu0
    %999 = vmatprep.mubr.bf16.mxu0 0
    %1000 = vmatmul.mubr.bf16.gmra.mrb[0].mxu0 %v722
    %v1001 = vpop.f32.mrb[0].mxu0
    %v1002 = vadd.f32 0.0, %v1001
    %v1003 = vpop.f32.mrb[0].mxu0
    %v1004 = vpop.f32.mrb[0].mxu0
    %v1005 = vadd.f32 0.0, %v1004
    %v1006 = vpop.f32.mrb[0].mxu0
    %1007 = vmatprep.mubr.bf16.mxu0 0
    %1008 = vmatmul.mubr.bf16.gmra.mrb[0].mxu0 %v725
    %v1009 = vpop.f32.mrb[0].mxu0
    %v1010 = vadd.f32 0.0, %v1009
    %v1011 = vpop.f32.mrb[0].mxu0
    %v1012 = vpop.f32.mrb[0].mxu0
    %v1013 = vadd.f32 0.0, %v1012
    %v1014 = vpop.f32.mrb[0].mxu0
    %1015 = vdwg.mxu0
    %v1016 = vld [vmem:[%s1] sm:$0xff]
    %v1017 = vld [vmem:[%s1 + $0x8] sm:$0xff]
    %v1018 = vld [vmem:[%s1 + $0x10] sm:$0xff]
    %v1019 = vld [vmem:[%s1 + $0x18] sm:$0xff]
    %v1020 = vld [vmem:[%s1 + $0x20] sm:$0xff]
    %v1021 = vld [vmem:[%s1 + $0x28] sm:$0xff]
    %v1022 = vld [vmem:[%s1 + $0x30] sm:$0xff]
    %v1023 = vld [vmem:[%s1 + $0x38] sm:$0xff]
    %v1024 = vld [vmem:[%s1 + $0x40] sm:$0xff]
    %v1025 = vld [vmem:[%s1 + $0x48] sm:$0xff]
    %v1026 = vld [vmem:[%s1 + $0x50] sm:$0xff]
    %v1027 = vld [vmem:[%s1 + $0x58] sm:$0xff]
    %v1028 = vld [vmem:[%s1 + $0x60] sm:$0xff]
    %v1029 = vld [vmem:[%s1 + $0x68] sm:$0xff]
    %v1030 = vld [vmem:[%s1 + $0x70] sm:$0xff]
    %v1031 = vld [vmem:[%s1 + $0x78] sm:$0xff]
    %v1032 = vld [vmem:[%s1 + $0x80] sm:$0xff]
    %v1033 = vld [vmem:[%s1 + $0x88] sm:$0xff]
    %v1034 = vld [vmem:[%s1 + $0x90] sm:$0xff]
    %v1035 = vld [vmem:[%s1 + $0x98] sm:$0xff]
    %v1036 = vld [vmem:[%s1 + $0xa0] sm:$0xff]
    %v1037 = vld [vmem:[%s1 + $0xa8] sm:$0xff]
    %v1038 = vld [vmem:[%s1 + $0xb0] sm:$0xff]
    %v1039 = vld [vmem:[%s1 + $0xb8] sm:$0xff]
    %v1040 = vld [vmem:[%s1 + $0xc0] sm:$0xff]
    %v1041 = vld [vmem:[%s1 + $0xc8] sm:$0xff]
    %v1042 = vld [vmem:[%s1 + $0xd0] sm:$0xff]
    %v1043 = vld [vmem:[%s1 + $0xd8] sm:$0xff]
    %v1044 = vld [vmem:[%s1 + $0xe0] sm:$0xff]
    %v1045 = vld [vmem:[%s1 + $0xe8] sm:$0xff]
    %v1046 = vld [vmem:[%s1 + $0xf0] sm:$0xff]
    %v1047 = vld [vmem:[%s1 + $0xf8] sm:$0xff]
    %v1048 = vld [vmem:[%s1 + $0x100] sm:$0xff]
    %v1049 = vld [vmem:[%s1 + $0x108] sm:$0xff]
    %v1050 = vld [vmem:[%s1 + $0x110] sm:$0xff]
    %v1051 = vld [vmem:[%s1 + $0x118] sm:$0xff]
    %v1052 = vld [vmem:[%s1 + $0x120] sm:$0xff]
    %v1053 = vld [vmem:[%s1 + $0x128] sm:$0xff]
    %v1054 = vld [vmem:[%s1 + $0x130] sm:$0xff]
    %v1055 = vld [vmem:[%s1 + $0x138] sm:$0xff]
    %v1056 = vld [vmem:[%s1 + $0x140] sm:$0xff]
    %v1057 = vld [vmem:[%s1 + $0x148] sm:$0xff]
    %v1058 = vld [vmem:[%s1 + $0x150] sm:$0xff]
    %v1059 = vld [vmem:[%s1 + $0x158] sm:$0xff]
    %v1060 = vld [vmem:[%s1 + $0x160] sm:$0xff]
    %v1061 = vld [vmem:[%s1 + $0x168] sm:$0xff]
    %v1062 = vld [vmem:[%s1 + $0x170] sm:$0xff]
    %v1063 = vld [vmem:[%s1 + $0x178] sm:$0xff]
    %v1064 = vld [vmem:[%s1 + $0x180] sm:$0xff]
    %v1065 = vld [vmem:[%s1 + $0x188] sm:$0xff]
    %v1066 = vld [vmem:[%s1 + $0x190] sm:$0xff]
    %v1067 = vld [vmem:[%s1 + $0x198] sm:$0xff]
    %v1068 = vld [vmem:[%s1 + $0x1a0] sm:$0xff]
    %v1069 = vld [vmem:[%s1 + $0x1a8] sm:$0xff]
    %v1070 = vld [vmem:[%s1 + $0x1b0] sm:$0xff]
    %v1071 = vld [vmem:[%s1 + $0x1b8] sm:$0xff]
    %v1072 = vld [vmem:[%s1 + $0x1c0] sm:$0xff]
    %v1073 = vld [vmem:[%s1 + $0x1c8] sm:$0xff]
    %v1074 = vld [vmem:[%s1 + $0x1d0] sm:$0xff]
    %v1075 = vld [vmem:[%s1 + $0x1d8] sm:$0xff]
    %v1076 = vld [vmem:[%s1 + $0x1e0] sm:$0xff]
    %v1077 = vld [vmem:[%s1 + $0x1e8] sm:$0xff]
    %v1078 = vld [vmem:[%s1 + $0x1f0] sm:$0xff]
    %v1079 = vld [vmem:[%s1 + $0x1f8] sm:$0xff]
    %1081 = vset.pattern.permute.xlu0 0
    %1082 = vperm.xlu0 %1081, %v1016
    %v1083 = vpop.permute.xlu0 %1082
    %1086 = vset.pattern.permute.xlu0 0
    %1087 = vperm.xlu0 %1086, %v1017
    %v1088 = vpop.permute.xlu0 %1087
    %1091 = vset.pattern.permute.xlu0 0
    %1092 = vperm.xlu0 %1091, %v1018
    %v1093 = vpop.permute.xlu0 %1092
    %1096 = vset.pattern.permute.xlu0 0
    %1097 = vperm.xlu0 %1096, %v1019
    %v1098 = vpop.permute.xlu0 %1097
    %1101 = vset.pattern.permute.xlu0 0
    %1102 = vperm.xlu0 %1101, %v1020
    %v1103 = vpop.permute.xlu0 %1102
    %1106 = vset.pattern.permute.xlu0 0
    %1107 = vperm.xlu0 %1106, %v1021
    %v1108 = vpop.permute.xlu0 %1107
    %1111 = vset.pattern.permute.xlu0 0
    %1112 = vperm.xlu0 %1111, %v1022
    %v1113 = vpop.permute.xlu0 %1112
    %1116 = vset.pattern.permute.xlu0 0
    %1117 = vperm.xlu0 %1116, %v1023
    %v1118 = vpop.permute.xlu0 %1117
    %1121 = vset.pattern.permute.xlu0 0
    %1122 = vperm.xlu0 %1121, %v1024
    %v1123 = vpop.permute.xlu0 %1122
    %1126 = vset.pattern.permute.xlu0 0
    %1127 = vperm.xlu0 %1126, %v1025
    %v1128 = vpop.permute.xlu0 %1127
    %1131 = vset.pattern.permute.xlu0 0
    %1132 = vperm.xlu0 %1131, %v1026
    %v1133 = vpop.permute.xlu0 %1132
    %1136 = vset.pattern.permute.xlu0 0
    %1137 = vperm.xlu0 %1136, %v1027
    %v1138 = vpop.permute.xlu0 %1137
    %1141 = vset.pattern.permute.xlu0 0
    %1142 = vperm.xlu0 %1141, %v1028
    %v1143 = vpop.permute.xlu0 %1142
    %1146 = vset.pattern.permute.xlu0 0
    %1147 = vperm.xlu0 %1146, %v1029
    %v1148 = vpop.permute.xlu0 %1147
    %1151 = vset.pattern.permute.xlu0 0
    %1152 = vperm.xlu0 %1151, %v1030
    %v1153 = vpop.permute.xlu0 %1152
    %1156 = vset.pattern.permute.xlu0 0
    %1157 = vperm.xlu0 %1156, %v1031
    %v1158 = vpop.permute.xlu0 %1157
    %1161 = vset.pattern.permute.xlu0 0
    %1162 = vperm.xlu0 %1161, %v1032
    %v1163 = vpop.permute.xlu0 %1162
    %1166 = vset.pattern.permute.xlu0 0
    %1167 = vperm.xlu0 %1166, %v1033
    %v1168 = vpop.permute.xlu0 %1167
    %1171 = vset.pattern.permute.xlu0 0
    %1172 = vperm.xlu0 %1171, %v1034
    %v1173 = vpop.permute.xlu0 %1172
    %1176 = vset.pattern.permute.xlu0 0
    %1177 = vperm.xlu0 %1176, %v1035
    %v1178 = vpop.permute.xlu0 %1177
    %1181 = vset.pattern.permute.xlu0 0
    %1182 = vperm.xlu0 %1181, %v1036
    %v1183 = vpop.permute.xlu0 %1182
    %1186 = vset.pattern.permute.xlu0 0
    %1187 = vperm.xlu0 %1186, %v1037
    %v1188 = vpop.permute.xlu0 %1187
    %1191 = vset.pattern.permute.xlu0 0
    %1192 = vperm.xlu0 %1191, %v1038
    %v1193 = vpop.permute.xlu0 %1192
    %1196 = vset.pattern.permute.xlu0 0
    %1197 = vperm.xlu0 %1196, %v1039
    %v1198 = vpop.permute.xlu0 %1197
    %1201 = vset.pattern.permute.xlu0 0
    %1202 = vperm.xlu0 %1201, %v1040
    %v1203 = vpop.permute.xlu0 %1202
    %1206 = vset.pattern.permute.xlu0 0
    %1207 = vperm.xlu0 %1206, %v1041
    %v1208 = vpop.permute.xlu0 %1207
    %1211 = vset.pattern.permute.xlu0 0
    %1212 = vperm.xlu0 %1211, %v1042
    %v1213 = vpop.permute.xlu0 %1212
    %1216 = vset.pattern.permute.xlu0 0
    %1217 = vperm.xlu0 %1216, %v1043
    %v1218 = vpop.permute.xlu0 %1217
    %1221 = vset.pattern.permute.xlu0 0
    %1222 = vperm.xlu0 %1221, %v1044
    %v1223 = vpop.permute.xlu0 %1222
    %1226 = vset.pattern.permute.xlu0 0
    %1227 = vperm.xlu0 %1226, %v1045
    %v1228 = vpop.permute.xlu0 %1227
    %1231 = vset.pattern.permute.xlu0 0
    %1232 = vperm.xlu0 %1231, %v1046
    %v1233 = vpop.permute.xlu0 %1232
    %1236 = vset.pattern.permute.xlu0 0
    %1237 = vperm.xlu0 %1236, %v1047
    %v1238 = vpop.permute.xlu0 %1237
    %1241 = vset.pattern.permute.xlu0 0
    %1242 = vperm.xlu0 %1241, %v1048
    %v1243 = vpop.permute.xlu0 %1242
    %1246 = vset.pattern.permute.xlu0 0
    %1247 = vperm.xlu0 %1246, %v1049
    %v1248 = vpop.permute.xlu0 %1247
    %1251 = vset.pattern.permute.xlu0 0
    %1252 = vperm.xlu0 %1251, %v1050
    %v1253 = vpop.permute.xlu0 %1252
    %1256 = vset.pattern.permute.xlu0 0
    %1257 = vperm.xlu0 %1256, %v1051
    %v1258 = vpop.permute.xlu0 %1257
    %1261 = vset.pattern.permute.xlu0 0
    %1262 = vperm.xlu0 %1261, %v1052
    %v1263 = vpop.permute.xlu0 %1262
    %1266 = vset.pattern.permute.xlu0 0
    %1267 = vperm.xlu0 %1266, %v1053
    %v1268 = vpop.permute.xlu0 %1267
    %1271 = vset.pattern.permute.xlu0 0
    %1272 = vperm.xlu0 %1271, %v1054
    %v1273 = vpop.permute.xlu0 %1272
    %1276 = vset.pattern.permute.xlu0 0
    %1277 = vperm.xlu0 %1276, %v1055
    %v1278 = vpop.permute.xlu0 %1277
    %1281 = vset.pattern.permute.xlu0 0
    %1282 = vperm.xlu0 %1281, %v1056
    %v1283 = vpop.permute.xlu0 %1282
    %1286 = vset.pattern.permute.xlu0 0
    %1287 = vperm.xlu0 %1286, %v1057
    %v1288 = vpop.permute.xlu0 %1287
    %1291 = vset.pattern.permute.xlu0 0
    %1292 = vperm.xlu0 %1291, %v1058
    %v1293 = vpop.permute.xlu0 %1292
    %1296 = vset.pattern.permute.xlu0 0
    %1297 = vperm.xlu0 %1296, %v1059
    %v1298 = vpop.permute.xlu0 %1297
    %1301 = vset.pattern.permute.xlu0 0
    %1302 = vperm.xlu0 %1301, %v1060
    %v1303 = vpop.permute.xlu0 %1302
    %1306 = vset.pattern.permute.xlu0 0
    %1307 = vperm.xlu0 %1306, %v1061
    %v1308 = vpop.permute.xlu0 %1307
    %1311 = vset.pattern.permute.xlu0 0
    %1312 = vperm.xlu0 %1311, %v1062
    %v1313 = vpop.permute.xlu0 %1312
    %1316 = vset.pattern.permute.xlu0 0
    %1317 = vperm.xlu0 %1316, %v1063
    %v1318 = vpop.permute.xlu0 %1317
    %1321 = vset.pattern.permute.xlu0 0
    %1322 = vperm.xlu0 %1321, %v1064
    %v1323 = vpop.permute.xlu0 %1322
    %1326 = vset.pattern.permute.xlu0 0
    %1327 = vperm.xlu0 %1326, %v1065
    %v1328 = vpop.permute.xlu0 %1327
    %1331 = vset.pattern.permute.xlu0 0
    %1332 = vperm.xlu0 %1331, %v1066
    %v1333 = vpop.permute.xlu0 %1332
    %1336 = vset.pattern.permute.xlu0 0
    %1337 = vperm.xlu0 %1336, %v1067
    %v1338 = vpop.permute.xlu0 %1337
    %1341 = vset.pattern.permute.xlu0 0
    %1342 = vperm.xlu0 %1341, %v1068
    %v1343 = vpop.permute.xlu0 %1342
    %1346 = vset.pattern.permute.xlu0 0
    %1347 = vperm.xlu0 %1346, %v1069
    %v1348 = vpop.permute.xlu0 %1347
    %1351 = vset.pattern.permute.xlu0 0
    %1352 = vperm.xlu0 %1351, %v1070
    %v1353 = vpop.permute.xlu0 %1352
    %1356 = vset.pattern.permute.xlu0 0
    %1357 = vperm.xlu0 %1356, %v1071
    %v1358 = vpop.permute.xlu0 %1357
    %1361 = vset.pattern.permute.xlu0 0
    %1362 = vperm.xlu0 %1361, %v1072
    %v1363 = vpop.permute.xlu0 %1362
    %1366 = vset.pattern.permute.xlu0 0
    %1367 = vperm.xlu0 %1366, %v1073
    %v1368 = vpop.permute.xlu0 %1367
    %1371 = vset.pattern.permute.xlu0 0
    %1372 = vperm.xlu0 %1371, %v1074
    %v1373 = vpop.permute.xlu0 %1372
    %1376 = vset.pattern.permute.xlu0 0
    %1377 = vperm.xlu0 %1376, %v1075
    %v1378 = vpop.permute.xlu0 %1377
    %1381 = vset.pattern.permute.xlu0 0
    %1382 = vperm.xlu0 %1381, %v1076
    %v1383 = vpop.permute.xlu0 %1382
    %1386 = vset.pattern.permute.xlu0 0
    %1387 = vperm.xlu0 %1386, %v1077
    %v1388 = vpop.permute.xlu0 %1387
    %1391 = vset.pattern.permute.xlu0 0
    %1392 = vperm.xlu0 %1391, %v1078
    %v1393 = vpop.permute.xlu0 %1392
    %1396 = vset.pattern.permute.xlu0 0
    %1397 = vperm.xlu0 %1396, %v1079
    %v1398 = vpop.permute.xlu0 %1397
    %v1400 = vmul.f32 %v762, %v1083
    %v1401 = vmul.f32 %v765, %v1088
    %v1402 = vmul.f32 %v770, %v1093
    %v1403 = vmul.f32 %v773, %v1098
    %v1404 = vmul.f32 %v778, %v1103
    %v1405 = vmul.f32 %v781, %v1108
    %v1406 = vmul.f32 %v786, %v1113
    %v1407 = vmul.f32 %v789, %v1118
    %v1408 = vmul.f32 %v794, %v1123
    %v1409 = vmul.f32 %v797, %v1128
    %v1410 = vmul.f32 %v802, %v1133
    %v1411 = vmul.f32 %v805, %v1138
    %v1412 = vmul.f32 %v810, %v1143
    %v1413 = vmul.f32 %v813, %v1148
    %v1414 = vmul.f32 %v818, %v1153
    %v1415 = vmul.f32 %v821, %v1158
    %v1416 = vmul.f32 %v826, %v1163
    %v1417 = vmul.f32 %v829, %v1168
    %v1418 = vmul.f32 %v834, %v1173
    %v1419 = vmul.f32 %v837, %v1178
    %v1420 = vmul.f32 %v842, %v1183
    %v1421 = vmul.f32 %v845, %v1188
    %v1422 = vmul.f32 %v850, %v1193
    %v1423 = vmul.f32 %v853, %v1198
    %v1424 = vmul.f32 %v858, %v1203
    %v1425 = vmul.f32 %v861, %v1208
    %v1426 = vmul.f32 %v866, %v1213
    %v1427 = vmul.f32 %v869, %v1218
    %v1428 = vmul.f32 %v874, %v1223
    %v1429 = vmul.f32 %v877, %v1228
    %v1430 = vmul.f32 %v882, %v1233
    %v1431 = vmul.f32 %v885, %v1238
    %v1432 = vmul.f32 %v890, %v1243
    %v1433 = vmul.f32 %v893, %v1248
    %v1434 = vmul.f32 %v898, %v1253
    %v1435 = vmul.f32 %v901, %v1258
    %v1436 = vmul.f32 %v906, %v1263
    %v1437 = vmul.f32 %v909, %v1268
    %v1438 = vmul.f32 %v914, %v1273
    %v1439 = vmul.f32 %v917, %v1278
    %v1440 = vmul.f32 %v922, %v1283
    %v1441 = vmul.f32 %v925, %v1288
    %v1442 = vmul.f32 %v930, %v1293
    %v1443 = vmul.f32 %v933, %v1298
    %v1444 = vmul.f32 %v938, %v1303
    %v1445 = vmul.f32 %v941, %v1308
    %v1446 = vmul.f32 %v946, %v1313
    %v1447 = vmul.f32 %v949, %v1318
    %v1448 = vmul.f32 %v954, %v1323
    %v1449 = vmul.f32 %v957, %v1328
    %v1450 = vmul.f32 %v962, %v1333
    %v1451 = vmul.f32 %v965, %v1338
    %v1452 = vmul.f32 %v970, %v1343
    %v1453 = vmul.f32 %v973, %v1348
    %v1454 = vmul.f32 %v978, %v1353
    %v1455 = vmul.f32 %v981, %v1358
    %v1456 = vmul.f32 %v986, %v1363
    %v1457 = vmul.f32 %v989, %v1368
    %v1458 = vmul.f32 %v994, %v1373
    %v1459 = vmul.f32 %v997, %v1378
    %v1460 = vmul.f32 %v1002, %v1383
    %v1461 = vmul.f32 %v1005, %v1388
    %v1462 = vmul.f32 %v1010, %v1393
    %v1463 = vmul.f32 %v1013, %v1398
    %vm1464 = vcmask 31744
    %v1465 = vsel %vm1464, %v1400, -inf
    %v1466 = vrot.slane %v1465, 4
    %v1467 = vmax.f32 %v1465, %v1466
    %v1468 = vrot.slane %v1467, 2
    %v1469 = vmax.f32 %v1467, %v1468
    %v1470 = vrot.slane %v1469, 1
    %v1471 = vmax.f32 %v1469, %v1470
    %v1472 = vsel %vm1464, %v1401, -inf
    %v1473 = vrot.slane %v1472, 4
    %v1474 = vmax.f32 %v1472, %v1473
    %v1475 = vrot.slane %v1474, 2
    %v1476 = vmax.f32 %v1474, %v1475
    %v1477 = vrot.slane %v1476, 1
    %v1478 = vmax.f32 %v1476, %v1477
    %v1479 = vsel %vm1464, %v1402, -inf
    %v1480 = vrot.slane %v1479, 4
    %v1481 = vmax.f32 %v1479, %v1480
    %v1482 = vrot.slane %v1481, 2
    %v1483 = vmax.f32 %v1481, %v1482
    %v1484 = vrot.slane %v1483, 1
    %v1485 = vmax.f32 %v1483, %v1484
    %v1486 = vsel %vm1464, %v1403, -inf
    %v1487 = vrot.slane %v1486, 4
    %v1488 = vmax.f32 %v1486, %v1487
    %v1489 = vrot.slane %v1488, 2
    %v1490 = vmax.f32 %v1488, %v1489
    %v1491 = vrot.slane %v1490, 1
    %v1492 = vmax.f32 %v1490, %v1491
    %v1493 = vsel %vm1464, %v1404, -inf
    %v1494 = vrot.slane %v1493, 4
    %v1495 = vmax.f32 %v1493, %v1494
    %v1496 = vrot.slane %v1495, 2
    %v1497 = vmax.f32 %v1495, %v1496
    %v1498 = vrot.slane %v1497, 1
    %v1499 = vmax.f32 %v1497, %v1498
    %v1500 = vsel %vm1464, %v1405, -inf
    %v1501 = vrot.slane %v1500, 4
    %v1502 = vmax.f32 %v1500, %v1501
    %v1503 = vrot.slane %v1502, 2
    %v1504 = vmax.f32 %v1502, %v1503
    %v1505 = vrot.slane %v1504, 1
    %v1506 = vmax.f32 %v1504, %v1505
    %v1507 = vsel %vm1464, %v1406, -inf
    %v1508 = vrot.slane %v1507, 4
    %v1509 = vmax.f32 %v1507, %v1508
    %v1510 = vrot.slane %v1509, 2
    %v1511 = vmax.f32 %v1509, %v1510
    %v1512 = vrot.slane %v1511, 1
    %v1513 = vmax.f32 %v1511, %v1512
    %v1514 = vsel %vm1464, %v1407, -inf
    %v1515 = vrot.slane %v1514, 4
    %v1516 = vmax.f32 %v1514, %v1515
    %v1517 = vrot.slane %v1516, 2
    %v1518 = vmax.f32 %v1516, %v1517
    %v1519 = vrot.slane %v1518, 1
    %v1520 = vmax.f32 %v1518, %v1519
    %v1521 = vsel %vm1464, %v1408, -inf
    %v1522 = vrot.slane %v1521, 4
    %v1523 = vmax.f32 %v1521, %v1522
    %v1524 = vrot.slane %v1523, 2
    %v1525 = vmax.f32 %v1523, %v1524
    %v1526 = vrot.slane %v1525, 1
    %v1527 = vmax.f32 %v1525, %v1526
    %v1528 = vsel %vm1464, %v1409, -inf
    %v1529 = vrot.slane %v1528, 4
    %v1530 = vmax.f32 %v1528, %v1529
    %v1531 = vrot.slane %v1530, 2
    %v1532 = vmax.f32 %v1530, %v1531
    %v1533 = vrot.slane %v1532, 1
    %v1534 = vmax.f32 %v1532, %v1533
    %v1535 = vsel %vm1464, %v1410, -inf
    %v1536 = vrot.slane %v1535, 4
    %v1537 = vmax.f32 %v1535, %v1536
    %v1538 = vrot.slane %v1537, 2
    %v1539 = vmax.f32 %v1537, %v1538
    %v1540 = vrot.slane %v1539, 1
    %v1541 = vmax.f32 %v1539, %v1540
    %v1542 = vsel %vm1464, %v1411, -inf
    %v1543 = vrot.slane %v1542, 4
    %v1544 = vmax.f32 %v1542, %v1543
    %v1545 = vrot.slane %v1544, 2
    %v1546 = vmax.f32 %v1544, %v1545
    %v1547 = vrot.slane %v1546, 1
    %v1548 = vmax.f32 %v1546, %v1547
    %v1549 = vsel %vm1464, %v1412, -inf
    %v1550 = vrot.slane %v1549, 4
    %v1551 = vmax.f32 %v1549, %v1550
    %v1552 = vrot.slane %v1551, 2
    %v1553 = vmax.f32 %v1551, %v1552
    %v1554 = vrot.slane %v1553, 1
    %v1555 = vmax.f32 %v1553, %v1554
    %v1556 = vsel %vm1464, %v1413, -inf
    %v1557 = vrot.slane %v1556, 4
    %v1558 = vmax.f32 %v1556, %v1557
    %v1559 = vrot.slane %v1558, 2
    %v1560 = vmax.f32 %v1558, %v1559
    %v1561 = vrot.slane %v1560, 1
    %v1562 = vmax.f32 %v1560, %v1561
    %v1563 = vsel %vm1464, %v1414, -inf
    %v1564 = vrot.slane %v1563, 4
    %v1565 = vmax.f32 %v1563, %v1564
    %v1566 = vrot.slane %v1565, 2
    %v1567 = vmax.f32 %v1565, %v1566
    %v1568 = vrot.slane %v1567, 1
    %v1569 = vmax.f32 %v1567, %v1568
    %v1570 = vsel %vm1464, %v1415, -inf
    %v1571 = vrot.slane %v1570, 4
    %v1572 = vmax.f32 %v1570, %v1571
    %v1573 = vrot.slane %v1572, 2
    %v1574 = vmax.f32 %v1572, %v1573
    %v1575 = vrot.slane %v1574, 1
    %v1576 = vmax.f32 %v1574, %v1575
    %v1577 = vsel %vm1464, %v1416, -inf
    %v1578 = vrot.slane %v1577, 4
    %v1579 = vmax.f32 %v1577, %v1578
    %v1580 = vrot.slane %v1579, 2
    %v1581 = vmax.f32 %v1579, %v1580
    %v1582 = vrot.slane %v1581, 1
    %v1583 = vmax.f32 %v1581, %v1582
    %v1584 = vsel %vm1464, %v1417, -inf
    %v1585 = vrot.slane %v1584, 4
    %v1586 = vmax.f32 %v1584, %v1585
    %v1587 = vrot.slane %v1586, 2
    %v1588 = vmax.f32 %v1586, %v1587
    %v1589 = vrot.slane %v1588, 1
    %v1590 = vmax.f32 %v1588, %v1589
    %v1591 = vsel %vm1464, %v1418, -inf
    %v1592 = vrot.slane %v1591, 4
    %v1593 = vmax.f32 %v1591, %v1592
    %v1594 = vrot.slane %v1593, 2
    %v1595 = vmax.f32 %v1593, %v1594
    %v1596 = vrot.slane %v1595, 1
    %v1597 = vmax.f32 %v1595, %v1596
    %v1598 = vsel %vm1464, %v1419, -inf
    %v1599 = vrot.slane %v1598, 4
    %v1600 = vmax.f32 %v1598, %v1599
    %v1601 = vrot.slane %v1600, 2
    %v1602 = vmax.f32 %v1600, %v1601
    %v1603 = vrot.slane %v1602, 1
    %v1604 = vmax.f32 %v1602, %v1603
    %v1605 = vsel %vm1464, %v1420, -inf
    %v1606 = vrot.slane %v1605, 4
    %v1607 = vmax.f32 %v1605, %v1606
    %v1608 = vrot.slane %v1607, 2
    %v1609 = vmax.f32 %v1607, %v1608
    %v1610 = vrot.slane %v1609, 1
    %v1611 = vmax.f32 %v1609, %v1610
    %v1612 = vsel %vm1464, %v1421, -inf
    %v1613 = vrot.slane %v1612, 4
    %v1614 = vmax.f32 %v1612, %v1613
    %v1615 = vrot.slane %v1614, 2
    %v1616 = vmax.f32 %v1614, %v1615
    %v1617 = vrot.slane %v1616, 1
    %v1618 = vmax.f32 %v1616, %v1617
    %v1619 = vsel %vm1464, %v1422, -inf
    %v1620 = vrot.slane %v1619, 4
    %v1621 = vmax.f32 %v1619, %v1620
    %v1622 = vrot.slane %v1621, 2
    %v1623 = vmax.f32 %v1621, %v1622
    %v1624 = vrot.slane %v1623, 1
    %v1625 = vmax.f32 %v1623, %v1624
    %v1626 = vsel %vm1464, %v1423, -inf
    %v1627 = vrot.slane %v1626, 4
    %v1628 = vmax.f32 %v1626, %v1627
    %v1629 = vrot.slane %v1628, 2
    %v1630 = vmax.f32 %v1628, %v1629
    %v1631 = vrot.slane %v1630, 1
    %v1632 = vmax.f32 %v1630, %v1631
    %v1633 = vsel %vm1464, %v1424, -inf
    %v1634 = vrot.slane %v1633, 4
    %v1635 = vmax.f32 %v1633, %v1634
    %v1636 = vrot.slane %v1635, 2
    %v1637 = vmax.f32 %v1635, %v1636
    %v1638 = vrot.slane %v1637, 1
    %v1639 = vmax.f32 %v1637, %v1638
    %v1640 = vsel %vm1464, %v1425, -inf
    %v1641 = vrot.slane %v1640, 4
    %v1642 = vmax.f32 %v1640, %v1641
    %v1643 = vrot.slane %v1642, 2
    %v1644 = vmax.f32 %v1642, %v1643
    %v1645 = vrot.slane %v1644, 1
    %v1646 = vmax.f32 %v1644, %v1645
    %v1647 = vsel %vm1464, %v1426, -inf
    %v1648 = vrot.slane %v1647, 4
    %v1649 = vmax.f32 %v1647, %v1648
    %v1650 = vrot.slane %v1649, 2
    %v1651 = vmax.f32 %v1649, %v1650
    %v1652 = vrot.slane %v1651, 1
    %v1653 = vmax.f32 %v1651, %v1652
    %v1654 = vsel %vm1464, %v1427, -inf
    %v1655 = vrot.slane %v1654, 4
    %v1656 = vmax.f32 %v1654, %v1655
    %v1657 = vrot.slane %v1656, 2
    %v1658 = vmax.f32 %v1656, %v1657
    %v1659 = vrot.slane %v1658, 1
    %v1660 = vmax.f32 %v1658, %v1659
    %v1661 = vsel %vm1464, %v1428, -inf
    %v1662 = vrot.slane %v1661, 4
    %v1663 = vmax.f32 %v1661, %v1662
    %v1664 = vrot.slane %v1663, 2
    %v1665 = vmax.f32 %v1663, %v1664
    %v1666 = vrot.slane %v1665, 1
    %v1667 = vmax.f32 %v1665, %v1666
    %v1668 = vsel %vm1464, %v1429, -inf
    %v1669 = vrot.slane %v1668, 4
    %v1670 = vmax.f32 %v1668, %v1669
    %v1671 = vrot.slane %v1670, 2
    %v1672 = vmax.f32 %v1670, %v1671
    %v1673 = vrot.slane %v1672, 1
    %v1674 = vmax.f32 %v1672, %v1673
    %v1675 = vsel %vm1464, %v1430, -inf
    %v1676 = vrot.slane %v1675, 4
    %v1677 = vmax.f32 %v1675, %v1676
    %v1678 = vrot.slane %v1677, 2
    %v1679 = vmax.f32 %v1677, %v1678
    %v1680 = vrot.slane %v1679, 1
    %v1681 = vmax.f32 %v1679, %v1680
    %v1682 = vsel %vm1464, %v1431, -inf
    %v1683 = vrot.slane %v1682, 4
    %v1684 = vmax.f32 %v1682, %v1683
    %v1685 = vrot.slane %v1684, 2
    %v1686 = vmax.f32 %v1684, %v1685
    %v1687 = vrot.slane %v1686, 1
    %v1688 = vmax.f32 %v1686, %v1687
    %v1689 = vsel %vm1464, %v1432, -inf
    %v1690 = vrot.slane %v1689, 4
    %v1691 = vmax.f32 %v1689, %v1690
    %v1692 = vrot.slane %v1691, 2
    %v1693 = vmax.f32 %v1691, %v1692
    %v1694 = vrot.slane %v1693, 1
    %v1695 = vmax.f32 %v1693, %v1694
    %v1696 = vsel %vm1464, %v1433, -inf
    %v1697 = vrot.slane %v1696, 4
    %v1698 = vmax.f32 %v1696, %v1697
    %v1699 = vrot.slane %v1698, 2
    %v1700 = vmax.f32 %v1698, %v1699
    %v1701 = vrot.slane %v1700, 1
    %v1702 = vmax.f32 %v1700, %v1701
    %v1703 = vsel %vm1464, %v1434, -inf
    %v1704 = vrot.slane %v1703, 4
    %v1705 = vmax.f32 %v1703, %v1704
    %v1706 = vrot.slane %v1705, 2
    %v1707 = vmax.f32 %v1705, %v1706
    %v1708 = vrot.slane %v1707, 1
    %v1709 = vmax.f32 %v1707, %v1708
    %v1710 = vsel %vm1464, %v1435, -inf
    %v1711 = vrot.slane %v1710, 4
    %v1712 = vmax.f32 %v1710, %v1711
    %v1713 = vrot.slane %v1712, 2
    %v1714 = vmax.f32 %v1712, %v1713
    %v1715 = vrot.slane %v1714, 1
    %v1716 = vmax.f32 %v1714, %v1715
    %v1717 = vsel %vm1464, %v1436, -inf
    %v1718 = vrot.slane %v1717, 4
    %v1719 = vmax.f32 %v1717, %v1718
    %v1720 = vrot.slane %v1719, 2
    %v1721 = vmax.f32 %v1719, %v1720
    %v1722 = vrot.slane %v1721, 1
    %v1723 = vmax.f32 %v1721, %v1722
    %v1724 = vsel %vm1464, %v1437, -inf
    %v1725 = vrot.slane %v1724, 4
    %v1726 = vmax.f32 %v1724, %v1725
    %v1727 = vrot.slane %v1726, 2
    %v1728 = vmax.f32 %v1726, %v1727
    %v1729 = vrot.slane %v1728, 1
    %v1730 = vmax.f32 %v1728, %v1729
    %v1731 = vsel %vm1464, %v1438, -inf
    %v1732 = vrot.slane %v1731, 4
    %v1733 = vmax.f32 %v1731, %v1732
    %v1734 = vrot.slane %v1733, 2
    %v1735 = vmax.f32 %v1733, %v1734
    %v1736 = vrot.slane %v1735, 1
    %v1737 = vmax.f32 %v1735, %v1736
    %v1738 = vsel %vm1464, %v1439, -inf
    %v1739 = vrot.slane %v1738, 4
    %v1740 = vmax.f32 %v1738, %v1739
    %v1741 = vrot.slane %v1740, 2
    %v1742 = vmax.f32 %v1740, %v1741
    %v1743 = vrot.slane %v1742, 1
    %v1744 = vmax.f32 %v1742, %v1743
    %v1745 = vsel %vm1464, %v1440, -inf
    %v1746 = vrot.slane %v1745, 4
    %v1747 = vmax.f32 %v1745, %v1746
    %v1748 = vrot.slane %v1747, 2
    %v1749 = vmax.f32 %v1747, %v1748
    %v1750 = vrot.slane %v1749, 1
    %v1751 = vmax.f32 %v1749, %v1750
    %v1752 = vsel %vm1464, %v1441, -inf
    %v1753 = vrot.slane %v1752, 4
    %v1754 = vmax.f32 %v1752, %v1753
    %v1755 = vrot.slane %v1754, 2
    %v1756 = vmax.f32 %v1754, %v1755
    %v1757 = vrot.slane %v1756, 1
    %v1758 = vmax.f32 %v1756, %v1757
    %v1759 = vsel %vm1464, %v1442, -inf
    %v1760 = vrot.slane %v1759, 4
    %v1761 = vmax.f32 %v1759, %v1760
    %v1762 = vrot.slane %v1761, 2
    %v1763 = vmax.f32 %v1761, %v1762
    %v1764 = vrot.slane %v1763, 1
    %v1765 = vmax.f32 %v1763, %v1764
    %v1766 = vsel %vm1464, %v1443, -inf
    %v1767 = vrot.slane %v1766, 4
    %v1768 = vmax.f32 %v1766, %v1767
    %v1769 = vrot.slane %v1768, 2
    %v1770 = vmax.f32 %v1768, %v1769
    %v1771 = vrot.slane %v1770, 1
    %v1772 = vmax.f32 %v1770, %v1771
    %v1773 = vsel %vm1464, %v1444, -inf
    %v1774 = vrot.slane %v1773, 4
    %v1775 = vmax.f32 %v1773, %v1774
    %v1776 = vrot.slane %v1775, 2
    %v1777 = vmax.f32 %v1775, %v1776
    %v1778 = vrot.slane %v1777, 1
    %v1779 = vmax.f32 %v1777, %v1778
    %v1780 = vsel %vm1464, %v1445, -inf
    %v1781 = vrot.slane %v1780, 4
    %v1782 = vmax.f32 %v1780, %v1781
    %v1783 = vrot.slane %v1782, 2
    %v1784 = vmax.f32 %v1782, %v1783
    %v1785 = vrot.slane %v1784, 1
    %v1786 = vmax.f32 %v1784, %v1785
    %v1787 = vsel %vm1464, %v1446, -inf
    %v1788 = vrot.slane %v1787, 4
    %v1789 = vmax.f32 %v1787, %v1788
    %v1790 = vrot.slane %v1789, 2
    %v1791 = vmax.f32 %v1789, %v1790
    %v1792 = vrot.slane %v1791, 1
    %v1793 = vmax.f32 %v1791, %v1792
    %v1794 = vsel %vm1464, %v1447, -inf
    %v1795 = vrot.slane %v1794, 4
    %v1796 = vmax.f32 %v1794, %v1795
    %v1797 = vrot.slane %v1796, 2
    %v1798 = vmax.f32 %v1796, %v1797
    %v1799 = vrot.slane %v1798, 1
    %v1800 = vmax.f32 %v1798, %v1799
    %v1801 = vsel %vm1464, %v1448, -inf
    %v1802 = vrot.slane %v1801, 4
    %v1803 = vmax.f32 %v1801, %v1802
    %v1804 = vrot.slane %v1803, 2
    %v1805 = vmax.f32 %v1803, %v1804
    %v1806 = vrot.slane %v1805, 1
    %v1807 = vmax.f32 %v1805, %v1806
    %v1808 = vsel %vm1464, %v1449, -inf
    %v1809 = vrot.slane %v1808, 4
    %v1810 = vmax.f32 %v1808, %v1809
    %v1811 = vrot.slane %v1810, 2
    %v1812 = vmax.f32 %v1810, %v1811
    %v1813 = vrot.slane %v1812, 1
    %v1814 = vmax.f32 %v1812, %v1813
    %v1815 = vsel %vm1464, %v1450, -inf
    %v1816 = vrot.slane %v1815, 4
    %v1817 = vmax.f32 %v1815, %v1816
    %v1818 = vrot.slane %v1817, 2
    %v1819 = vmax.f32 %v1817, %v1818
    %v1820 = vrot.slane %v1819, 1
    %v1821 = vmax.f32 %v1819, %v1820
    %v1822 = vsel %vm1464, %v1451, -inf
    %v1823 = vrot.slane %v1822, 4
    %v1824 = vmax.f32 %v1822, %v1823
    %v1825 = vrot.slane %v1824, 2
    %v1826 = vmax.f32 %v1824, %v1825
    %v1827 = vrot.slane %v1826, 1
    %v1828 = vmax.f32 %v1826, %v1827
    %v1829 = vsel %vm1464, %v1452, -inf
    %v1830 = vrot.slane %v1829, 4
    %v1831 = vmax.f32 %v1829, %v1830
    %v1832 = vrot.slane %v1831, 2
    %v1833 = vmax.f32 %v1831, %v1832
    %v1834 = vrot.slane %v1833, 1
    %v1835 = vmax.f32 %v1833, %v1834
    %v1836 = vsel %vm1464, %v1453, -inf
    %v1837 = vrot.slane %v1836, 4
    %v1838 = vmax.f32 %v1836, %v1837
    %v1839 = vrot.slane %v1838, 2
    %v1840 = vmax.f32 %v1838, %v1839
    %v1841 = vrot.slane %v1840, 1
    %v1842 = vmax.f32 %v1840, %v1841
    %v1843 = vsel %vm1464, %v1454, -inf
    %v1844 = vrot.slane %v1843, 4
    %v1845 = vmax.f32 %v1843, %v1844
    %v1846 = vrot.slane %v1845, 2
    %v1847 = vmax.f32 %v1845, %v1846
    %v1848 = vrot.slane %v1847, 1
    %v1849 = vmax.f32 %v1847, %v1848
    %v1850 = vsel %vm1464, %v1455, -inf
    %v1851 = vrot.slane %v1850, 4
    %v1852 = vmax.f32 %v1850, %v1851
    %v1853 = vrot.slane %v1852, 2
    %v1854 = vmax.f32 %v1852, %v1853
    %v1855 = vrot.slane %v1854, 1
    %v1856 = vmax.f32 %v1854, %v1855
    %v1857 = vsel %vm1464, %v1456, -inf
    %v1858 = vrot.slane %v1857, 4
    %v1859 = vmax.f32 %v1857, %v1858
    %v1860 = vrot.slane %v1859, 2
    %v1861 = vmax.f32 %v1859, %v1860
    %v1862 = vrot.slane %v1861, 1
    %v1863 = vmax.f32 %v1861, %v1862
    %v1864 = vsel %vm1464, %v1457, -inf
    %v1865 = vrot.slane %v1864, 4
    %v1866 = vmax.f32 %v1864, %v1865
    %v1867 = vrot.slane %v1866, 2
    %v1868 = vmax.f32 %v1866, %v1867
    %v1869 = vrot.slane %v1868, 1
    %v1870 = vmax.f32 %v1868, %v1869
    %v1871 = vsel %vm1464, %v1458, -inf
    %v1872 = vrot.slane %v1871, 4
    %v1873 = vmax.f32 %v1871, %v1872
    %v1874 = vrot.slane %v1873, 2
    %v1875 = vmax.f32 %v1873, %v1874
    %v1876 = vrot.slane %v1875, 1
    %v1877 = vmax.f32 %v1875, %v1876
    %v1878 = vsel %vm1464, %v1459, -inf
    %v1879 = vrot.slane %v1878, 4
    %v1880 = vmax.f32 %v1878, %v1879
    %v1881 = vrot.slane %v1880, 2
    %v1882 = vmax.f32 %v1880, %v1881
    %v1883 = vrot.slane %v1882, 1
    %v1884 = vmax.f32 %v1882, %v1883
    %v1885 = vsel %vm1464, %v1460, -inf
    %v1886 = vrot.slane %v1885, 4
    %v1887 = vmax.f32 %v1885, %v1886
    %v1888 = vrot.slane %v1887, 2
    %v1889 = vmax.f32 %v1887, %v1888
    %v1890 = vrot.slane %v1889, 1
    %v1891 = vmax.f32 %v1889, %v1890
    %v1892 = vsel %vm1464, %v1461, -inf
    %v1893 = vrot.slane %v1892, 4
    %v1894 = vmax.f32 %v1892, %v1893
    %v1895 = vrot.slane %v1894, 2
    %v1896 = vmax.f32 %v1894, %v1895
    %v1897 = vrot.slane %v1896, 1
    %v1898 = vmax.f32 %v1896, %v1897
    %v1899 = vsel %vm1464, %v1462, -inf
    %v1900 = vrot.slane %v1899, 4
    %v1901 = vmax.f32 %v1899, %v1900
    %v1902 = vrot.slane %v1901, 2
    %v1903 = vmax.f32 %v1901, %v1902
    %v1904 = vrot.slane %v1903, 1
    %v1905 = vmax.f32 %v1903, %v1904
    %v1906 = vsel %vm1464, %v1463, -inf
    %v1907 = vrot.slane %v1906, 4
    %v1908 = vmax.f32 %v1906, %v1907
    %v1909 = vrot.slane %v1908, 2
    %v1910 = vmax.f32 %v1908, %v1909
    %v1911 = vrot.slane %v1910, 1
    %v1912 = vmax.f32 %v1910, %v1911
    %v1913 = vsub.f32 %v1400, %v1471
    %v1914 = vsub.f32 %v1401, %v1478
    %v1915 = vsub.f32 %v1402, %v1485
    %v1916 = vsub.f32 %v1403, %v1492
    %v1917 = vsub.f32 %v1404, %v1499
    %v1918 = vsub.f32 %v1405, %v1506
    %v1919 = vsub.f32 %v1406, %v1513
    %v1920 = vsub.f32 %v1407, %v1520
    %v1921 = vsub.f32 %v1408, %v1527
    %v1922 = vsub.f32 %v1409, %v1534
    %v1923 = vsub.f32 %v1410, %v1541
    %v1924 = vsub.f32 %v1411, %v1548
    %v1925 = vsub.f32 %v1412, %v1555
    %v1926 = vsub.f32 %v1413, %v1562
    %v1927 = vsub.f32 %v1414, %v1569
    %v1928 = vsub.f32 %v1415, %v1576
    %v1929 = vsub.f32 %v1416, %v1583
    %v1930 = vsub.f32 %v1417, %v1590
    %v1931 = vsub.f32 %v1418, %v1597
    %v1932 = vsub.f32 %v1419, %v1604
    %v1933 = vsub.f32 %v1420, %v1611
    %v1934 = vsub.f32 %v1421, %v1618
    %v1935 = vsub.f32 %v1422, %v1625
    %v1936 = vsub.f32 %v1423, %v1632
    %v1937 = vsub.f32 %v1424, %v1639
    %v1938 = vsub.f32 %v1425, %v1646
    %v1939 = vsub.f32 %v1426, %v1653
    %v1940 = vsub.f32 %v1427, %v1660
    %v1941 = vsub.f32 %v1428, %v1667
    %v1942 = vsub.f32 %v1429, %v1674
    %v1943 = vsub.f32 %v1430, %v1681
    %v1944 = vsub.f32 %v1431, %v1688
    %v1945 = vsub.f32 %v1432, %v1695
    %v1946 = vsub.f32 %v1433, %v1702
    %v1947 = vsub.f32 %v1434, %v1709
    %v1948 = vsub.f32 %v1435, %v1716
    %v1949 = vsub.f32 %v1436, %v1723
    %v1950 = vsub.f32 %v1437, %v1730
    %v1951 = vsub.f32 %v1438, %v1737
    %v1952 = vsub.f32 %v1439, %v1744
    %v1953 = vsub.f32 %v1440, %v1751
    %v1954 = vsub.f32 %v1441, %v1758
    %v1955 = vsub.f32 %v1442, %v1765
    %v1956 = vsub.f32 %v1443, %v1772
    %v1957 = vsub.f32 %v1444, %v1779
    %v1958 = vsub.f32 %v1445, %v1786
    %v1959 = vsub.f32 %v1446, %v1793
    %v1960 = vsub.f32 %v1447, %v1800
    %v1961 = vsub.f32 %v1448, %v1807
    %v1962 = vsub.f32 %v1449, %v1814
    %v1963 = vsub.f32 %v1450, %v1821
    %v1964 = vsub.f32 %v1451, %v1828
    %v1965 = vsub.f32 %v1452, %v1835
    %v1966 = vsub.f32 %v1453, %v1842
    %v1967 = vsub.f32 %v1454, %v1849
    %v1968 = vsub.f32 %v1455, %v1856
    %v1969 = vsub.f32 %v1456, %v1863
    %v1970 = vsub.f32 %v1457, %v1870
    %v1971 = vsub.f32 %v1458, %v1877
    %v1972 = vsub.f32 %v1459, %v1884
    %v1973 = vsub.f32 %v1460, %v1891
    %v1974 = vsub.f32 %v1461, %v1898
    %v1975 = vsub.f32 %v1462, %v1905
    %v1976 = vsub.f32 %v1463, %v1912
    %v1977 = vmul.f32 %v1913, 1.442695
    %v1978 = vpow.pop %v1977
    %v1979 = vmul.f32 %v1914, 1.442695
    %v1980 = vpow.pop %v1979
    %v1981 = vmul.f32 %v1915, 1.442695
    %v1982 = vpow.pop %v1981
    %v1983 = vmul.f32 %v1916, 1.442695
    %v1984 = vpow.pop %v1983
    %v1985 = vmul.f32 %v1917, 1.442695
    %v1986 = vpow.pop %v1985
    %v1987 = vmul.f32 %v1918, 1.442695
    %v1988 = vpow.pop %v1987
    %v1989 = vmul.f32 %v1919, 1.442695
    %v1990 = vpow.pop %v1989
    %v1991 = vmul.f32 %v1920, 1.442695
    %v1992 = vpow.pop %v1991
    %v1993 = vmul.f32 %v1921, 1.442695
    %v1994 = vpow.pop %v1993
    %v1995 = vmul.f32 %v1922, 1.442695
    %v1996 = vpow.pop %v1995
    %v1997 = vmul.f32 %v1923, 1.442695
    %v1998 = vpow.pop %v1997
    %v1999 = vmul.f32 %v1924, 1.442695
    %v2000 = vpow.pop %v1999
    %v2001 = vmul.f32 %v1925, 1.442695
    %v2002 = vpow.pop %v2001
    %v2003 = vmul.f32 %v1926, 1.442695
    %v2004 = vpow.pop %v2003
    %v2005 = vmul.f32 %v1927, 1.442695
    %v2006 = vpow.pop %v2005
    %v2007 = vmul.f32 %v1928, 1.442695
    %v2008 = vpow.pop %v2007
    %v2009 = vmul.f32 %v1929, 1.442695
    %v2010 = vpow.pop %v2009
    %v2011 = vmul.f32 %v1930, 1.442695
    %v2012 = vpow.pop %v2011
    %v2013 = vmul.f32 %v1931, 1.442695
    %v2014 = vpow.pop %v2013
    %v2015 = vmul.f32 %v1932, 1.442695
    %v2016 = vpow.pop %v2015
    %v2017 = vmul.f32 %v1933, 1.442695
    %v2018 = vpow.pop %v2017
    %v2019 = vmul.f32 %v1934, 1.442695
    %v2020 = vpow.pop %v2019
    %v2021 = vmul.f32 %v1935, 1.442695
    %v2022 = vpow.pop %v2021
    %v2023 = vmul.f32 %v1936, 1.442695
    %v2024 = vpow.pop %v2023
    %v2025 = vmul.f32 %v1937, 1.442695
    %v2026 = vpow.pop %v2025
    %v2027 = vmul.f32 %v1938, 1.442695
    %v2028 = vpow.pop %v2027
    %v2029 = vmul.f32 %v1939, 1.442695
    %v2030 = vpow.pop %v2029
    %v2031 = vmul.f32 %v1940, 1.442695
    %v2032 = vpow.pop %v2031
    %v2033 = vmul.f32 %v1941, 1.442695
    %v2034 = vpow.pop %v2033
    %v2035 = vmul.f32 %v1942, 1.442695
    %v2036 = vpow.pop %v2035
    %v2037 = vmul.f32 %v1943, 1.442695
    %v2038 = vpow.pop %v2037
    %v2039 = vmul.f32 %v1944, 1.442695
    %v2040 = vpow.pop %v2039
    %v2041 = vmul.f32 %v1945, 1.442695
    %v2042 = vpow.pop %v2041
    %v2043 = vmul.f32 %v1946, 1.442695
    %v2044 = vpow.pop %v2043
    %v2045 = vmul.f32 %v1947, 1.442695
    %v2046 = vpow.pop %v2045
    %v2047 = vmul.f32 %v1948, 1.442695
    %v2048 = vpow.pop %v2047
    %v2049 = vmul.f32 %v1949, 1.442695
    %v2050 = vpow.pop %v2049
    %v2051 = vmul.f32 %v1950, 1.442695
    %v2052 = vpow.pop %v2051
    %v2053 = vmul.f32 %v1951, 1.442695
    %v2054 = vpow.pop %v2053
    %v2055 = vmul.f32 %v1952, 1.442695
    %v2056 = vpow.pop %v2055
    %v2057 = vmul.f32 %v1953, 1.442695
    %v2058 = vpow.pop %v2057
    %v2059 = vmul.f32 %v1954, 1.442695
    %v2060 = vpow.pop %v2059
    %v2061 = vmul.f32 %v1955, 1.442695
    %v2062 = vpow.pop %v2061
    %v2063 = vmul.f32 %v1956, 1.442695
    %v2064 = vpow.pop %v2063
    %v2065 = vmul.f32 %v1957, 1.442695
    %v2066 = vpow.pop %v2065
    %v2067 = vmul.f32 %v1958, 1.442695
    %v2068 = vpow.pop %v2067
    %v2069 = vmul.f32 %v1959, 1.442695
    %v2070 = vpow.pop %v2069
    %v2071 = vmul.f32 %v1960, 1.442695
    %v2072 = vpow.pop %v2071
    %v2073 = vmul.f32 %v1961, 1.442695
    %v2074 = vpow.pop %v2073
    %v2075 = vmul.f32 %v1962, 1.442695
    %v2076 = vpow.pop %v2075
    %v2077 = vmul.f32 %v1963, 1.442695
    %v2078 = vpow.pop %v2077
    %v2079 = vmul.f32 %v1964, 1.442695
    %v2080 = vpow.pop %v2079
    %v2081 = vmul.f32 %v1965, 1.442695
    %v2082 = vpow.pop %v2081
    %v2083 = vmul.f32 %v1966, 1.442695
    %v2084 = vpow.pop %v2083
    %v2085 = vmul.f32 %v1967, 1.442695
    %v2086 = vpow.pop %v2085
    %v2087 = vmul.f32 %v1968, 1.442695
    %v2088 = vpow.pop %v2087
    %v2089 = vmul.f32 %v1969, 1.442695
    %v2090 = vpow.pop %v2089
    %v2091 = vmul.f32 %v1970, 1.442695
    %v2092 = vpow.pop %v2091
    %v2093 = vmul.f32 %v1971, 1.442695
    %v2094 = vpow.pop %v2093
    %v2095 = vmul.f32 %v1972, 1.442695
    %v2096 = vpow.pop %v2095
    %v2097 = vmul.f32 %v1973, 1.442695
    %v2098 = vpow.pop %v2097
    %v2099 = vmul.f32 %v1974, 1.442695
    %v2100 = vpow.pop %v2099
    %v2101 = vmul.f32 %v1975, 1.442695
    %v2102 = vpow.pop %v2101
    %v2103 = vmul.f32 %v1976, 1.442695
    %v2104 = vpow.pop %v2103
    %v2105 = vsel %vm1464, %v1978, 0.0
    %v2106 = vrot.slane %v2105, 4
    %v2107 = vadd.f32 %v2105, %v2106
    %v2108 = vrot.slane %v2107, 2
    %v2109 = vadd.f32 %v2107, %v2108
    %v2110 = vrot.slane %v2109, 1
    %v2111 = vadd.f32 %v2109, %v2110
    %v2112 = vsel %vm1464, %v1980, 0.0
    %v2113 = vrot.slane %v2112, 4
    %v2114 = vadd.f32 %v2112, %v2113
    %v2115 = vrot.slane %v2114, 2
    %v2116 = vadd.f32 %v2114, %v2115
    %v2117 = vrot.slane %v2116, 1
    %v2118 = vadd.f32 %v2116, %v2117
    %v2119 = vsel %vm1464, %v1982, 0.0
    %v2120 = vrot.slane %v2119, 4
    %v2121 = vadd.f32 %v2119, %v2120
    %v2122 = vrot.slane %v2121, 2
    %v2123 = vadd.f32 %v2121, %v2122
    %v2124 = vrot.slane %v2123, 1
    %v2125 = vadd.f32 %v2123, %v2124
    %v2126 = vsel %vm1464, %v1984, 0.0
    %v2127 = vrot.slane %v2126, 4
    %v2128 = vadd.f32 %v2126, %v2127
    %v2129 = vrot.slane %v2128, 2
    %v2130 = vadd.f32 %v2128, %v2129
    %v2131 = vrot.slane %v2130, 1
    %v2132 = vadd.f32 %v2130, %v2131
    %v2133 = vsel %vm1464, %v1986, 0.0
    %v2134 = vrot.slane %v2133, 4
    %v2135 = vadd.f32 %v2133, %v2134
    %v2136 = vrot.slane %v2135, 2
    %v2137 = vadd.f32 %v2135, %v2136
    %v2138 = vrot.slane %v2137, 1
    %v2139 = vadd.f32 %v2137, %v2138
    %v2140 = vsel %vm1464, %v1988, 0.0
    %v2141 = vrot.slane %v2140, 4
    %v2142 = vadd.f32 %v2140, %v2141
    %v2143 = vrot.slane %v2142, 2
    %v2144 = vadd.f32 %v2142, %v2143
    %v2145 = vrot.slane %v2144, 1
    %v2146 = vadd.f32 %v2144, %v2145
    %v2147 = vsel %vm1464, %v1990, 0.0
    %v2148 = vrot.slane %v2147, 4
    %v2149 = vadd.f32 %v2147, %v2148
    %v2150 = vrot.slane %v2149, 2
    %v2151 = vadd.f32 %v2149, %v2150
    %v2152 = vrot.slane %v2151, 1
    %v2153 = vadd.f32 %v2151, %v2152
    %v2154 = vsel %vm1464, %v1992, 0.0
    %v2155 = vrot.slane %v2154, 4
    %v2156 = vadd.f32 %v2154, %v2155
    %v2157 = vrot.slane %v2156, 2
    %v2158 = vadd.f32 %v2156, %v2157
    %v2159 = vrot.slane %v2158, 1
    %v2160 = vadd.f32 %v2158, %v2159
    %v2161 = vsel %vm1464, %v1994, 0.0
    %v2162 = vrot.slane %v2161, 4
    %v2163 = vadd.f32 %v2161, %v2162
    %v2164 = vrot.slane %v2163, 2
    %v2165 = vadd.f32 %v2163, %v2164
    %v2166 = vrot.slane %v2165, 1
    %v2167 = vadd.f32 %v2165, %v2166
    %v2168 = vsel %vm1464, %v1996, 0.0
    %v2169 = vrot.slane %v2168, 4
    %v2170 = vadd.f32 %v2168, %v2169
    %v2171 = vrot.slane %v2170, 2
    %v2172 = vadd.f32 %v2170, %v2171
    %v2173 = vrot.slane %v2172, 1
    %v2174 = vadd.f32 %v2172, %v2173
    %v2175 = vsel %vm1464, %v1998, 0.0
    %v2176 = vrot.slane %v2175, 4
    %v2177 = vadd.f32 %v2175, %v2176
    %v2178 = vrot.slane %v2177, 2
    %v2179 = vadd.f32 %v2177, %v2178
    %v2180 = vrot.slane %v2179, 1
    %v2181 = vadd.f32 %v2179, %v2180
    %v2182 = vsel %vm1464, %v2000, 0.0
    %v2183 = vrot.slane %v2182, 4
    %v2184 = vadd.f32 %v2182, %v2183
    %v2185 = vrot.slane %v2184, 2
    %v2186 = vadd.f32 %v2184, %v2185
    %v2187 = vrot.slane %v2186, 1
    %v2188 = vadd.f32 %v2186, %v2187
    %v2189 = vsel %vm1464, %v2002, 0.0
    %v2190 = vrot.slane %v2189, 4
    %v2191 = vadd.f32 %v2189, %v2190
    %v2192 = vrot.slane %v2191, 2
    %v2193 = vadd.f32 %v2191, %v2192
    %v2194 = vrot.slane %v2193, 1
    %v2195 = vadd.f32 %v2193, %v2194
    %v2196 = vsel %vm1464, %v2004, 0.0
    %v2197 = vrot.slane %v2196, 4
    %v2198 = vadd.f32 %v2196, %v2197
    %v2199 = vrot.slane %v2198, 2
    %v2200 = vadd.f32 %v2198, %v2199
    %v2201 = vrot.slane %v2200, 1
    %v2202 = vadd.f32 %v2200, %v2201
    %v2203 = vsel %vm1464, %v2006, 0.0
    %v2204 = vrot.slane %v2203, 4
    %v2205 = vadd.f32 %v2203, %v2204
    %v2206 = vrot.slane %v2205, 2
    %v2207 = vadd.f32 %v2205, %v2206
    %v2208 = vrot.slane %v2207, 1
    %v2209 = vadd.f32 %v2207, %v2208
    %v2210 = vsel %vm1464, %v2008, 0.0
    %v2211 = vrot.slane %v2210, 4
    %v2212 = vadd.f32 %v2210, %v2211
    %v2213 = vrot.slane %v2212, 2
    %v2214 = vadd.f32 %v2212, %v2213
    %v2215 = vrot.slane %v2214, 1
    %v2216 = vadd.f32 %v2214, %v2215
    %v2217 = vsel %vm1464, %v2010, 0.0
    %v2218 = vrot.slane %v2217, 4
    %v2219 = vadd.f32 %v2217, %v2218
    %v2220 = vrot.slane %v2219, 2
    %v2221 = vadd.f32 %v2219, %v2220
    %v2222 = vrot.slane %v2221, 1
    %v2223 = vadd.f32 %v2221, %v2222
    %v2224 = vsel %vm1464, %v2012, 0.0
    %v2225 = vrot.slane %v2224, 4
    %v2226 = vadd.f32 %v2224, %v2225
    %v2227 = vrot.slane %v2226, 2
    %v2228 = vadd.f32 %v2226, %v2227
    %v2229 = vrot.slane %v2228, 1
    %v2230 = vadd.f32 %v2228, %v2229
    %v2231 = vsel %vm1464, %v2014, 0.0
    %v2232 = vrot.slane %v2231, 4
    %v2233 = vadd.f32 %v2231, %v2232
    %v2234 = vrot.slane %v2233, 2
    %v2235 = vadd.f32 %v2233, %v2234
    %v2236 = vrot.slane %v2235, 1
    %v2237 = vadd.f32 %v2235, %v2236
    %v2238 = vsel %vm1464, %v2016, 0.0
    %v2239 = vrot.slane %v2238, 4
    %v2240 = vadd.f32 %v2238, %v2239
    %v2241 = vrot.slane %v2240, 2
    %v2242 = vadd.f32 %v2240, %v2241
    %v2243 = vrot.slane %v2242, 1
    %v2244 = vadd.f32 %v2242, %v2243
    %v2245 = vsel %vm1464, %v2018, 0.0
    %v2246 = vrot.slane %v2245, 4
    %v2247 = vadd.f32 %v2245, %v2246
    %v2248 = vrot.slane %v2247, 2
    %v2249 = vadd.f32 %v2247, %v2248
    %v2250 = vrot.slane %v2249, 1
    %v2251 = vadd.f32 %v2249, %v2250
    %v2252 = vsel %vm1464, %v2020, 0.0
    %v2253 = vrot.slane %v2252, 4
    %v2254 = vadd.f32 %v2252, %v2253
    %v2255 = vrot.slane %v2254, 2
    %v2256 = vadd.f32 %v2254, %v2255
    %v2257 = vrot.slane %v2256, 1
    %v2258 = vadd.f32 %v2256, %v2257
    %v2259 = vsel %vm1464, %v2022, 0.0
    %v2260 = vrot.slane %v2259, 4
    %v2261 = vadd.f32 %v2259, %v2260
    %v2262 = vrot.slane %v2261, 2
    %v2263 = vadd.f32 %v2261, %v2262
    %v2264 = vrot.slane %v2263, 1
    %v2265 = vadd.f32 %v2263, %v2264
    %v2266 = vsel %vm1464, %v2024, 0.0
    %v2267 = vrot.slane %v2266, 4
    %v2268 = vadd.f32 %v2266, %v2267
    %v2269 = vrot.slane %v2268, 2
    %v2270 = vadd.f32 %v2268, %v2269
    %v2271 = vrot.slane %v2270, 1
    %v2272 = vadd.f32 %v2270, %v2271
    %v2273 = vsel %vm1464, %v2026, 0.0
    %v2274 = vrot.slane %v2273, 4
    %v2275 = vadd.f32 %v2273, %v2274
    %v2276 = vrot.slane %v2275, 2
    %v2277 = vadd.f32 %v2275, %v2276
    %v2278 = vrot.slane %v2277, 1
    %v2279 = vadd.f32 %v2277, %v2278
    %v2280 = vsel %vm1464, %v2028, 0.0
    %v2281 = vrot.slane %v2280, 4
    %v2282 = vadd.f32 %v2280, %v2281
    %v2283 = vrot.slane %v2282, 2
    %v2284 = vadd.f32 %v2282, %v2283
    %v2285 = vrot.slane %v2284, 1
    %v2286 = vadd.f32 %v2284, %v2285
    %v2287 = vsel %vm1464, %v2030, 0.0
    %v2288 = vrot.slane %v2287, 4
    %v2289 = vadd.f32 %v2287, %v2288
    %v2290 = vrot.slane %v2289, 2
    %v2291 = vadd.f32 %v2289, %v2290
    %v2292 = vrot.slane %v2291, 1
    %v2293 = vadd.f32 %v2291, %v2292
    %v2294 = vsel %vm1464, %v2032, 0.0
    %v2295 = vrot.slane %v2294, 4
    %v2296 = vadd.f32 %v2294, %v2295
    %v2297 = vrot.slane %v2296, 2
    %v2298 = vadd.f32 %v2296, %v2297
    %v2299 = vrot.slane %v2298, 1
    %v2300 = vadd.f32 %v2298, %v2299
    %v2301 = vsel %vm1464, %v2034, 0.0
    %v2302 = vrot.slane %v2301, 4
    %v2303 = vadd.f32 %v2301, %v2302
    %v2304 = vrot.slane %v2303, 2
    %v2305 = vadd.f32 %v2303, %v2304
    %v2306 = vrot.slane %v2305, 1
    %v2307 = vadd.f32 %v2305, %v2306
    %v2308 = vsel %vm1464, %v2036, 0.0
    %v2309 = vrot.slane %v2308, 4
    %v2310 = vadd.f32 %v2308, %v2309
    %v2311 = vrot.slane %v2310, 2
    %v2312 = vadd.f32 %v2310, %v2311
    %v2313 = vrot.slane %v2312, 1
    %v2314 = vadd.f32 %v2312, %v2313
    %v2315 = vsel %vm1464, %v2038, 0.0
    %v2316 = vrot.slane %v2315, 4
    %v2317 = vadd.f32 %v2315, %v2316
    %v2318 = vrot.slane %v2317, 2
    %v2319 = vadd.f32 %v2317, %v2318
    %v2320 = vrot.slane %v2319, 1
    %v2321 = vadd.f32 %v2319, %v2320
    %v2322 = vsel %vm1464, %v2040, 0.0
    %v2323 = vrot.slane %v2322, 4
    %v2324 = vadd.f32 %v2322, %v2323
    %v2325 = vrot.slane %v2324, 2
    %v2326 = vadd.f32 %v2324, %v2325
    %v2327 = vrot.slane %v2326, 1
    %v2328 = vadd.f32 %v2326, %v2327
    %v2329 = vsel %vm1464, %v2042, 0.0
    %v2330 = vrot.slane %v2329, 4
    %v2331 = vadd.f32 %v2329, %v2330
    %v2332 = vrot.slane %v2331, 2
    %v2333 = vadd.f32 %v2331, %v2332
    %v2334 = vrot.slane %v2333, 1
    %v2335 = vadd.f32 %v2333, %v2334
    %v2336 = vsel %vm1464, %v2044, 0.0
    %v2337 = vrot.slane %v2336, 4
    %v2338 = vadd.f32 %v2336, %v2337
    %v2339 = vrot.slane %v2338, 2
    %v2340 = vadd.f32 %v2338, %v2339
    %v2341 = vrot.slane %v2340, 1
    %v2342 = vadd.f32 %v2340, %v2341
    %v2343 = vsel %vm1464, %v2046, 0.0
    %v2344 = vrot.slane %v2343, 4
    %v2345 = vadd.f32 %v2343, %v2344
    %v2346 = vrot.slane %v2345, 2
    %v2347 = vadd.f32 %v2345, %v2346
    %v2348 = vrot.slane %v2347, 1
    %v2349 = vadd.f32 %v2347, %v2348
    %v2350 = vsel %vm1464, %v2048, 0.0
    %v2351 = vrot.slane %v2350, 4
    %v2352 = vadd.f32 %v2350, %v2351
    %v2353 = vrot.slane %v2352, 2
    %v2354 = vadd.f32 %v2352, %v2353
    %v2355 = vrot.slane %v2354, 1
    %v2356 = vadd.f32 %v2354, %v2355
    %v2357 = vsel %vm1464, %v2050, 0.0
    %v2358 = vrot.slane %v2357, 4
    %v2359 = vadd.f32 %v2357, %v2358
    %v2360 = vrot.slane %v2359, 2
    %v2361 = vadd.f32 %v2359, %v2360
    %v2362 = vrot.slane %v2361, 1
    %v2363 = vadd.f32 %v2361, %v2362
    %v2364 = vsel %vm1464, %v2052, 0.0
    %v2365 = vrot.slane %v2364, 4
    %v2366 = vadd.f32 %v2364, %v2365
    %v2367 = vrot.slane %v2366, 2
    %v2368 = vadd.f32 %v2366, %v2367
    %v2369 = vrot.slane %v2368, 1
    %v2370 = vadd.f32 %v2368, %v2369
    %v2371 = vsel %vm1464, %v2054, 0.0
    %v2372 = vrot.slane %v2371, 4
    %v2373 = vadd.f32 %v2371, %v2372
    %v2374 = vrot.slane %v2373, 2
    %v2375 = vadd.f32 %v2373, %v2374
    %v2376 = vrot.slane %v2375, 1
    %v2377 = vadd.f32 %v2375, %v2376
    %v2378 = vsel %vm1464, %v2056, 0.0
    %v2379 = vrot.slane %v2378, 4
    %v2380 = vadd.f32 %v2378, %v2379
    %v2381 = vrot.slane %v2380, 2
    %v2382 = vadd.f32 %v2380, %v2381
    %v2383 = vrot.slane %v2382, 1
    %v2384 = vadd.f32 %v2382, %v2383
    %v2385 = vsel %vm1464, %v2058, 0.0
    %v2386 = vrot.slane %v2385, 4
    %v2387 = vadd.f32 %v2385, %v2386
    %v2388 = vrot.slane %v2387, 2
    %v2389 = vadd.f32 %v2387, %v2388
    %v2390 = vrot.slane %v2389, 1
    %v2391 = vadd.f32 %v2389, %v2390
    %v2392 = vsel %vm1464, %v2060, 0.0
    %v2393 = vrot.slane %v2392, 4
    %v2394 = vadd.f32 %v2392, %v2393
    %v2395 = vrot.slane %v2394, 2
    %v2396 = vadd.f32 %v2394, %v2395
    %v2397 = vrot.slane %v2396, 1
    %v2398 = vadd.f32 %v2396, %v2397
    %v2399 = vsel %vm1464, %v2062, 0.0
    %v2400 = vrot.slane %v2399, 4
    %v2401 = vadd.f32 %v2399, %v2400
    %v2402 = vrot.slane %v2401, 2
    %v2403 = vadd.f32 %v2401, %v2402
    %v2404 = vrot.slane %v2403, 1
    %v2405 = vadd.f32 %v2403, %v2404
    %v2406 = vsel %vm1464, %v2064, 0.0
    %v2407 = vrot.slane %v2406, 4
    %v2408 = vadd.f32 %v2406, %v2407
    %v2409 = vrot.slane %v2408, 2
    %v2410 = vadd.f32 %v2408, %v2409
    %v2411 = vrot.slane %v2410, 1
    %v2412 = vadd.f32 %v2410, %v2411
    %v2413 = vsel %vm1464, %v2066, 0.0
    %v2414 = vrot.slane %v2413, 4
    %v2415 = vadd.f32 %v2413, %v2414
    %v2416 = vrot.slane %v2415, 2
    %v2417 = vadd.f32 %v2415, %v2416
    %v2418 = vrot.slane %v2417, 1
    %v2419 = vadd.f32 %v2417, %v2418
    %v2420 = vsel %vm1464, %v2068, 0.0
    %v2421 = vrot.slane %v2420, 4
    %v2422 = vadd.f32 %v2420, %v2421
    %v2423 = vrot.slane %v2422, 2
    %v2424 = vadd.f32 %v2422, %v2423
    %v2425 = vrot.slane %v2424, 1
    %v2426 = vadd.f32 %v2424, %v2425
    %v2427 = vsel %vm1464, %v2070, 0.0
    %v2428 = vrot.slane %v2427, 4
    %v2429 = vadd.f32 %v2427, %v2428
    %v2430 = vrot.slane %v2429, 2
    %v2431 = vadd.f32 %v2429, %v2430
    %v2432 = vrot.slane %v2431, 1
    %v2433 = vadd.f32 %v2431, %v2432
    %v2434 = vsel %vm1464, %v2072, 0.0
    %v2435 = vrot.slane %v2434, 4
    %v2436 = vadd.f32 %v2434, %v2435
    %v2437 = vrot.slane %v2436, 2
    %v2438 = vadd.f32 %v2436, %v2437
    %v2439 = vrot.slane %v2438, 1
    %v2440 = vadd.f32 %v2438, %v2439
    %v2441 = vsel %vm1464, %v2074, 0.0
    %v2442 = vrot.slane %v2441, 4
    %v2443 = vadd.f32 %v2441, %v2442
    %v2444 = vrot.slane %v2443, 2
    %v2445 = vadd.f32 %v2443, %v2444
    %v2446 = vrot.slane %v2445, 1
    %v2447 = vadd.f32 %v2445, %v2446
    %v2448 = vsel %vm1464, %v2076, 0.0
    %v2449 = vrot.slane %v2448, 4
    %v2450 = vadd.f32 %v2448, %v2449
    %v2451 = vrot.slane %v2450, 2
    %v2452 = vadd.f32 %v2450, %v2451
    %v2453 = vrot.slane %v2452, 1
    %v2454 = vadd.f32 %v2452, %v2453
    %v2455 = vsel %vm1464, %v2078, 0.0
    %v2456 = vrot.slane %v2455, 4
    %v2457 = vadd.f32 %v2455, %v2456
    %v2458 = vrot.slane %v2457, 2
    %v2459 = vadd.f32 %v2457, %v2458
    %v2460 = vrot.slane %v2459, 1
    %v2461 = vadd.f32 %v2459, %v2460
    %v2462 = vsel %vm1464, %v2080, 0.0
    %v2463 = vrot.slane %v2462, 4
    %v2464 = vadd.f32 %v2462, %v2463
    %v2465 = vrot.slane %v2464, 2
    %v2466 = vadd.f32 %v2464, %v2465
    %v2467 = vrot.slane %v2466, 1
    %v2468 = vadd.f32 %v2466, %v2467
    %v2469 = vsel %vm1464, %v2082, 0.0
    %v2470 = vrot.slane %v2469, 4
    %v2471 = vadd.f32 %v2469, %v2470
    %v2472 = vrot.slane %v2471, 2
    %v2473 = vadd.f32 %v2471, %v2472
    %v2474 = vrot.slane %v2473, 1
    %v2475 = vadd.f32 %v2473, %v2474
    %v2476 = vsel %vm1464, %v2084, 0.0
    %v2477 = vrot.slane %v2476, 4
    %v2478 = vadd.f32 %v2476, %v2477
    %v2479 = vrot.slane %v2478, 2
    %v2480 = vadd.f32 %v2478, %v2479
    %v2481 = vrot.slane %v2480, 1
    %v2482 = vadd.f32 %v2480, %v2481
    %v2483 = vsel %vm1464, %v2086, 0.0
    %v2484 = vrot.slane %v2483, 4
    %v2485 = vadd.f32 %v2483, %v2484
    %v2486 = vrot.slane %v2485, 2
    %v2487 = vadd.f32 %v2485, %v2486
    %v2488 = vrot.slane %v2487, 1
    %v2489 = vadd.f32 %v2487, %v2488
    %v2490 = vsel %vm1464, %v2088, 0.0
    %v2491 = vrot.slane %v2490, 4
    %v2492 = vadd.f32 %v2490, %v2491
    %v2493 = vrot.slane %v2492, 2
    %v2494 = vadd.f32 %v2492, %v2493
    %v2495 = vrot.slane %v2494, 1
    %v2496 = vadd.f32 %v2494, %v2495
    %v2497 = vsel %vm1464, %v2090, 0.0
    %v2498 = vrot.slane %v2497, 4
    %v2499 = vadd.f32 %v2497, %v2498
    %v2500 = vrot.slane %v2499, 2
    %v2501 = vadd.f32 %v2499, %v2500
    %v2502 = vrot.slane %v2501, 1
    %v2503 = vadd.f32 %v2501, %v2502
    %v2504 = vsel %vm1464, %v2092, 0.0
    %v2505 = vrot.slane %v2504, 4
    %v2506 = vadd.f32 %v2504, %v2505
    %v2507 = vrot.slane %v2506, 2
    %v2508 = vadd.f32 %v2506, %v2507
    %v2509 = vrot.slane %v2508, 1
    %v2510 = vadd.f32 %v2508, %v2509
    %v2511 = vsel %vm1464, %v2094, 0.0
    %v2512 = vrot.slane %v2511, 4
    %v2513 = vadd.f32 %v2511, %v2512
    %v2514 = vrot.slane %v2513, 2
    %v2515 = vadd.f32 %v2513, %v2514
    %v2516 = vrot.slane %v2515, 1
    %v2517 = vadd.f32 %v2515, %v2516
    %v2518 = vsel %vm1464, %v2096, 0.0
    %v2519 = vrot.slane %v2518, 4
    %v2520 = vadd.f32 %v2518, %v2519
    %v2521 = vrot.slane %v2520, 2
    %v2522 = vadd.f32 %v2520, %v2521
    %v2523 = vrot.slane %v2522, 1
    %v2524 = vadd.f32 %v2522, %v2523
    %v2525 = vsel %vm1464, %v2098, 0.0
    %v2526 = vrot.slane %v2525, 4
    %v2527 = vadd.f32 %v2525, %v2526
    %v2528 = vrot.slane %v2527, 2
    %v2529 = vadd.f32 %v2527, %v2528
    %v2530 = vrot.slane %v2529, 1
    %v2531 = vadd.f32 %v2529, %v2530
    %v2532 = vsel %vm1464, %v2100, 0.0
    %v2533 = vrot.slane %v2532, 4
    %v2534 = vadd.f32 %v2532, %v2533
    %v2535 = vrot.slane %v2534, 2
    %v2536 = vadd.f32 %v2534, %v2535
    %v2537 = vrot.slane %v2536, 1
    %v2538 = vadd.f32 %v2536, %v2537
    %v2539 = vsel %vm1464, %v2102, 0.0
    %v2540 = vrot.slane %v2539, 4
    %v2541 = vadd.f32 %v2539, %v2540
    %v2542 = vrot.slane %v2541, 2
    %v2543 = vadd.f32 %v2541, %v2542
    %v2544 = vrot.slane %v2543, 1
    %v2545 = vadd.f32 %v2543, %v2544
    %v2546 = vsel %vm1464, %v2104, 0.0
    %v2547 = vrot.slane %v2546, 4
    %v2548 = vadd.f32 %v2546, %v2547
    %v2549 = vrot.slane %v2548, 2
    %v2550 = vadd.f32 %v2548, %v2549
    %v2551 = vrot.slane %v2550, 1
    %v2552 = vadd.f32 %v2550, %v2551
    %v2553 = vmul.f32 %v1978, %v1083
    %v2554 = vmul.f32 %v1980, %v1088
    %v2555 = vmul.f32 %v1982, %v1093
    %v2556 = vmul.f32 %v1984, %v1098
    %v2557 = vmul.f32 %v1986, %v1103
    %v2558 = vmul.f32 %v1988, %v1108
    %v2559 = vmul.f32 %v1990, %v1113
    %v2560 = vmul.f32 %v1992, %v1118
    %v2561 = vmul.f32 %v1994, %v1123
    %v2562 = vmul.f32 %v1996, %v1128
    %v2563 = vmul.f32 %v1998, %v1133
    %v2564 = vmul.f32 %v2000, %v1138
    %v2565 = vmul.f32 %v2002, %v1143
    %v2566 = vmul.f32 %v2004, %v1148
    %v2567 = vmul.f32 %v2006, %v1153
    %v2568 = vmul.f32 %v2008, %v1158
    %v2569 = vmul.f32 %v2010, %v1163
    %v2570 = vmul.f32 %v2012, %v1168
    %v2571 = vmul.f32 %v2014, %v1173
    %v2572 = vmul.f32 %v2016, %v1178
    %v2573 = vmul.f32 %v2018, %v1183
    %v2574 = vmul.f32 %v2020, %v1188
    %v2575 = vmul.f32 %v2022, %v1193
    %v2576 = vmul.f32 %v2024, %v1198
    %v2577 = vmul.f32 %v2026, %v1203
    %v2578 = vmul.f32 %v2028, %v1208
    %v2579 = vmul.f32 %v2030, %v1213
    %v2580 = vmul.f32 %v2032, %v1218
    %v2581 = vmul.f32 %v2034, %v1223
    %v2582 = vmul.f32 %v2036, %v1228
    %v2583 = vmul.f32 %v2038, %v1233
    %v2584 = vmul.f32 %v2040, %v1238
    %v2585 = vmul.f32 %v2042, %v1243
    %v2586 = vmul.f32 %v2044, %v1248
    %v2587 = vmul.f32 %v2046, %v1253
    %v2588 = vmul.f32 %v2048, %v1258
    %v2589 = vmul.f32 %v2050, %v1263
    %v2590 = vmul.f32 %v2052, %v1268
    %v2591 = vmul.f32 %v2054, %v1273
    %v2592 = vmul.f32 %v2056, %v1278
    %v2593 = vmul.f32 %v2058, %v1283
    %v2594 = vmul.f32 %v2060, %v1288
    %v2595 = vmul.f32 %v2062, %v1293
    %v2596 = vmul.f32 %v2064, %v1298
    %v2597 = vmul.f32 %v2066, %v1303
    %v2598 = vmul.f32 %v2068, %v1308
    %v2599 = vmul.f32 %v2070, %v1313
    %v2600 = vmul.f32 %v2072, %v1318
    %v2601 = vmul.f32 %v2074, %v1323
    %v2602 = vmul.f32 %v2076, %v1328
    %v2603 = vmul.f32 %v2078, %v1333
    %v2604 = vmul.f32 %v2080, %v1338
    %v2605 = vmul.f32 %v2082, %v1343
    %v2606 = vmul.f32 %v2084, %v1348
    %v2607 = vmul.f32 %v2086, %v1353
    %v2608 = vmul.f32 %v2088, %v1358
    %v2609 = vmul.f32 %v2090, %v1363
    %v2610 = vmul.f32 %v2092, %v1368
    %v2611 = vmul.f32 %v2094, %v1373
    %v2612 = vmul.f32 %v2096, %v1378
    %v2613 = vmul.f32 %v2098, %v1383
    %v2614 = vmul.f32 %v2100, %v1388
    %v2615 = vmul.f32 %v2102, %v1393
    %v2616 = vmul.f32 %v2104, %v1398
    %v2617 = vsel %vm1464, %v2553, 0.0
    %v2618 = vrot.slane %v2617, 4
    %v2619 = vadd.f32 %v2617, %v2618
    %v2620 = vrot.slane %v2619, 2
    %v2621 = vadd.f32 %v2619, %v2620
    %v2622 = vrot.slane %v2621, 1
    %v2623 = vadd.f32 %v2621, %v2622
    %v2624 = vsel %vm1464, %v2554, 0.0
    %v2625 = vrot.slane %v2624, 4
    %v2626 = vadd.f32 %v2624, %v2625
    %v2627 = vrot.slane %v2626, 2
    %v2628 = vadd.f32 %v2626, %v2627
    %v2629 = vrot.slane %v2628, 1
    %v2630 = vadd.f32 %v2628, %v2629
    %v2631 = vsel %vm1464, %v2555, 0.0
    %v2632 = vrot.slane %v2631, 4
    %v2633 = vadd.f32 %v2631, %v2632
    %v2634 = vrot.slane %v2633, 2
    %v2635 = vadd.f32 %v2633, %v2634
    %v2636 = vrot.slane %v2635, 1
    %v2637 = vadd.f32 %v2635, %v2636
    %v2638 = vsel %vm1464, %v2556, 0.0
    %v2639 = vrot.slane %v2638, 4
    %v2640 = vadd.f32 %v2638, %v2639
    %v2641 = vrot.slane %v2640, 2
    %v2642 = vadd.f32 %v2640, %v2641
    %v2643 = vrot.slane %v2642, 1
    %v2644 = vadd.f32 %v2642, %v2643
    %v2645 = vsel %vm1464, %v2557, 0.0
    %v2646 = vrot.slane %v2645, 4
    %v2647 = vadd.f32 %v2645, %v2646
    %v2648 = vrot.slane %v2647, 2
    %v2649 = vadd.f32 %v2647, %v2648
    %v2650 = vrot.slane %v2649, 1
    %v2651 = vadd.f32 %v2649, %v2650
    %v2652 = vsel %vm1464, %v2558, 0.0
    %v2653 = vrot.slane %v2652, 4
    %v2654 = vadd.f32 %v2652, %v2653
    %v2655 = vrot.slane %v2654, 2
    %v2656 = vadd.f32 %v2654, %v2655
    %v2657 = vrot.slane %v2656, 1
    %v2658 = vadd.f32 %v2656, %v2657
    %v2659 = vsel %vm1464, %v2559, 0.0
    %v2660 = vrot.slane %v2659, 4
    %v2661 = vadd.f32 %v2659, %v2660
    %v2662 = vrot.slane %v2661, 2
    %v2663 = vadd.f32 %v2661, %v2662
    %v2664 = vrot.slane %v2663, 1
    %v2665 = vadd.f32 %v2663, %v2664
    %v2666 = vsel %vm1464, %v2560, 0.0
    %v2667 = vrot.slane %v2666, 4
    %v2668 = vadd.f32 %v2666, %v2667
    %v2669 = vrot.slane %v2668, 2
    %v2670 = vadd.f32 %v2668, %v2669
    %v2671 = vrot.slane %v2670, 1
    %v2672 = vadd.f32 %v2670, %v2671
    %v2673 = vsel %vm1464, %v2561, 0.0
    %v2674 = vrot.slane %v2673, 4
    %v2675 = vadd.f32 %v2673, %v2674
    %v2676 = vrot.slane %v2675, 2
    %v2677 = vadd.f32 %v2675, %v2676
    %v2678 = vrot.slane %v2677, 1
    %v2679 = vadd.f32 %v2677, %v2678
    %v2680 = vsel %vm1464, %v2562, 0.0
    %v2681 = vrot.slane %v2680, 4
    %v2682 = vadd.f32 %v2680, %v2681
    %v2683 = vrot.slane %v2682, 2
    %v2684 = vadd.f32 %v2682, %v2683
    %v2685 = vrot.slane %v2684, 1
    %v2686 = vadd.f32 %v2684, %v2685
    %v2687 = vsel %vm1464, %v2563, 0.0
    %v2688 = vrot.slane %v2687, 4
    %v2689 = vadd.f32 %v2687, %v2688
    %v2690 = vrot.slane %v2689, 2
    %v2691 = vadd.f32 %v2689, %v2690
    %v2692 = vrot.slane %v2691, 1
    %v2693 = vadd.f32 %v2691, %v2692
    %v2694 = vsel %vm1464, %v2564, 0.0
    %v2695 = vrot.slane %v2694, 4
    %v2696 = vadd.f32 %v2694, %v2695
    %v2697 = vrot.slane %v2696, 2
    %v2698 = vadd.f32 %v2696, %v2697
    %v2699 = vrot.slane %v2698, 1
    %v2700 = vadd.f32 %v2698, %v2699
    %v2701 = vsel %vm1464, %v2565, 0.0
    %v2702 = vrot.slane %v2701, 4
    %v2703 = vadd.f32 %v2701, %v2702
    %v2704 = vrot.slane %v2703, 2
    %v2705 = vadd.f32 %v2703, %v2704
    %v2706 = vrot.slane %v2705, 1
    %v2707 = vadd.f32 %v2705, %v2706
    %v2708 = vsel %vm1464, %v2566, 0.0
    %v2709 = vrot.slane %v2708, 4
    %v2710 = vadd.f32 %v2708, %v2709
    %v2711 = vrot.slane %v2710, 2
    %v2712 = vadd.f32 %v2710, %v2711
    %v2713 = vrot.slane %v2712, 1
    %v2714 = vadd.f32 %v2712, %v2713
    %v2715 = vsel %vm1464, %v2567, 0.0
    %v2716 = vrot.slane %v2715, 4
    %v2717 = vadd.f32 %v2715, %v2716
    %v2718 = vrot.slane %v2717, 2
    %v2719 = vadd.f32 %v2717, %v2718
    %v2720 = vrot.slane %v2719, 1
    %v2721 = vadd.f32 %v2719, %v2720
    %v2722 = vsel %vm1464, %v2568, 0.0
    %v2723 = vrot.slane %v2722, 4
    %v2724 = vadd.f32 %v2722, %v2723
    %v2725 = vrot.slane %v2724, 2
    %v2726 = vadd.f32 %v2724, %v2725
    %v2727 = vrot.slane %v2726, 1
    %v2728 = vadd.f32 %v2726, %v2727
    %v2729 = vsel %vm1464, %v2569, 0.0
    %v2730 = vrot.slane %v2729, 4
    %v2731 = vadd.f32 %v2729, %v2730
    %v2732 = vrot.slane %v2731, 2
    %v2733 = vadd.f32 %v2731, %v2732
    %v2734 = vrot.slane %v2733, 1
    %v2735 = vadd.f32 %v2733, %v2734
    %v2736 = vsel %vm1464, %v2570, 0.0
    %v2737 = vrot.slane %v2736, 4
    %v2738 = vadd.f32 %v2736, %v2737
    %v2739 = vrot.slane %v2738, 2
    %v2740 = vadd.f32 %v2738, %v2739
    %v2741 = vrot.slane %v2740, 1
    %v2742 = vadd.f32 %v2740, %v2741
    %v2743 = vsel %vm1464, %v2571, 0.0
    %v2744 = vrot.slane %v2743, 4
    %v2745 = vadd.f32 %v2743, %v2744
    %v2746 = vrot.slane %v2745, 2
    %v2747 = vadd.f32 %v2745, %v2746
    %v2748 = vrot.slane %v2747, 1
    %v2749 = vadd.f32 %v2747, %v2748
    %v2750 = vsel %vm1464, %v2572, 0.0
    %v2751 = vrot.slane %v2750, 4
    %v2752 = vadd.f32 %v2750, %v2751
    %v2753 = vrot.slane %v2752, 2
    %v2754 = vadd.f32 %v2752, %v2753
    %v2755 = vrot.slane %v2754, 1
    %v2756 = vadd.f32 %v2754, %v2755
    %v2757 = vsel %vm1464, %v2573, 0.0
    %v2758 = vrot.slane %v2757, 4
    %v2759 = vadd.f32 %v2757, %v2758
    %v2760 = vrot.slane %v2759, 2
    %v2761 = vadd.f32 %v2759, %v2760
    %v2762 = vrot.slane %v2761, 1
    %v2763 = vadd.f32 %v2761, %v2762
    %v2764 = vsel %vm1464, %v2574, 0.0
    %v2765 = vrot.slane %v2764, 4
    %v2766 = vadd.f32 %v2764, %v2765
    %v2767 = vrot.slane %v2766, 2
    %v2768 = vadd.f32 %v2766, %v2767
    %v2769 = vrot.slane %v2768, 1
    %v2770 = vadd.f32 %v2768, %v2769
    %v2771 = vsel %vm1464, %v2575, 0.0
    %v2772 = vrot.slane %v2771, 4
    %v2773 = vadd.f32 %v2771, %v2772
    %v2774 = vrot.slane %v2773, 2
    %v2775 = vadd.f32 %v2773, %v2774
    %v2776 = vrot.slane %v2775, 1
    %v2777 = vadd.f32 %v2775, %v2776
    %v2778 = vsel %vm1464, %v2576, 0.0
    %v2779 = vrot.slane %v2778, 4
    %v2780 = vadd.f32 %v2778, %v2779
    %v2781 = vrot.slane %v2780, 2
    %v2782 = vadd.f32 %v2780, %v2781
    %v2783 = vrot.slane %v2782, 1
    %v2784 = vadd.f32 %v2782, %v2783
    %v2785 = vsel %vm1464, %v2577, 0.0
    %v2786 = vrot.slane %v2785, 4
    %v2787 = vadd.f32 %v2785, %v2786
    %v2788 = vrot.slane %v2787, 2
    %v2789 = vadd.f32 %v2787, %v2788
    %v2790 = vrot.slane %v2789, 1
    %v2791 = vadd.f32 %v2789, %v2790
    %v2792 = vsel %vm1464, %v2578, 0.0
    %v2793 = vrot.slane %v2792, 4
    %v2794 = vadd.f32 %v2792, %v2793
    %v2795 = vrot.slane %v2794, 2
    %v2796 = vadd.f32 %v2794, %v2795
    %v2797 = vrot.slane %v2796, 1
    %v2798 = vadd.f32 %v2796, %v2797
    %v2799 = vsel %vm1464, %v2579, 0.0
    %v2800 = vrot.slane %v2799, 4
    %v2801 = vadd.f32 %v2799, %v2800
    %v2802 = vrot.slane %v2801, 2
    %v2803 = vadd.f32 %v2801, %v2802
    %v2804 = vrot.slane %v2803, 1
    %v2805 = vadd.f32 %v2803, %v2804
    %v2806 = vsel %vm1464, %v2580, 0.0
    %v2807 = vrot.slane %v2806, 4
    %v2808 = vadd.f32 %v2806, %v2807
    %v2809 = vrot.slane %v2808, 2
    %v2810 = vadd.f32 %v2808, %v2809
    %v2811 = vrot.slane %v2810, 1
    %v2812 = vadd.f32 %v2810, %v2811
    %v2813 = vsel %vm1464, %v2581, 0.0
    %v2814 = vrot.slane %v2813, 4
    %v2815 = vadd.f32 %v2813, %v2814
    %v2816 = vrot.slane %v2815, 2
    %v2817 = vadd.f32 %v2815, %v2816
    %v2818 = vrot.slane %v2817, 1
    %v2819 = vadd.f32 %v2817, %v2818
    %v2820 = vsel %vm1464, %v2582, 0.0
    %v2821 = vrot.slane %v2820, 4
    %v2822 = vadd.f32 %v2820, %v2821
    %v2823 = vrot.slane %v2822, 2
    %v2824 = vadd.f32 %v2822, %v2823
    %v2825 = vrot.slane %v2824, 1
    %v2826 = vadd.f32 %v2824, %v2825
    %v2827 = vsel %vm1464, %v2583, 0.0
    %v2828 = vrot.slane %v2827, 4
    %v2829 = vadd.f32 %v2827, %v2828
    %v2830 = vrot.slane %v2829, 2
    %v2831 = vadd.f32 %v2829, %v2830
    %v2832 = vrot.slane %v2831, 1
    %v2833 = vadd.f32 %v2831, %v2832
    %v2834 = vsel %vm1464, %v2584, 0.0
    %v2835 = vrot.slane %v2834, 4
    %v2836 = vadd.f32 %v2834, %v2835
    %v2837 = vrot.slane %v2836, 2
    %v2838 = vadd.f32 %v2836, %v2837
    %v2839 = vrot.slane %v2838, 1
    %v2840 = vadd.f32 %v2838, %v2839
    %v2841 = vsel %vm1464, %v2585, 0.0
    %v2842 = vrot.slane %v2841, 4
    %v2843 = vadd.f32 %v2841, %v2842
    %v2844 = vrot.slane %v2843, 2
    %v2845 = vadd.f32 %v2843, %v2844
    %v2846 = vrot.slane %v2845, 1
    %v2847 = vadd.f32 %v2845, %v2846
    %v2848 = vsel %vm1464, %v2586, 0.0
    %v2849 = vrot.slane %v2848, 4
    %v2850 = vadd.f32 %v2848, %v2849
    %v2851 = vrot.slane %v2850, 2
    %v2852 = vadd.f32 %v2850, %v2851
    %v2853 = vrot.slane %v2852, 1
    %v2854 = vadd.f32 %v2852, %v2853
    %v2855 = vsel %vm1464, %v2587, 0.0
    %v2856 = vrot.slane %v2855, 4
    %v2857 = vadd.f32 %v2855, %v2856
    %v2858 = vrot.slane %v2857, 2
    %v2859 = vadd.f32 %v2857, %v2858
    %v2860 = vrot.slane %v2859, 1
    %v2861 = vadd.f32 %v2859, %v2860
    %v2862 = vsel %vm1464, %v2588, 0.0
    %v2863 = vrot.slane %v2862, 4
    %v2864 = vadd.f32 %v2862, %v2863
    %v2865 = vrot.slane %v2864, 2
    %v2866 = vadd.f32 %v2864, %v2865
    %v2867 = vrot.slane %v2866, 1
    %v2868 = vadd.f32 %v2866, %v2867
    %v2869 = vsel %vm1464, %v2589, 0.0
    %v2870 = vrot.slane %v2869, 4
    %v2871 = vadd.f32 %v2869, %v2870
    %v2872 = vrot.slane %v2871, 2
    %v2873 = vadd.f32 %v2871, %v2872
    %v2874 = vrot.slane %v2873, 1
    %v2875 = vadd.f32 %v2873, %v2874
    %v2876 = vsel %vm1464, %v2590, 0.0
    %v2877 = vrot.slane %v2876, 4
    %v2878 = vadd.f32 %v2876, %v2877
    %v2879 = vrot.slane %v2878, 2
    %v2880 = vadd.f32 %v2878, %v2879
    %v2881 = vrot.slane %v2880, 1
    %v2882 = vadd.f32 %v2880, %v2881
    %v2883 = vsel %vm1464, %v2591, 0.0
    %v2884 = vrot.slane %v2883, 4
    %v2885 = vadd.f32 %v2883, %v2884
    %v2886 = vrot.slane %v2885, 2
    %v2887 = vadd.f32 %v2885, %v2886
    %v2888 = vrot.slane %v2887, 1
    %v2889 = vadd.f32 %v2887, %v2888
    %v2890 = vsel %vm1464, %v2592, 0.0
    %v2891 = vrot.slane %v2890, 4
    %v2892 = vadd.f32 %v2890, %v2891
    %v2893 = vrot.slane %v2892, 2
    %v2894 = vadd.f32 %v2892, %v2893
    %v2895 = vrot.slane %v2894, 1
    %v2896 = vadd.f32 %v2894, %v2895
    %v2897 = vsel %vm1464, %v2593, 0.0
    %v2898 = vrot.slane %v2897, 4
    %v2899 = vadd.f32 %v2897, %v2898
    %v2900 = vrot.slane %v2899, 2
    %v2901 = vadd.f32 %v2899, %v2900
    %v2902 = vrot.slane %v2901, 1
    %v2903 = vadd.f32 %v2901, %v2902
    %v2904 = vsel %vm1464, %v2594, 0.0
    %v2905 = vrot.slane %v2904, 4
    %v2906 = vadd.f32 %v2904, %v2905
    %v2907 = vrot.slane %v2906, 2
    %v2908 = vadd.f32 %v2906, %v2907
    %v2909 = vrot.slane %v2908, 1
    %v2910 = vadd.f32 %v2908, %v2909
    %v2911 = vsel %vm1464, %v2595, 0.0
    %v2912 = vrot.slane %v2911, 4
    %v2913 = vadd.f32 %v2911, %v2912
    %v2914 = vrot.slane %v2913, 2
    %v2915 = vadd.f32 %v2913, %v2914
    %v2916 = vrot.slane %v2915, 1
    %v2917 = vadd.f32 %v2915, %v2916
    %v2918 = vsel %vm1464, %v2596, 0.0
    %v2919 = vrot.slane %v2918, 4
    %v2920 = vadd.f32 %v2918, %v2919
    %v2921 = vrot.slane %v2920, 2
    %v2922 = vadd.f32 %v2920, %v2921
    %v2923 = vrot.slane %v2922, 1
    %v2924 = vadd.f32 %v2922, %v2923
    %v2925 = vsel %vm1464, %v2597, 0.0
    %v2926 = vrot.slane %v2925, 4
    %v2927 = vadd.f32 %v2925, %v2926
    %v2928 = vrot.slane %v2927, 2
    %v2929 = vadd.f32 %v2927, %v2928
    %v2930 = vrot.slane %v2929, 1
    %v2931 = vadd.f32 %v2929, %v2930
    %v2932 = vsel %vm1464, %v2598, 0.0
    %v2933 = vrot.slane %v2932, 4
    %v2934 = vadd.f32 %v2932, %v2933
    %v2935 = vrot.slane %v2934, 2
    %v2936 = vadd.f32 %v2934, %v2935
    %v2937 = vrot.slane %v2936, 1
    %v2938 = vadd.f32 %v2936, %v2937
    %v2939 = vsel %vm1464, %v2599, 0.0
    %v2940 = vrot.slane %v2939, 4
    %v2941 = vadd.f32 %v2939, %v2940
    %v2942 = vrot.slane %v2941, 2
    %v2943 = vadd.f32 %v2941, %v2942
    %v2944 = vrot.slane %v2943, 1
    %v2945 = vadd.f32 %v2943, %v2944
    %v2946 = vsel %vm1464, %v2600, 0.0
    %v2947 = vrot.slane %v2946, 4
    %v2948 = vadd.f32 %v2946, %v2947
    %v2949 = vrot.slane %v2948, 2
    %v2950 = vadd.f32 %v2948, %v2949
    %v2951 = vrot.slane %v2950, 1
    %v2952 = vadd.f32 %v2950, %v2951
    %v2953 = vsel %vm1464, %v2601, 0.0
    %v2954 = vrot.slane %v2953, 4
    %v2955 = vadd.f32 %v2953, %v2954
    %v2956 = vrot.slane %v2955, 2
    %v2957 = vadd.f32 %v2955, %v2956
    %v2958 = vrot.slane %v2957, 1
    %v2959 = vadd.f32 %v2957, %v2958
    %v2960 = vsel %vm1464, %v2602, 0.0
    %v2961 = vrot.slane %v2960, 4
    %v2962 = vadd.f32 %v2960, %v2961
    %v2963 = vrot.slane %v2962, 2
    %v2964 = vadd.f32 %v2962, %v2963
    %v2965 = vrot.slane %v2964, 1
    %v2966 = vadd.f32 %v2964, %v2965
    %v2967 = vsel %vm1464, %v2603, 0.0
    %v2968 = vrot.slane %v2967, 4
    %v2969 = vadd.f32 %v2967, %v2968
    %v2970 = vrot.slane %v2969, 2
    %v2971 = vadd.f32 %v2969, %v2970
    %v2972 = vrot.slane %v2971, 1
    %v2973 = vadd.f32 %v2971, %v2972
    %v2974 = vsel %vm1464, %v2604, 0.0
    %v2975 = vrot.slane %v2974, 4
    %v2976 = vadd.f32 %v2974, %v2975
    %v2977 = vrot.slane %v2976, 2
    %v2978 = vadd.f32 %v2976, %v2977
    %v2979 = vrot.slane %v2978, 1
    %v2980 = vadd.f32 %v2978, %v2979
    %v2981 = vsel %vm1464, %v2605, 0.0
    %v2982 = vrot.slane %v2981, 4
    %v2983 = vadd.f32 %v2981, %v2982
    %v2984 = vrot.slane %v2983, 2
    %v2985 = vadd.f32 %v2983, %v2984
    %v2986 = vrot.slane %v2985, 1
    %v2987 = vadd.f32 %v2985, %v2986
    %v2988 = vsel %vm1464, %v2606, 0.0
    %v2989 = vrot.slane %v2988, 4
    %v2990 = vadd.f32 %v2988, %v2989
    %v2991 = vrot.slane %v2990, 2
    %v2992 = vadd.f32 %v2990, %v2991
    %v2993 = vrot.slane %v2992, 1
    %v2994 = vadd.f32 %v2992, %v2993
    %v2995 = vsel %vm1464, %v2607, 0.0
    %v2996 = vrot.slane %v2995, 4
    %v2997 = vadd.f32 %v2995, %v2996
    %v2998 = vrot.slane %v2997, 2
    %v2999 = vadd.f32 %v2997, %v2998
    %v3000 = vrot.slane %v2999, 1
    %v3001 = vadd.f32 %v2999, %v3000
    %v3002 = vsel %vm1464, %v2608, 0.0
    %v3003 = vrot.slane %v3002, 4
    %v3004 = vadd.f32 %v3002, %v3003
    %v3005 = vrot.slane %v3004, 2
    %v3006 = vadd.f32 %v3004, %v3005
    %v3007 = vrot.slane %v3006, 1
    %v3008 = vadd.f32 %v3006, %v3007
    %v3009 = vsel %vm1464, %v2609, 0.0
    %v3010 = vrot.slane %v3009, 4
    %v3011 = vadd.f32 %v3009, %v3010
    %v3012 = vrot.slane %v3011, 2
    %v3013 = vadd.f32 %v3011, %v3012
    %v3014 = vrot.slane %v3013, 1
    %v3015 = vadd.f32 %v3013, %v3014
    %v3016 = vsel %vm1464, %v2610, 0.0
    %v3017 = vrot.slane %v3016, 4
    %v3018 = vadd.f32 %v3016, %v3017
    %v3019 = vrot.slane %v3018, 2
    %v3020 = vadd.f32 %v3018, %v3019
    %v3021 = vrot.slane %v3020, 1
    %v3022 = vadd.f32 %v3020, %v3021
    %v3023 = vsel %vm1464, %v2611, 0.0
    %v3024 = vrot.slane %v3023, 4
    %v3025 = vadd.f32 %v3023, %v3024
    %v3026 = vrot.slane %v3025, 2
    %v3027 = vadd.f32 %v3025, %v3026
    %v3028 = vrot.slane %v3027, 1
    %v3029 = vadd.f32 %v3027, %v3028
    %v3030 = vsel %vm1464, %v2612, 0.0
    %v3031 = vrot.slane %v3030, 4
    %v3032 = vadd.f32 %v3030, %v3031
    %v3033 = vrot.slane %v3032, 2
    %v3034 = vadd.f32 %v3032, %v3033
    %v3035 = vrot.slane %v3034, 1
    %v3036 = vadd.f32 %v3034, %v3035
    %v3037 = vsel %vm1464, %v2613, 0.0
    %v3038 = vrot.slane %v3037, 4
    %v3039 = vadd.f32 %v3037, %v3038
    %v3040 = vrot.slane %v3039, 2
    %v3041 = vadd.f32 %v3039, %v3040
    %v3042 = vrot.slane %v3041, 1
    %v3043 = vadd.f32 %v3041, %v3042
    %v3044 = vsel %vm1464, %v2614, 0.0
    %v3045 = vrot.slane %v3044, 4
    %v3046 = vadd.f32 %v3044, %v3045
    %v3047 = vrot.slane %v3046, 2
    %v3048 = vadd.f32 %v3046, %v3047
    %v3049 = vrot.slane %v3048, 1
    %v3050 = vadd.f32 %v3048, %v3049
    %v3051 = vsel %vm1464, %v2615, 0.0
    %v3052 = vrot.slane %v3051, 4
    %v3053 = vadd.f32 %v3051, %v3052
    %v3054 = vrot.slane %v3053, 2
    %v3055 = vadd.f32 %v3053, %v3054
    %v3056 = vrot.slane %v3055, 1
    %v3057 = vadd.f32 %v3055, %v3056
    %v3058 = vsel %vm1464, %v2616, 0.0
    %v3059 = vrot.slane %v3058, 4
    %v3060 = vadd.f32 %v3058, %v3059
    %v3061 = vrot.slane %v3060, 2
    %v3062 = vadd.f32 %v3060, %v3061
    %v3063 = vrot.slane %v3062, 1
    %v3064 = vadd.f32 %v3062, %v3063
    %v3065 = vmul.f32 %v2111, 1e-13
    %v3066 = vmul.f32 %v2118, 1e-13
    %v3067 = vmul.f32 %v2125, 1e-13
    %v3068 = vmul.f32 %v2132, 1e-13
    %v3069 = vmul.f32 %v2139, 1e-13
    %v3070 = vmul.f32 %v2146, 1e-13
    %v3071 = vmul.f32 %v2153, 1e-13
    %v3072 = vmul.f32 %v2160, 1e-13
    %v3073 = vmul.f32 %v2167, 1e-13
    %v3074 = vmul.f32 %v2174, 1e-13
    %v3075 = vmul.f32 %v2181, 1e-13
    %v3076 = vmul.f32 %v2188, 1e-13
    %v3077 = vmul.f32 %v2195, 1e-13
    %v3078 = vmul.f32 %v2202, 1e-13
    %v3079 = vmul.f32 %v2209, 1e-13
    %v3080 = vmul.f32 %v2216, 1e-13
    %v3081 = vmul.f32 %v2223, 1e-13
    %v3082 = vmul.f32 %v2230, 1e-13
    %v3083 = vmul.f32 %v2237, 1e-13
    %v3084 = vmul.f32 %v2244, 1e-13
    %v3085 = vmul.f32 %v2251, 1e-13
    %v3086 = vmul.f32 %v2258, 1e-13
    %v3087 = vmul.f32 %v2265, 1e-13
    %v3088 = vmul.f32 %v2272, 1e-13
    %v3089 = vmul.f32 %v2279, 1e-13
    %v3090 = vmul.f32 %v2286, 1e-13
    %v3091 = vmul.f32 %v2293, 1e-13
    %v3092 = vmul.f32 %v2300, 1e-13
    %v3093 = vmul.f32 %v2307, 1e-13
    %v3094 = vmul.f32 %v2314, 1e-13
    %v3095 = vmul.f32 %v2321, 1e-13
    %v3096 = vmul.f32 %v2328, 1e-13
    %v3097 = vmul.f32 %v2335, 1e-13
    %v3098 = vmul.f32 %v2342, 1e-13
    %v3099 = vmul.f32 %v2349, 1e-13
    %v3100 = vmul.f32 %v2356, 1e-13
    %v3101 = vmul.f32 %v2363, 1e-13
    %v3102 = vmul.f32 %v2370, 1e-13
    %v3103 = vmul.f32 %v2377, 1e-13
    %v3104 = vmul.f32 %v2384, 1e-13
    %v3105 = vmul.f32 %v2391, 1e-13
    %v3106 = vmul.f32 %v2398, 1e-13
    %v3107 = vmul.f32 %v2405, 1e-13
    %v3108 = vmul.f32 %v2412, 1e-13
    %v3109 = vmul.f32 %v2419, 1e-13
    %v3110 = vmul.f32 %v2426, 1e-13
    %v3111 = vmul.f32 %v2433, 1e-13
    %v3112 = vmul.f32 %v2440, 1e-13
    %v3113 = vmul.f32 %v2447, 1e-13
    %v3114 = vmul.f32 %v2454, 1e-13
    %v3115 = vmul.f32 %v2461, 1e-13
    %v3116 = vmul.f32 %v2468, 1e-13
    %v3117 = vmul.f32 %v2475, 1e-13
    %v3118 = vmul.f32 %v2482, 1e-13
    %v3119 = vmul.f32 %v2489, 1e-13
    %v3120 = vmul.f32 %v2496, 1e-13
    %v3121 = vmul.f32 %v2503, 1e-13
    %v3122 = vmul.f32 %v2510, 1e-13
    %v3123 = vmul.f32 %v2517, 1e-13
    %v3124 = vmul.f32 %v2524, 1e-13
    %v3125 = vmul.f32 %v2531, 1e-13
    %v3126 = vmul.f32 %v2538, 1e-13
    %v3127 = vmul.f32 %v2545, 1e-13
    %v3128 = vmul.f32 %v2552, 1e-13
    %v3129 = vadd.f32 %v2623, %v3065
    %v3130 = vadd.f32 %v2630, %v3066
    %v3131 = vadd.f32 %v2637, %v3067
    %v3132 = vadd.f32 %v2644, %v3068
    %v3133 = vadd.f32 %v2651, %v3069
    %v3134 = vadd.f32 %v2658, %v3070
    %v3135 = vadd.f32 %v2665, %v3071
    %v3136 = vadd.f32 %v2672, %v3072
    %v3137 = vadd.f32 %v2679, %v3073
    %v3138 = vadd.f32 %v2686, %v3074
    %v3139 = vadd.f32 %v2693, %v3075
    %v3140 = vadd.f32 %v2700, %v3076
    %v3141 = vadd.f32 %v2707, %v3077
    %v3142 = vadd.f32 %v2714, %v3078
    %v3143 = vadd.f32 %v2721, %v3079
    %v3144 = vadd.f32 %v2728, %v3080
    %v3145 = vadd.f32 %v2735, %v3081
    %v3146 = vadd.f32 %v2742, %v3082
    %v3147 = vadd.f32 %v2749, %v3083
    %v3148 = vadd.f32 %v2756, %v3084
    %v3149 = vadd.f32 %v2763, %v3085
    %v3150 = vadd.f32 %v2770, %v3086
    %v3151 = vadd.f32 %v2777, %v3087
    %v3152 = vadd.f32 %v2784, %v3088
    %v3153 = vadd.f32 %v2791, %v3089
    %v3154 = vadd.f32 %v2798, %v3090
    %v3155 = vadd.f32 %v2805, %v3091
    %v3156 = vadd.f32 %v2812, %v3092
    %v3157 = vadd.f32 %v2819, %v3093
    %v3158 = vadd.f32 %v2826, %v3094
    %v3159 = vadd.f32 %v2833, %v3095
    %v3160 = vadd.f32 %v2840, %v3096
    %v3161 = vadd.f32 %v2847, %v3097
    %v3162 = vadd.f32 %v2854, %v3098
    %v3163 = vadd.f32 %v2861, %v3099
    %v3164 = vadd.f32 %v2868, %v3100
    %v3165 = vadd.f32 %v2875, %v3101
    %v3166 = vadd.f32 %v2882, %v3102
    %v3167 = vadd.f32 %v2889, %v3103
    %v3168 = vadd.f32 %v2896, %v3104
    %v3169 = vadd.f32 %v2903, %v3105
    %v3170 = vadd.f32 %v2910, %v3106
    %v3171 = vadd.f32 %v2917, %v3107
    %v3172 = vadd.f32 %v2924, %v3108
    %v3173 = vadd.f32 %v2931, %v3109
    %v3174 = vadd.f32 %v2938, %v3110
    %v3175 = vadd.f32 %v2945, %v3111
    %v3176 = vadd.f32 %v2952, %v3112
    %v3177 = vadd.f32 %v2959, %v3113
    %v3178 = vadd.f32 %v2966, %v3114
    %v3179 = vadd.f32 %v2973, %v3115
    %v3180 = vadd.f32 %v2980, %v3116
    %v3181 = vadd.f32 %v2987, %v3117
    %v3182 = vadd.f32 %v2994, %v3118
    %v3183 = vadd.f32 %v3001, %v3119
    %v3184 = vadd.f32 %v3008, %v3120
    %v3185 = vadd.f32 %v3015, %v3121
    %v3186 = vadd.f32 %v3022, %v3122
    %v3187 = vadd.f32 %v3029, %v3123
    %v3188 = vadd.f32 %v3036, %v3124
    %v3189 = vadd.f32 %v3043, %v3125
    %v3190 = vadd.f32 %v3050, %v3126
    %v3191 = vadd.f32 %v3057, %v3127
    %v3192 = vadd.f32 %v3064, %v3128
    %v3193 = vrcp.pop %v3129
    %v3194 = vrcp.pop %v3130
    %v3195 = vrcp.pop %v3131
    %v3196 = vrcp.pop %v3132
    %v3197 = vrcp.pop %v3133
    %v3198 = vrcp.pop %v3134
    %v3199 = vrcp.pop %v3135
    %v3200 = vrcp.pop %v3136
    %v3201 = vrcp.pop %v3137
    %v3202 = vrcp.pop %v3138
    %v3203 = vrcp.pop %v3139
    %v3204 = vrcp.pop %v3140
    %v3205 = vrcp.pop %v3141
    %v3206 = vrcp.pop %v3142
    %v3207 = vrcp.pop %v3143
    %v3208 = vrcp.pop %v3144
    %v3209 = vrcp.pop %v3145
    %v3210 = vrcp.pop %v3146
    %v3211 = vrcp.pop %v3147
    %v3212 = vrcp.pop %v3148
    %v3213 = vrcp.pop %v3149
    %v3214 = vrcp.pop %v3150
    %v3215 = vrcp.pop %v3151
    %v3216 = vrcp.pop %v3152
    %v3217 = vrcp.pop %v3153
    %v3218 = vrcp.pop %v3154
    %v3219 = vrcp.pop %v3155
    %v3220 = vrcp.pop %v3156
    %v3221 = vrcp.pop %v3157
    %v3222 = vrcp.pop %v3158
    %v3223 = vrcp.pop %v3159
    %v3224 = vrcp.pop %v3160
    %v3225 = vrcp.pop %v3161
    %v3226 = vrcp.pop %v3162
    %v3227 = vrcp.pop %v3163
    %v3228 = vrcp.pop %v3164
    %v3229 = vrcp.pop %v3165
    %v3230 = vrcp.pop %v3166
    %v3231 = vrcp.pop %v3167
    %v3232 = vrcp.pop %v3168
    %v3233 = vrcp.pop %v3169
    %v3234 = vrcp.pop %v3170
    %v3235 = vrcp.pop %v3171
    %v3236 = vrcp.pop %v3172
    %v3237 = vrcp.pop %v3173
    %v3238 = vrcp.pop %v3174
    %v3239 = vrcp.pop %v3175
    %v3240 = vrcp.pop %v3176
    %v3241 = vrcp.pop %v3177
    %v3242 = vrcp.pop %v3178
    %v3243 = vrcp.pop %v3179
    %v3244 = vrcp.pop %v3180
    %v3245 = vrcp.pop %v3181
    %v3246 = vrcp.pop %v3182
    %v3247 = vrcp.pop %v3183
    %v3248 = vrcp.pop %v3184
    %v3249 = vrcp.pop %v3185
    %v3250 = vrcp.pop %v3186
    %v3251 = vrcp.pop %v3187
    %v3252 = vrcp.pop %v3188
    %v3253 = vrcp.pop %v3189
    %v3254 = vrcp.pop %v3190
    %v3255 = vrcp.pop %v3191
    %v3256 = vrcp.pop %v3192
    %v3257 = vmul.f32 %v2553, %v3193
    %v3258 = vmul.f32 %v2554, %v3194
    %v3259 = vmul.f32 %v2555, %v3195
    %v3260 = vmul.f32 %v2556, %v3196
    %v3261 = vmul.f32 %v2557, %v3197
    %v3262 = vmul.f32 %v2558, %v3198
    %v3263 = vmul.f32 %v2559, %v3199
    %v3264 = vmul.f32 %v2560, %v3200
    %v3265 = vmul.f32 %v2561, %v3201
    %v3266 = vmul.f32 %v2562, %v3202
    %v3267 = vmul.f32 %v2563, %v3203
    %v3268 = vmul.f32 %v2564, %v3204
    %v3269 = vmul.f32 %v2565, %v3205
    %v3270 = vmul.f32 %v2566, %v3206
    %v3271 = vmul.f32 %v2567, %v3207
    %v3272 = vmul.f32 %v2568, %v3208
    %v3273 = vmul.f32 %v2569, %v3209
    %v3274 = vmul.f32 %v2570, %v3210
    %v3275 = vmul.f32 %v2571, %v3211
    %v3276 = vmul.f32 %v2572, %v3212
    %v3277 = vmul.f32 %v2573, %v3213
    %v3278 = vmul.f32 %v2574, %v3214
    %v3279 = vmul.f32 %v2575, %v3215
    %v3280 = vmul.f32 %v2576, %v3216
    %v3281 = vmul.f32 %v2577, %v3217
    %v3282 = vmul.f32 %v2578, %v3218
    %v3283 = vmul.f32 %v2579, %v3219
    %v3284 = vmul.f32 %v2580, %v3220
    %v3285 = vmul.f32 %v2581, %v3221
    %v3286 = vmul.f32 %v2582, %v3222
    %v3287 = vmul.f32 %v2583, %v3223
    %v3288 = vmul.f32 %v2584, %v3224
    %v3289 = vmul.f32 %v2585, %v3225
    %v3290 = vmul.f32 %v2586, %v3226
    %v3291 = vmul.f32 %v2587, %v3227
    %v3292 = vmul.f32 %v2588, %v3228
    %v3293 = vmul.f32 %v2589, %v3229
    %v3294 = vmul.f32 %v2590, %v3230
    %v3295 = vmul.f32 %v2591, %v3231
    %v3296 = vmul.f32 %v2592, %v3232
    %v3297 = vmul.f32 %v2593, %v3233
    %v3298 = vmul.f32 %v2594, %v3234
    %v3299 = vmul.f32 %v2595, %v3235
    %v3300 = vmul.f32 %v2596, %v3236
    %v3301 = vmul.f32 %v2597, %v3237
    %v3302 = vmul.f32 %v2598, %v3238
    %v3303 = vmul.f32 %v2599, %v3239
    %v3304 = vmul.f32 %v2600, %v3240
    %v3305 = vmul.f32 %v2601, %v3241
    %v3306 = vmul.f32 %v2602, %v3242
    %v3307 = vmul.f32 %v2603, %v3243
    %v3308 = vmul.f32 %v2604, %v3244
    %v3309 = vmul.f32 %v2605, %v3245
    %v3310 = vmul.f32 %v2606, %v3246
    %v3311 = vmul.f32 %v2607, %v3247
    %v3312 = vmul.f32 %v2608, %v3248
    %v3313 = vmul.f32 %v2609, %v3249
    %v3314 = vmul.f32 %v2610, %v3250
    %v3315 = vmul.f32 %v2611, %v3251
    %v3316 = vmul.f32 %v2612, %v3252
    %v3317 = vmul.f32 %v2613, %v3253
    %v3318 = vmul.f32 %v2614, %v3254
    %v3319 = vmul.f32 %v2615, %v3255
    %v3320 = vmul.f32 %v2616, %v3256
    %3321 = vst.msk [vmem:[%s5] sm:$0xff] %vm1464, %v3257
    %3322 = vst.msk [vmem:[%s5 + $0x8] sm:$0xff] %vm1464, %v3258
    %3323 = vst.msk [vmem:[%s5 + $0x10] sm:$0xff] %vm1464, %v3259
    %3324 = vst.msk [vmem:[%s5 + $0x18] sm:$0xff] %vm1464, %v3260
    %3325 = vst.msk [vmem:[%s5 + $0x20] sm:$0xff] %vm1464, %v3261
    %3326 = vst.msk [vmem:[%s5 + $0x28] sm:$0xff] %vm1464, %v3262
    %3327 = vst.msk [vmem:[%s5 + $0x30] sm:$0xff] %vm1464, %v3263
    %3328 = vst.msk [vmem:[%s5 + $0x38] sm:$0xff] %vm1464, %v3264
    %3329 = vst.msk [vmem:[%s5 + $0x40] sm:$0xff] %vm1464, %v3265
    %3330 = vst.msk [vmem:[%s5 + $0x48] sm:$0xff] %vm1464, %v3266
    %3331 = vst.msk [vmem:[%s5 + $0x50] sm:$0xff] %vm1464, %v3267
    %3332 = vst.msk [vmem:[%s5 + $0x58] sm:$0xff] %vm1464, %v3268
    %3333 = vst.msk [vmem:[%s5 + $0x60] sm:$0xff] %vm1464, %v3269
    %3334 = vst.msk [vmem:[%s5 + $0x68] sm:$0xff] %vm1464, %v3270
    %3335 = vst.msk [vmem:[%s5 + $0x70] sm:$0xff] %vm1464, %v3271
    %3336 = vst.msk [vmem:[%s5 + $0x78] sm:$0xff] %vm1464, %v3272
    %3337 = vst.msk [vmem:[%s5 + $0x80] sm:$0xff] %vm1464, %v3273
    %3338 = vst.msk [vmem:[%s5 + $0x88] sm:$0xff] %vm1464, %v3274
    %3339 = vst.msk [vmem:[%s5 + $0x90] sm:$0xff] %vm1464, %v3275
    %3340 = vst.msk [vmem:[%s5 + $0x98] sm:$0xff] %vm1464, %v3276
    %3341 = vst.msk [vmem:[%s5 + $0xa0] sm:$0xff] %vm1464, %v3277
    %3342 = vst.msk [vmem:[%s5 + $0xa8] sm:$0xff] %vm1464, %v3278
    %3343 = vst.msk [vmem:[%s5 + $0xb0] sm:$0xff] %vm1464, %v3279
    %3344 = vst.msk [vmem:[%s5 + $0xb8] sm:$0xff] %vm1464, %v3280
    %3345 = vst.msk [vmem:[%s5 + $0xc0] sm:$0xff] %vm1464, %v3281
    %3346 = vst.msk [vmem:[%s5 + $0xc8] sm:$0xff] %vm1464, %v3282
    %3347 = vst.msk [vmem:[%s5 + $0xd0] sm:$0xff] %vm1464, %v3283
    %3348 = vst.msk [vmem:[%s5 + $0xd8] sm:$0xff] %vm1464, %v3284
    %3349 = vst.msk [vmem:[%s5 + $0xe0] sm:$0xff] %vm1464, %v3285
    %3350 = vst.msk [vmem:[%s5 + $0xe8] sm:$0xff] %vm1464, %v3286
    %3351 = vst.msk [vmem:[%s5 + $0xf0] sm:$0xff] %vm1464, %v3287
    %3352 = vst.msk [vmem:[%s5 + $0xf8] sm:$0xff] %vm1464, %v3288
    %3353 = vst.msk [vmem:[%s5 + $0x100] sm:$0xff] %vm1464, %v3289
    %3354 = vst.msk [vmem:[%s5 + $0x108] sm:$0xff] %vm1464, %v3290
    %3355 = vst.msk [vmem:[%s5 + $0x110] sm:$0xff] %vm1464, %v3291
    %3356 = vst.msk [vmem:[%s5 + $0x118] sm:$0xff] %vm1464, %v3292
    %3357 = vst.msk [vmem:[%s5 + $0x120] sm:$0xff] %vm1464, %v3293
    %3358 = vst.msk [vmem:[%s5 + $0x128] sm:$0xff] %vm1464, %v3294
    %3359 = vst.msk [vmem:[%s5 + $0x130] sm:$0xff] %vm1464, %v3295
    %3360 = vst.msk [vmem:[%s5 + $0x138] sm:$0xff] %vm1464, %v3296
    %3361 = vst.msk [vmem:[%s5 + $0x140] sm:$0xff] %vm1464, %v3297
    %3362 = vst.msk [vmem:[%s5 + $0x148] sm:$0xff] %vm1464, %v3298
    %3363 = vst.msk [vmem:[%s5 + $0x150] sm:$0xff] %vm1464, %v3299
    %3364 = vst.msk [vmem:[%s5 + $0x158] sm:$0xff] %vm1464, %v3300
    %3365 = vst.msk [vmem:[%s5 + $0x160] sm:$0xff] %vm1464, %v3301
    %3366 = vst.msk [vmem:[%s5 + $0x168] sm:$0xff] %vm1464, %v3302
    %3367 = vst.msk [vmem:[%s5 + $0x170] sm:$0xff] %vm1464, %v3303
    %3368 = vst.msk [vmem:[%s5 + $0x178] sm:$0xff] %vm1464, %v3304
    %3369 = vst.msk [vmem:[%s5 + $0x180] sm:$0xff] %vm1464, %v3305
    %3370 = vst.msk [vmem:[%s5 + $0x188] sm:$0xff] %vm1464, %v3306
    %3371 = vst.msk [vmem:[%s5 + $0x190] sm:$0xff] %vm1464, %v3307
    %3372 = vst.msk [vmem:[%s5 + $0x198] sm:$0xff] %vm1464, %v3308
    %3373 = vst.msk [vmem:[%s5 + $0x1a0] sm:$0xff] %vm1464, %v3309
    %3374 = vst.msk [vmem:[%s5 + $0x1a8] sm:$0xff] %vm1464, %v3310
    %3375 = vst.msk [vmem:[%s5 + $0x1b0] sm:$0xff] %vm1464, %v3311
    %3376 = vst.msk [vmem:[%s5 + $0x1b8] sm:$0xff] %vm1464, %v3312
    %3377 = vst.msk [vmem:[%s5 + $0x1c0] sm:$0xff] %vm1464, %v3313
    %3378 = vst.msk [vmem:[%s5 + $0x1c8] sm:$0xff] %vm1464, %v3314
    %3379 = vst.msk [vmem:[%s5 + $0x1d0] sm:$0xff] %vm1464, %v3315
    %3380 = vst.msk [vmem:[%s5 + $0x1d8] sm:$0xff] %vm1464, %v3316
    %3381 = vst.msk [vmem:[%s5 + $0x1e0] sm:$0xff] %vm1464, %v3317
    %3382 = vst.msk [vmem:[%s5 + $0x1e8] sm:$0xff] %vm1464, %v3318
    %3383 = vst.msk [vmem:[%s5 + $0x1f0] sm:$0xff] %vm1464, %v3319
    %3384 = vst.msk [vmem:[%s5 + $0x1f8] sm:$0xff] %vm1464, %v3320
    %3386 = vset.pattern.permute.xlu0 0
    %3387 = vperm.xlu0 %3386, %v3257
    %v3388 = vpop.permute.xlu0 %3387
    %3391 = vset.pattern.permute.xlu0 0
    %3392 = vperm.xlu0 %3391, %v3258
    %v3393 = vpop.permute.xlu0 %3392
    %3396 = vset.pattern.permute.xlu0 0
    %3397 = vperm.xlu0 %3396, %v3259
    %v3398 = vpop.permute.xlu0 %3397
    %3401 = vset.pattern.permute.xlu0 0
    %3402 = vperm.xlu0 %3401, %v3260
    %v3403 = vpop.permute.xlu0 %3402
    %3406 = vset.pattern.permute.xlu0 0
    %3407 = vperm.xlu0 %3406, %v3261
    %v3408 = vpop.permute.xlu0 %3407
    %3411 = vset.pattern.permute.xlu0 0
    %3412 = vperm.xlu0 %3411, %v3262
    %v3413 = vpop.permute.xlu0 %3412
    %3416 = vset.pattern.permute.xlu0 0
    %3417 = vperm.xlu0 %3416, %v3263
    %v3418 = vpop.permute.xlu0 %3417
    %3421 = vset.pattern.permute.xlu0 0
    %3422 = vperm.xlu0 %3421, %v3264
    %v3423 = vpop.permute.xlu0 %3422
    %3426 = vset.pattern.permute.xlu0 0
    %3427 = vperm.xlu0 %3426, %v3265
    %v3428 = vpop.permute.xlu0 %3427
    %3431 = vset.pattern.permute.xlu0 0
    %3432 = vperm.xlu0 %3431, %v3266
    %v3433 = vpop.permute.xlu0 %3432
    %3436 = vset.pattern.permute.xlu0 0
    %3437 = vperm.xlu0 %3436, %v3267
    %v3438 = vpop.permute.xlu0 %3437
    %3441 = vset.pattern.permute.xlu0 0
    %3442 = vperm.xlu0 %3441, %v3268
    %v3443 = vpop.permute.xlu0 %3442
    %3446 = vset.pattern.permute.xlu0 0
    %3447 = vperm.xlu0 %3446, %v3269
    %v3448 = vpop.permute.xlu0 %3447
    %3451 = vset.pattern.permute.xlu0 0
    %3452 = vperm.xlu0 %3451, %v3270
    %v3453 = vpop.permute.xlu0 %3452
    %3456 = vset.pattern.permute.xlu0 0
    %3457 = vperm.xlu0 %3456, %v3271
    %v3458 = vpop.permute.xlu0 %3457
    %3461 = vset.pattern.permute.xlu0 0
    %3462 = vperm.xlu0 %3461, %v3272
    %v3463 = vpop.permute.xlu0 %3462
    %3466 = vset.pattern.permute.xlu0 0
    %3467 = vperm.xlu0 %3466, %v3273
    %v3468 = vpop.permute.xlu0 %3467
    %3471 = vset.pattern.permute.xlu0 0
    %3472 = vperm.xlu0 %3471, %v3274
    %v3473 = vpop.permute.xlu0 %3472
    %3476 = vset.pattern.permute.xlu0 0
    %3477 = vperm.xlu0 %3476, %v3275
    %v3478 = vpop.permute.xlu0 %3477
    %3481 = vset.pattern.permute.xlu0 0
    %3482 = vperm.xlu0 %3481, %v3276
    %v3483 = vpop.permute.xlu0 %3482
    %3486 = vset.pattern.permute.xlu0 0
    %3487 = vperm.xlu0 %3486, %v3277
    %v3488 = vpop.permute.xlu0 %3487
    %3491 = vset.pattern.permute.xlu0 0
    %3492 = vperm.xlu0 %3491, %v3278
    %v3493 = vpop.permute.xlu0 %3492
    %3496 = vset.pattern.permute.xlu0 0
    %3497 = vperm.xlu0 %3496, %v3279
    %v3498 = vpop.permute.xlu0 %3497
    %3501 = vset.pattern.permute.xlu0 0
    %3502 = vperm.xlu0 %3501, %v3280
    %v3503 = vpop.permute.xlu0 %3502
    %3506 = vset.pattern.permute.xlu0 0
    %3507 = vperm.xlu0 %3506, %v3281
    %v3508 = vpop.permute.xlu0 %3507
    %3511 = vset.pattern.permute.xlu0 0
    %3512 = vperm.xlu0 %3511, %v3282
    %v3513 = vpop.permute.xlu0 %3512
    %3516 = vset.pattern.permute.xlu0 0
    %3517 = vperm.xlu0 %3516, %v3283
    %v3518 = vpop.permute.xlu0 %3517
    %3521 = vset.pattern.permute.xlu0 0
    %3522 = vperm.xlu0 %3521, %v3284
    %v3523 = vpop.permute.xlu0 %3522
    %3526 = vset.pattern.permute.xlu0 0
    %3527 = vperm.xlu0 %3526, %v3285
    %v3528 = vpop.permute.xlu0 %3527
    %3531 = vset.pattern.permute.xlu0 0
    %3532 = vperm.xlu0 %3531, %v3286
    %v3533 = vpop.permute.xlu0 %3532
    %3536 = vset.pattern.permute.xlu0 0
    %3537 = vperm.xlu0 %3536, %v3287
    %v3538 = vpop.permute.xlu0 %3537
    %3541 = vset.pattern.permute.xlu0 0
    %3542 = vperm.xlu0 %3541, %v3288
    %v3543 = vpop.permute.xlu0 %3542
    %3546 = vset.pattern.permute.xlu0 0
    %3547 = vperm.xlu0 %3546, %v3289
    %v3548 = vpop.permute.xlu0 %3547
    %3551 = vset.pattern.permute.xlu0 0
    %3552 = vperm.xlu0 %3551, %v3290
    %v3553 = vpop.permute.xlu0 %3552
    %3556 = vset.pattern.permute.xlu0 0
    %3557 = vperm.xlu0 %3556, %v3291
    %v3558 = vpop.permute.xlu0 %3557
    %3561 = vset.pattern.permute.xlu0 0
    %3562 = vperm.xlu0 %3561, %v3292
    %v3563 = vpop.permute.xlu0 %3562
    %3566 = vset.pattern.permute.xlu0 0
    %3567 = vperm.xlu0 %3566, %v3293
    %v3568 = vpop.permute.xlu0 %3567
    %3571 = vset.pattern.permute.xlu0 0
    %3572 = vperm.xlu0 %3571, %v3294
    %v3573 = vpop.permute.xlu0 %3572
    %3576 = vset.pattern.permute.xlu0 0
    %3577 = vperm.xlu0 %3576, %v3295
    %v3578 = vpop.permute.xlu0 %3577
    %3581 = vset.pattern.permute.xlu0 0
    %3582 = vperm.xlu0 %3581, %v3296
    %v3583 = vpop.permute.xlu0 %3582
    %3586 = vset.pattern.permute.xlu0 0
    %3587 = vperm.xlu0 %3586, %v3297
    %v3588 = vpop.permute.xlu0 %3587
    %3591 = vset.pattern.permute.xlu0 0
    %3592 = vperm.xlu0 %3591, %v3298
    %v3593 = vpop.permute.xlu0 %3592
    %3596 = vset.pattern.permute.xlu0 0
    %3597 = vperm.xlu0 %3596, %v3299
    %v3598 = vpop.permute.xlu0 %3597
    %3601 = vset.pattern.permute.xlu0 0
    %3602 = vperm.xlu0 %3601, %v3300
    %v3603 = vpop.permute.xlu0 %3602
    %3606 = vset.pattern.permute.xlu0 0
    %3607 = vperm.xlu0 %3606, %v3301
    %v3608 = vpop.permute.xlu0 %3607
    %3611 = vset.pattern.permute.xlu0 0
    %3612 = vperm.xlu0 %3611, %v3302
    %v3613 = vpop.permute.xlu0 %3612
    %3616 = vset.pattern.permute.xlu0 0
    %3617 = vperm.xlu0 %3616, %v3303
    %v3618 = vpop.permute.xlu0 %3617
    %3621 = vset.pattern.permute.xlu0 0
    %3622 = vperm.xlu0 %3621, %v3304
    %v3623 = vpop.permute.xlu0 %3622
    %3626 = vset.pattern.permute.xlu0 0
    %3627 = vperm.xlu0 %3626, %v3305
    %v3628 = vpop.permute.xlu0 %3627
    %3631 = vset.pattern.permute.xlu0 0
    %3632 = vperm.xlu0 %3631, %v3306
    %v3633 = vpop.permute.xlu0 %3632
    %3636 = vset.pattern.permute.xlu0 0
    %3637 = vperm.xlu0 %3636, %v3307
    %v3638 = vpop.permute.xlu0 %3637
    %3641 = vset.pattern.permute.xlu0 0
    %3642 = vperm.xlu0 %3641, %v3308
    %v3643 = vpop.permute.xlu0 %3642
    %3646 = vset.pattern.permute.xlu0 0
    %3647 = vperm.xlu0 %3646, %v3309
    %v3648 = vpop.permute.xlu0 %3647
    %3651 = vset.pattern.permute.xlu0 0
    %3652 = vperm.xlu0 %3651, %v3310
    %v3653 = vpop.permute.xlu0 %3652
    %3656 = vset.pattern.permute.xlu0 0
    %3657 = vperm.xlu0 %3656, %v3311
    %v3658 = vpop.permute.xlu0 %3657
    %3661 = vset.pattern.permute.xlu0 0
    %3662 = vperm.xlu0 %3661, %v3312
    %v3663 = vpop.permute.xlu0 %3662
    %3666 = vset.pattern.permute.xlu0 0
    %3667 = vperm.xlu0 %3666, %v3313
    %v3668 = vpop.permute.xlu0 %3667
    %3671 = vset.pattern.permute.xlu0 0
    %3672 = vperm.xlu0 %3671, %v3314
    %v3673 = vpop.permute.xlu0 %3672
    %3676 = vset.pattern.permute.xlu0 0
    %3677 = vperm.xlu0 %3676, %v3315
    %v3678 = vpop.permute.xlu0 %3677
    %3681 = vset.pattern.permute.xlu0 0
    %3682 = vperm.xlu0 %3681, %v3316
    %v3683 = vpop.permute.xlu0 %3682
    %3686 = vset.pattern.permute.xlu0 0
    %3687 = vperm.xlu0 %3686, %v3317
    %v3688 = vpop.permute.xlu0 %3687
    %3691 = vset.pattern.permute.xlu0 0
    %3692 = vperm.xlu0 %3691, %v3318
    %v3693 = vpop.permute.xlu0 %3692
    %3696 = vset.pattern.permute.xlu0 0
    %3697 = vperm.xlu0 %3696, %v3319
    %v3698 = vpop.permute.xlu0 %3697
    %3701 = vset.pattern.permute.xlu0 0
    %3702 = vperm.xlu0 %3701, %v3320
    %v3703 = vpop.permute.xlu0 %3702
    %v3705 = vmul.f32 %v3388, %v21
    %v3706 = vmul.f32 %v3393, %v22
    %v3707 = vmul.f32 %v3398, %v23
    %v3708 = vmul.f32 %v3403, %v24
    %v3709 = vmul.f32 %v3408, %v25
    %v3710 = vmul.f32 %v3413, %v26
    %v3711 = vmul.f32 %v3418, %v27
    %v3712 = vmul.f32 %v3423, %v28
    %v3713 = vmul.f32 %v3428, %v29
    %v3714 = vmul.f32 %v3433, %v30
    %v3715 = vmul.f32 %v3438, %v31
    %v3716 = vmul.f32 %v3443, %v32
    %v3717 = vmul.f32 %v3448, %v33
    %v3718 = vmul.f32 %v3453, %v34
    %v3719 = vmul.f32 %v3458, %v35
    %v3720 = vmul.f32 %v3463, %v36
    %v3721 = vmul.f32 %v3468, %v37
    %v3722 = vmul.f32 %v3473, %v38
    %v3723 = vmul.f32 %v3478, %v39
    %v3724 = vmul.f32 %v3483, %v40
    %v3725 = vmul.f32 %v3488, %v41
    %v3726 = vmul.f32 %v3493, %v42
    %v3727 = vmul.f32 %v3498, %v43
    %v3728 = vmul.f32 %v3503, %v44
    %v3729 = vmul.f32 %v3508, %v45
    %v3730 = vmul.f32 %v3513, %v46
    %v3731 = vmul.f32 %v3518, %v47
    %v3732 = vmul.f32 %v3523, %v48
    %v3733 = vmul.f32 %v3528, %v49
    %v3734 = vmul.f32 %v3533, %v50
    %v3735 = vmul.f32 %v3538, %v51
    %v3736 = vmul.f32 %v3543, %v52
    %v3737 = vmul.f32 %v3548, %v53
    %v3738 = vmul.f32 %v3553, %v54
    %v3739 = vmul.f32 %v3558, %v55
    %v3740 = vmul.f32 %v3563, %v56
    %v3741 = vmul.f32 %v3568, %v57
    %v3742 = vmul.f32 %v3573, %v58
    %v3743 = vmul.f32 %v3578, %v59
    %v3744 = vmul.f32 %v3583, %v60
    %v3745 = vmul.f32 %v3588, %v61
    %v3746 = vmul.f32 %v3593, %v62
    %v3747 = vmul.f32 %v3598, %v63
    %v3748 = vmul.f32 %v3603, %v64
    %v3749 = vmul.f32 %v3608, %v65
    %v3750 = vmul.f32 %v3613, %v66
    %v3751 = vmul.f32 %v3618, %v67
    %v3752 = vmul.f32 %v3623, %v68
    %v3753 = vmul.f32 %v3628, %v69
    %v3754 = vmul.f32 %v3633, %v70
    %v3755 = vmul.f32 %v3638, %v71
    %v3756 = vmul.f32 %v3643, %v72
    %v3757 = vmul.f32 %v3648, %v73
    %v3758 = vmul.f32 %v3653, %v74
    %v3759 = vmul.f32 %v3658, %v75
    %v3760 = vmul.f32 %v3663, %v76
    %v3761 = vmul.f32 %v3668, %v77
    %v3762 = vmul.f32 %v3673, %v78
    %v3763 = vmul.f32 %v3678, %v79
    %v3764 = vmul.f32 %v3683, %v80
    %v3765 = vmul.f32 %v3688, %v81
    %v3766 = vmul.f32 %v3693, %v82
    %v3767 = vmul.f32 %v3698, %v83
    %v3768 = vmul.f32 %v3703, %v84
    %v3769 = vsel %vm133, %v3705, 0.0
    %v3770 = vrot.slane %v3769, 4
    %v3771 = vadd.f32 %v3769, %v3770
    %v3772 = vrot.slane %v3771, 2
    %v3773 = vadd.f32 %v3771, %v3772
    %v3774 = vrot.slane %v3773, 1
    %v3775 = vadd.f32 %v3773, %v3774
    %v3776 = vsel %vm133, %v3706, 0.0
    %v3777 = vrot.slane %v3776, 4
    %v3778 = vadd.f32 %v3776, %v3777
    %v3779 = vrot.slane %v3778, 2
    %v3780 = vadd.f32 %v3778, %v3779
    %v3781 = vrot.slane %v3780, 1
    %v3782 = vadd.f32 %v3780, %v3781
    %v3783 = vsel %vm133, %v3707, 0.0
    %v3784 = vrot.slane %v3783, 4
    %v3785 = vadd.f32 %v3783, %v3784
    %v3786 = vrot.slane %v3785, 2
    %v3787 = vadd.f32 %v3785, %v3786
    %v3788 = vrot.slane %v3787, 1
    %v3789 = vadd.f32 %v3787, %v3788
    %v3790 = vsel %vm133, %v3708, 0.0
    %v3791 = vrot.slane %v3790, 4
    %v3792 = vadd.f32 %v3790, %v3791
    %v3793 = vrot.slane %v3792, 2
    %v3794 = vadd.f32 %v3792, %v3793
    %v3795 = vrot.slane %v3794, 1
    %v3796 = vadd.f32 %v3794, %v3795
    %v3797 = vsel %vm133, %v3709, 0.0
    %v3798 = vrot.slane %v3797, 4
    %v3799 = vadd.f32 %v3797, %v3798
    %v3800 = vrot.slane %v3799, 2
    %v3801 = vadd.f32 %v3799, %v3800
    %v3802 = vrot.slane %v3801, 1
    %v3803 = vadd.f32 %v3801, %v3802
    %v3804 = vsel %vm133, %v3710, 0.0
    %v3805 = vrot.slane %v3804, 4
    %v3806 = vadd.f32 %v3804, %v3805
    %v3807 = vrot.slane %v3806, 2
    %v3808 = vadd.f32 %v3806, %v3807
    %v3809 = vrot.slane %v3808, 1
    %v3810 = vadd.f32 %v3808, %v3809
    %v3811 = vsel %vm133, %v3711, 0.0
    %v3812 = vrot.slane %v3811, 4
    %v3813 = vadd.f32 %v3811, %v3812
    %v3814 = vrot.slane %v3813, 2
    %v3815 = vadd.f32 %v3813, %v3814
    %v3816 = vrot.slane %v3815, 1
    %v3817 = vadd.f32 %v3815, %v3816
    %v3818 = vsel %vm133, %v3712, 0.0
    %v3819 = vrot.slane %v3818, 4
    %v3820 = vadd.f32 %v3818, %v3819
    %v3821 = vrot.slane %v3820, 2
    %v3822 = vadd.f32 %v3820, %v3821
    %v3823 = vrot.slane %v3822, 1
    %v3824 = vadd.f32 %v3822, %v3823
    %v3825 = vsel %vm133, %v3713, 0.0
    %v3826 = vrot.slane %v3825, 4
    %v3827 = vadd.f32 %v3825, %v3826
    %v3828 = vrot.slane %v3827, 2
    %v3829 = vadd.f32 %v3827, %v3828
    %v3830 = vrot.slane %v3829, 1
    %v3831 = vadd.f32 %v3829, %v3830
    %v3832 = vsel %vm133, %v3714, 0.0
    %v3833 = vrot.slane %v3832, 4
    %v3834 = vadd.f32 %v3832, %v3833
    %v3835 = vrot.slane %v3834, 2
    %v3836 = vadd.f32 %v3834, %v3835
    %v3837 = vrot.slane %v3836, 1
    %v3838 = vadd.f32 %v3836, %v3837
    %v3839 = vsel %vm133, %v3715, 0.0
    %v3840 = vrot.slane %v3839, 4
    %v3841 = vadd.f32 %v3839, %v3840
    %v3842 = vrot.slane %v3841, 2
    %v3843 = vadd.f32 %v3841, %v3842
    %v3844 = vrot.slane %v3843, 1
    %v3845 = vadd.f32 %v3843, %v3844
    %v3846 = vsel %vm133, %v3716, 0.0
    %v3847 = vrot.slane %v3846, 4
    %v3848 = vadd.f32 %v3846, %v3847
    %v3849 = vrot.slane %v3848, 2
    %v3850 = vadd.f32 %v3848, %v3849
    %v3851 = vrot.slane %v3850, 1
    %v3852 = vadd.f32 %v3850, %v3851
    %v3853 = vsel %vm133, %v3717, 0.0
    %v3854 = vrot.slane %v3853, 4
    %v3855 = vadd.f32 %v3853, %v3854
    %v3856 = vrot.slane %v3855, 2
    %v3857 = vadd.f32 %v3855, %v3856
    %v3858 = vrot.slane %v3857, 1
    %v3859 = vadd.f32 %v3857, %v3858
    %v3860 = vsel %vm133, %v3718, 0.0
    %v3861 = vrot.slane %v3860, 4
    %v3862 = vadd.f32 %v3860, %v3861
    %v3863 = vrot.slane %v3862, 2
    %v3864 = vadd.f32 %v3862, %v3863
    %v3865 = vrot.slane %v3864, 1
    %v3866 = vadd.f32 %v3864, %v3865
    %v3867 = vsel %vm133, %v3719, 0.0
    %v3868 = vrot.slane %v3867, 4
    %v3869 = vadd.f32 %v3867, %v3868
    %v3870 = vrot.slane %v3869, 2
    %v3871 = vadd.f32 %v3869, %v3870
    %v3872 = vrot.slane %v3871, 1
    %v3873 = vadd.f32 %v3871, %v3872
    %v3874 = vsel %vm133, %v3720, 0.0
    %v3875 = vrot.slane %v3874, 4
    %v3876 = vadd.f32 %v3874, %v3875
    %v3877 = vrot.slane %v3876, 2
    %v3878 = vadd.f32 %v3876, %v3877
    %v3879 = vrot.slane %v3878, 1
    %v3880 = vadd.f32 %v3878, %v3879
    %v3881 = vsel %vm133, %v3721, 0.0
    %v3882 = vrot.slane %v3881, 4
    %v3883 = vadd.f32 %v3881, %v3882
    %v3884 = vrot.slane %v3883, 2
    %v3885 = vadd.f32 %v3883, %v3884
    %v3886 = vrot.slane %v3885, 1
    %v3887 = vadd.f32 %v3885, %v3886
    %v3888 = vsel %vm133, %v3722, 0.0
    %v3889 = vrot.slane %v3888, 4
    %v3890 = vadd.f32 %v3888, %v3889
    %v3891 = vrot.slane %v3890, 2
    %v3892 = vadd.f32 %v3890, %v3891
    %v3893 = vrot.slane %v3892, 1
    %v3894 = vadd.f32 %v3892, %v3893
    %v3895 = vsel %vm133, %v3723, 0.0
    %v3896 = vrot.slane %v3895, 4
    %v3897 = vadd.f32 %v3895, %v3896
    %v3898 = vrot.slane %v3897, 2
    %v3899 = vadd.f32 %v3897, %v3898
    %v3900 = vrot.slane %v3899, 1
    %v3901 = vadd.f32 %v3899, %v3900
    %v3902 = vsel %vm133, %v3724, 0.0
    %v3903 = vrot.slane %v3902, 4
    %v3904 = vadd.f32 %v3902, %v3903
    %v3905 = vrot.slane %v3904, 2
    %v3906 = vadd.f32 %v3904, %v3905
    %v3907 = vrot.slane %v3906, 1
    %v3908 = vadd.f32 %v3906, %v3907
    %v3909 = vsel %vm133, %v3725, 0.0
    %v3910 = vrot.slane %v3909, 4
    %v3911 = vadd.f32 %v3909, %v3910
    %v3912 = vrot.slane %v3911, 2
    %v3913 = vadd.f32 %v3911, %v3912
    %v3914 = vrot.slane %v3913, 1
    %v3915 = vadd.f32 %v3913, %v3914
    %v3916 = vsel %vm133, %v3726, 0.0
    %v3917 = vrot.slane %v3916, 4
    %v3918 = vadd.f32 %v3916, %v3917
    %v3919 = vrot.slane %v3918, 2
    %v3920 = vadd.f32 %v3918, %v3919
    %v3921 = vrot.slane %v3920, 1
    %v3922 = vadd.f32 %v3920, %v3921
    %v3923 = vsel %vm133, %v3727, 0.0
    %v3924 = vrot.slane %v3923, 4
    %v3925 = vadd.f32 %v3923, %v3924
    %v3926 = vrot.slane %v3925, 2
    %v3927 = vadd.f32 %v3925, %v3926
    %v3928 = vrot.slane %v3927, 1
    %v3929 = vadd.f32 %v3927, %v3928
    %v3930 = vsel %vm133, %v3728, 0.0
    %v3931 = vrot.slane %v3930, 4
    %v3932 = vadd.f32 %v3930, %v3931
    %v3933 = vrot.slane %v3932, 2
    %v3934 = vadd.f32 %v3932, %v3933
    %v3935 = vrot.slane %v3934, 1
    %v3936 = vadd.f32 %v3934, %v3935
    %v3937 = vsel %vm133, %v3729, 0.0
    %v3938 = vrot.slane %v3937, 4
    %v3939 = vadd.f32 %v3937, %v3938
    %v3940 = vrot.slane %v3939, 2
    %v3941 = vadd.f32 %v3939, %v3940
    %v3942 = vrot.slane %v3941, 1
    %v3943 = vadd.f32 %v3941, %v3942
    %v3944 = vsel %vm133, %v3730, 0.0
    %v3945 = vrot.slane %v3944, 4
    %v3946 = vadd.f32 %v3944, %v3945
    %v3947 = vrot.slane %v3946, 2
    %v3948 = vadd.f32 %v3946, %v3947
    %v3949 = vrot.slane %v3948, 1
    %v3950 = vadd.f32 %v3948, %v3949
    %v3951 = vsel %vm133, %v3731, 0.0
    %v3952 = vrot.slane %v3951, 4
    %v3953 = vadd.f32 %v3951, %v3952
    %v3954 = vrot.slane %v3953, 2
    %v3955 = vadd.f32 %v3953, %v3954
    %v3956 = vrot.slane %v3955, 1
    %v3957 = vadd.f32 %v3955, %v3956
    %v3958 = vsel %vm133, %v3732, 0.0
    %v3959 = vrot.slane %v3958, 4
    %v3960 = vadd.f32 %v3958, %v3959
    %v3961 = vrot.slane %v3960, 2
    %v3962 = vadd.f32 %v3960, %v3961
    %v3963 = vrot.slane %v3962, 1
    %v3964 = vadd.f32 %v3962, %v3963
    %v3965 = vsel %vm133, %v3733, 0.0
    %v3966 = vrot.slane %v3965, 4
    %v3967 = vadd.f32 %v3965, %v3966
    %v3968 = vrot.slane %v3967, 2
    %v3969 = vadd.f32 %v3967, %v3968
    %v3970 = vrot.slane %v3969, 1
    %v3971 = vadd.f32 %v3969, %v3970
    %v3972 = vsel %vm133, %v3734, 0.0
    %v3973 = vrot.slane %v3972, 4
    %v3974 = vadd.f32 %v3972, %v3973
    %v3975 = vrot.slane %v3974, 2
    %v3976 = vadd.f32 %v3974, %v3975
    %v3977 = vrot.slane %v3976, 1
    %v3978 = vadd.f32 %v3976, %v3977
    %v3979 = vsel %vm133, %v3735, 0.0
    %v3980 = vrot.slane %v3979, 4
    %v3981 = vadd.f32 %v3979, %v3980
    %v3982 = vrot.slane %v3981, 2
    %v3983 = vadd.f32 %v3981, %v3982
    %v3984 = vrot.slane %v3983, 1
    %v3985 = vadd.f32 %v3983, %v3984
    %v3986 = vsel %vm133, %v3736, 0.0
    %v3987 = vrot.slane %v3986, 4
    %v3988 = vadd.f32 %v3986, %v3987
    %v3989 = vrot.slane %v3988, 2
    %v3990 = vadd.f32 %v3988, %v3989
    %v3991 = vrot.slane %v3990, 1
    %v3992 = vadd.f32 %v3990, %v3991
    %v3993 = vsel %vm133, %v3737, 0.0
    %v3994 = vrot.slane %v3993, 4
    %v3995 = vadd.f32 %v3993, %v3994
    %v3996 = vrot.slane %v3995, 2
    %v3997 = vadd.f32 %v3995, %v3996
    %v3998 = vrot.slane %v3997, 1
    %v3999 = vadd.f32 %v3997, %v3998
    %v4000 = vsel %vm133, %v3738, 0.0
    %v4001 = vrot.slane %v4000, 4
    %v4002 = vadd.f32 %v4000, %v4001
    %v4003 = vrot.slane %v4002, 2
    %v4004 = vadd.f32 %v4002, %v4003
    %v4005 = vrot.slane %v4004, 1
    %v4006 = vadd.f32 %v4004, %v4005
    %v4007 = vsel %vm133, %v3739, 0.0
    %v4008 = vrot.slane %v4007, 4
    %v4009 = vadd.f32 %v4007, %v4008
    %v4010 = vrot.slane %v4009, 2
    %v4011 = vadd.f32 %v4009, %v4010
    %v4012 = vrot.slane %v4011, 1
    %v4013 = vadd.f32 %v4011, %v4012
    %v4014 = vsel %vm133, %v3740, 0.0
    %v4015 = vrot.slane %v4014, 4
    %v4016 = vadd.f32 %v4014, %v4015
    %v4017 = vrot.slane %v4016, 2
    %v4018 = vadd.f32 %v4016, %v4017
    %v4019 = vrot.slane %v4018, 1
    %v4020 = vadd.f32 %v4018, %v4019
    %v4021 = vsel %vm133, %v3741, 0.0
    %v4022 = vrot.slane %v4021, 4
    %v4023 = vadd.f32 %v4021, %v4022
    %v4024 = vrot.slane %v4023, 2
    %v4025 = vadd.f32 %v4023, %v4024
    %v4026 = vrot.slane %v4025, 1
    %v4027 = vadd.f32 %v4025, %v4026
    %v4028 = vsel %vm133, %v3742, 0.0
    %v4029 = vrot.slane %v4028, 4
    %v4030 = vadd.f32 %v4028, %v4029
    %v4031 = vrot.slane %v4030, 2
    %v4032 = vadd.f32 %v4030, %v4031
    %v4033 = vrot.slane %v4032, 1
    %v4034 = vadd.f32 %v4032, %v4033
    %v4035 = vsel %vm133, %v3743, 0.0
    %v4036 = vrot.slane %v4035, 4
    %v4037 = vadd.f32 %v4035, %v4036
    %v4038 = vrot.slane %v4037, 2
    %v4039 = vadd.f32 %v4037, %v4038
    %v4040 = vrot.slane %v4039, 1
    %v4041 = vadd.f32 %v4039, %v4040
    %v4042 = vsel %vm133, %v3744, 0.0
    %v4043 = vrot.slane %v4042, 4
    %v4044 = vadd.f32 %v4042, %v4043
    %v4045 = vrot.slane %v4044, 2
    %v4046 = vadd.f32 %v4044, %v4045
    %v4047 = vrot.slane %v4046, 1
    %v4048 = vadd.f32 %v4046, %v4047
    %v4049 = vsel %vm133, %v3745, 0.0
    %v4050 = vrot.slane %v4049, 4
    %v4051 = vadd.f32 %v4049, %v4050
    %v4052 = vrot.slane %v4051, 2
    %v4053 = vadd.f32 %v4051, %v4052
    %v4054 = vrot.slane %v4053, 1
    %v4055 = vadd.f32 %v4053, %v4054
    %v4056 = vsel %vm133, %v3746, 0.0
    %v4057 = vrot.slane %v4056, 4
    %v4058 = vadd.f32 %v4056, %v4057
    %v4059 = vrot.slane %v4058, 2
    %v4060 = vadd.f32 %v4058, %v4059
    %v4061 = vrot.slane %v4060, 1
    %v4062 = vadd.f32 %v4060, %v4061
    %v4063 = vsel %vm133, %v3747, 0.0
    %v4064 = vrot.slane %v4063, 4
    %v4065 = vadd.f32 %v4063, %v4064
    %v4066 = vrot.slane %v4065, 2
    %v4067 = vadd.f32 %v4065, %v4066
    %v4068 = vrot.slane %v4067, 1
    %v4069 = vadd.f32 %v4067, %v4068
    %v4070 = vsel %vm133, %v3748, 0.0
    %v4071 = vrot.slane %v4070, 4
    %v4072 = vadd.f32 %v4070, %v4071
    %v4073 = vrot.slane %v4072, 2
    %v4074 = vadd.f32 %v4072, %v4073
    %v4075 = vrot.slane %v4074, 1
    %v4076 = vadd.f32 %v4074, %v4075
    %v4077 = vsel %vm133, %v3749, 0.0
    %v4078 = vrot.slane %v4077, 4
    %v4079 = vadd.f32 %v4077, %v4078
    %v4080 = vrot.slane %v4079, 2
    %v4081 = vadd.f32 %v4079, %v4080
    %v4082 = vrot.slane %v4081, 1
    %v4083 = vadd.f32 %v4081, %v4082
    %v4084 = vsel %vm133, %v3750, 0.0
    %v4085 = vrot.slane %v4084, 4
    %v4086 = vadd.f32 %v4084, %v4085
    %v4087 = vrot.slane %v4086, 2
    %v4088 = vadd.f32 %v4086, %v4087
    %v4089 = vrot.slane %v4088, 1
    %v4090 = vadd.f32 %v4088, %v4089
    %v4091 = vsel %vm133, %v3751, 0.0
    %v4092 = vrot.slane %v4091, 4
    %v4093 = vadd.f32 %v4091, %v4092
    %v4094 = vrot.slane %v4093, 2
    %v4095 = vadd.f32 %v4093, %v4094
    %v4096 = vrot.slane %v4095, 1
    %v4097 = vadd.f32 %v4095, %v4096
    %v4098 = vsel %vm133, %v3752, 0.0
    %v4099 = vrot.slane %v4098, 4
    %v4100 = vadd.f32 %v4098, %v4099
    %v4101 = vrot.slane %v4100, 2
    %v4102 = vadd.f32 %v4100, %v4101
    %v4103 = vrot.slane %v4102, 1
    %v4104 = vadd.f32 %v4102, %v4103
    %v4105 = vsel %vm133, %v3753, 0.0
    %v4106 = vrot.slane %v4105, 4
    %v4107 = vadd.f32 %v4105, %v4106
    %v4108 = vrot.slane %v4107, 2
    %v4109 = vadd.f32 %v4107, %v4108
    %v4110 = vrot.slane %v4109, 1
    %v4111 = vadd.f32 %v4109, %v4110
    %v4112 = vsel %vm133, %v3754, 0.0
    %v4113 = vrot.slane %v4112, 4
    %v4114 = vadd.f32 %v4112, %v4113
    %v4115 = vrot.slane %v4114, 2
    %v4116 = vadd.f32 %v4114, %v4115
    %v4117 = vrot.slane %v4116, 1
    %v4118 = vadd.f32 %v4116, %v4117
    %v4119 = vsel %vm133, %v3755, 0.0
    %v4120 = vrot.slane %v4119, 4
    %v4121 = vadd.f32 %v4119, %v4120
    %v4122 = vrot.slane %v4121, 2
    %v4123 = vadd.f32 %v4121, %v4122
    %v4124 = vrot.slane %v4123, 1
    %v4125 = vadd.f32 %v4123, %v4124
    %v4126 = vsel %vm133, %v3756, 0.0
    %v4127 = vrot.slane %v4126, 4
    %v4128 = vadd.f32 %v4126, %v4127
    %v4129 = vrot.slane %v4128, 2
    %v4130 = vadd.f32 %v4128, %v4129
    %v4131 = vrot.slane %v4130, 1
    %v4132 = vadd.f32 %v4130, %v4131
    %v4133 = vsel %vm133, %v3757, 0.0
    %v4134 = vrot.slane %v4133, 4
    %v4135 = vadd.f32 %v4133, %v4134
    %v4136 = vrot.slane %v4135, 2
    %v4137 = vadd.f32 %v4135, %v4136
    %v4138 = vrot.slane %v4137, 1
    %v4139 = vadd.f32 %v4137, %v4138
    %v4140 = vsel %vm133, %v3758, 0.0
    %v4141 = vrot.slane %v4140, 4
    %v4142 = vadd.f32 %v4140, %v4141
    %v4143 = vrot.slane %v4142, 2
    %v4144 = vadd.f32 %v4142, %v4143
    %v4145 = vrot.slane %v4144, 1
    %v4146 = vadd.f32 %v4144, %v4145
    %v4147 = vsel %vm133, %v3759, 0.0
    %v4148 = vrot.slane %v4147, 4
    %v4149 = vadd.f32 %v4147, %v4148
    %v4150 = vrot.slane %v4149, 2
    %v4151 = vadd.f32 %v4149, %v4150
    %v4152 = vrot.slane %v4151, 1
    %v4153 = vadd.f32 %v4151, %v4152
    %v4154 = vsel %vm133, %v3760, 0.0
    %v4155 = vrot.slane %v4154, 4
    %v4156 = vadd.f32 %v4154, %v4155
    %v4157 = vrot.slane %v4156, 2
    %v4158 = vadd.f32 %v4156, %v4157
    %v4159 = vrot.slane %v4158, 1
    %v4160 = vadd.f32 %v4158, %v4159
    %v4161 = vsel %vm133, %v3761, 0.0
    %v4162 = vrot.slane %v4161, 4
    %v4163 = vadd.f32 %v4161, %v4162
    %v4164 = vrot.slane %v4163, 2
    %v4165 = vadd.f32 %v4163, %v4164
    %v4166 = vrot.slane %v4165, 1
    %v4167 = vadd.f32 %v4165, %v4166
    %v4168 = vsel %vm133, %v3762, 0.0
    %v4169 = vrot.slane %v4168, 4
    %v4170 = vadd.f32 %v4168, %v4169
    %v4171 = vrot.slane %v4170, 2
    %v4172 = vadd.f32 %v4170, %v4171
    %v4173 = vrot.slane %v4172, 1
    %v4174 = vadd.f32 %v4172, %v4173
    %v4175 = vsel %vm133, %v3763, 0.0
    %v4176 = vrot.slane %v4175, 4
    %v4177 = vadd.f32 %v4175, %v4176
    %v4178 = vrot.slane %v4177, 2
    %v4179 = vadd.f32 %v4177, %v4178
    %v4180 = vrot.slane %v4179, 1
    %v4181 = vadd.f32 %v4179, %v4180
    %v4182 = vsel %vm133, %v3764, 0.0
    %v4183 = vrot.slane %v4182, 4
    %v4184 = vadd.f32 %v4182, %v4183
    %v4185 = vrot.slane %v4184, 2
    %v4186 = vadd.f32 %v4184, %v4185
    %v4187 = vrot.slane %v4186, 1
    %v4188 = vadd.f32 %v4186, %v4187
    %v4189 = vsel %vm133, %v3765, 0.0
    %v4190 = vrot.slane %v4189, 4
    %v4191 = vadd.f32 %v4189, %v4190
    %v4192 = vrot.slane %v4191, 2
    %v4193 = vadd.f32 %v4191, %v4192
    %v4194 = vrot.slane %v4193, 1
    %v4195 = vadd.f32 %v4193, %v4194
    %v4196 = vsel %vm133, %v3766, 0.0
    %v4197 = vrot.slane %v4196, 4
    %v4198 = vadd.f32 %v4196, %v4197
    %v4199 = vrot.slane %v4198, 2
    %v4200 = vadd.f32 %v4198, %v4199
    %v4201 = vrot.slane %v4200, 1
    %v4202 = vadd.f32 %v4200, %v4201
    %v4203 = vsel %vm133, %v3767, 0.0
    %v4204 = vrot.slane %v4203, 4
    %v4205 = vadd.f32 %v4203, %v4204
    %v4206 = vrot.slane %v4205, 2
    %v4207 = vadd.f32 %v4205, %v4206
    %v4208 = vrot.slane %v4207, 1
    %v4209 = vadd.f32 %v4207, %v4208
    %v4210 = vsel %vm133, %v3768, 0.0
    %v4211 = vrot.slane %v4210, 4
    %v4212 = vadd.f32 %v4210, %v4211
    %v4213 = vrot.slane %v4212, 2
    %v4214 = vadd.f32 %v4212, %v4213
    %v4215 = vrot.slane %v4214, 1
    %v4216 = vadd.f32 %v4214, %v4215
    %vm4281 = vcmask 1041409
    %v4282 = vsel %vm4281, %v3782, %v3775
    %vm4283 = vcmask 1042434
    %v4284 = vsel %vm4283, %v3789, %v4282
    %vm4285 = vcmask 1043459
    %v4286 = vsel %vm4285, %v3796, %v4284
    %vm4287 = vcmask 1044484
    %v4288 = vsel %vm4287, %v3803, %v4286
    %vm4289 = vcmask 1045509
    %v4290 = vsel %vm4289, %v3810, %v4288
    %vm4291 = vcmask 1046534
    %v4292 = vsel %vm4291, %v3817, %v4290
    %vm4293 = vcmask 1047559
    %v4294 = vsel %vm4293, %v3824, %v4292
    %v4295 = vsel %vm4281, %v3838, %v3831
    %v4296 = vsel %vm4283, %v3845, %v4295
    %v4297 = vsel %vm4285, %v3852, %v4296
    %v4298 = vsel %vm4287, %v3859, %v4297
    %v4299 = vsel %vm4289, %v3866, %v4298
    %v4300 = vsel %vm4291, %v3873, %v4299
    %v4301 = vsel %vm4293, %v3880, %v4300
    %v4302 = vsel %vm4281, %v3894, %v3887
    %v4303 = vsel %vm4283, %v3901, %v4302
    %v4304 = vsel %vm4285, %v3908, %v4303
    %v4305 = vsel %vm4287, %v3915, %v4304
    %v4306 = vsel %vm4289, %v3922, %v4305
    %v4307 = vsel %vm4291, %v3929, %v4306
    %v4308 = vsel %vm4293, %v3936, %v4307
    %v4309 = vsel %vm4281, %v3950, %v3943
    %v4310 = vsel %vm4283, %v3957, %v4309
    %v4311 = vsel %vm4285, %v3964, %v4310
    %v4312 = vsel %vm4287, %v3971, %v4311
    %v4313 = vsel %vm4289, %v3978, %v4312
    %v4314 = vsel %vm4291, %v3985, %v4313
    %v4315 = vsel %vm4293, %v3992, %v4314
    %v4316 = vsel %vm4281, %v4006, %v3999
    %v4317 = vsel %vm4283, %v4013, %v4316
    %v4318 = vsel %vm4285, %v4020, %v4317
    %v4319 = vsel %vm4287, %v4027, %v4318
    %v4320 = vsel %vm4289, %v4034, %v4319
    %v4321 = vsel %vm4291, %v4041, %v4320
    %v4322 = vsel %vm4293, %v4048, %v4321
    %v4323 = vsel %vm4281, %v4062, %v4055
    %v4324 = vsel %vm4283, %v4069, %v4323
    %v4325 = vsel %vm4285, %v4076, %v4324
    %v4326 = vsel %vm4287, %v4083, %v4325
    %v4327 = vsel %vm4289, %v4090, %v4326
    %v4328 = vsel %vm4291, %v4097, %v4327
    %v4329 = vsel %vm4293, %v4104, %v4328
    %v4330 = vsel %vm4281, %v4118, %v4111
    %v4331 = vsel %vm4283, %v4125, %v4330
    %v4332 = vsel %vm4285, %v4132, %v4331
    %v4333 = vsel %vm4287, %v4139, %v4332
    %v4334 = vsel %vm4289, %v4146, %v4333
    %v4335 = vsel %vm4291, %v4153, %v4334
    %v4336 = vsel %vm4293, %v4160, %v4335
    %v4337 = vsel %vm4281, %v4174, %v4167
    %v4338 = vsel %vm4283, %v4181, %v4337
    %v4339 = vsel %vm4285, %v4188, %v4338
    %v4340 = vsel %vm4287, %v4195, %v4339
    %v4341 = vsel %vm4289, %v4202, %v4340
    %v4342 = vsel %vm4291, %v4209, %v4341
    %v4343 = vsel %vm4293, %v4216, %v4342
    %4352 = vst.msk [vmem:[#allocation2] sm:$0xff] %vm133, %v4294
    %4353 = vst.msk [vmem:[#allocation2 + $0x8] sm:$0xff] %vm133, %v4301
    %4354 = vst.msk [vmem:[#allocation2 + $0x10] sm:$0xff] %vm133, %v4308
    %4355 = vst.msk [vmem:[#allocation2 + $0x18] sm:$0xff] %vm133, %v4315
    %4356 = vst.msk [vmem:[#allocation2 + $0x20] sm:$0xff] %vm133, %v4322
    %4357 = vst.msk [vmem:[#allocation2 + $0x28] sm:$0xff] %vm133, %v4329
    %4358 = vst.msk [vmem:[#allocation2 + $0x30] sm:$0xff] %vm133, %v4336
    %4359 = vst.msk [vmem:[#allocation2 + $0x38] sm:$0xff] %vm133, %v4343
    %4360 = vset.pattern.permute.xlu0 1
    %4361 = vperm.xlu0 %4360, %v3257
    %v4362 = vpop.permute.xlu0 %4361
    %4364 = vset.pattern.permute.xlu0 1
    %4365 = vperm.xlu0 %4364, %v3258
    %v4366 = vpop.permute.xlu0 %4365
    %4368 = vset.pattern.permute.xlu0 1
    %4369 = vperm.xlu0 %4368, %v3259
    %v4370 = vpop.permute.xlu0 %4369
    %4372 = vset.pattern.permute.xlu0 1
    %4373 = vperm.xlu0 %4372, %v3260
    %v4374 = vpop.permute.xlu0 %4373
    %4376 = vset.pattern.permute.xlu0 1
    %4377 = vperm.xlu0 %4376, %v3261
    %v4378 = vpop.permute.xlu0 %4377
    %4380 = vset.pattern.permute.xlu0 1
    %4381 = vperm.xlu0 %4380, %v3262
    %v4382 = vpop.permute.xlu0 %4381
    %4384 = vset.pattern.permute.xlu0 1
    %4385 = vperm.xlu0 %4384, %v3263
    %v4386 = vpop.permute.xlu0 %4385
    %4388 = vset.pattern.permute.xlu0 1
    %4389 = vperm.xlu0 %4388, %v3264
    %v4390 = vpop.permute.xlu0 %4389
    %4392 = vset.pattern.permute.xlu0 1
    %4393 = vperm.xlu0 %4392, %v3265
    %v4394 = vpop.permute.xlu0 %4393
    %4396 = vset.pattern.permute.xlu0 1
    %4397 = vperm.xlu0 %4396, %v3266
    %v4398 = vpop.permute.xlu0 %4397
    %4400 = vset.pattern.permute.xlu0 1
    %4401 = vperm.xlu0 %4400, %v3267
    %v4402 = vpop.permute.xlu0 %4401
    %4404 = vset.pattern.permute.xlu0 1
    %4405 = vperm.xlu0 %4404, %v3268
    %v4406 = vpop.permute.xlu0 %4405
    %4408 = vset.pattern.permute.xlu0 1
    %4409 = vperm.xlu0 %4408, %v3269
    %v4410 = vpop.permute.xlu0 %4409
    %4412 = vset.pattern.permute.xlu0 1
    %4413 = vperm.xlu0 %4412, %v3270
    %v4414 = vpop.permute.xlu0 %4413
    %4416 = vset.pattern.permute.xlu0 1
    %4417 = vperm.xlu0 %4416, %v3271
    %v4418 = vpop.permute.xlu0 %4417
    %4420 = vset.pattern.permute.xlu0 1
    %4421 = vperm.xlu0 %4420, %v3272
    %v4422 = vpop.permute.xlu0 %4421
    %4424 = vset.pattern.permute.xlu0 1
    %4425 = vperm.xlu0 %4424, %v3273
    %v4426 = vpop.permute.xlu0 %4425
    %4428 = vset.pattern.permute.xlu0 1
    %4429 = vperm.xlu0 %4428, %v3274
    %v4430 = vpop.permute.xlu0 %4429
    %4432 = vset.pattern.permute.xlu0 1
    %4433 = vperm.xlu0 %4432, %v3275
    %v4434 = vpop.permute.xlu0 %4433
    %4436 = vset.pattern.permute.xlu0 1
    %4437 = vperm.xlu0 %4436, %v3276
    %v4438 = vpop.permute.xlu0 %4437
    %4440 = vset.pattern.permute.xlu0 1
    %4441 = vperm.xlu0 %4440, %v3277
    %v4442 = vpop.permute.xlu0 %4441
    %4444 = vset.pattern.permute.xlu0 1
    %4445 = vperm.xlu0 %4444, %v3278
    %v4446 = vpop.permute.xlu0 %4445
    %4448 = vset.pattern.permute.xlu0 1
    %4449 = vperm.xlu0 %4448, %v3279
    %v4450 = vpop.permute.xlu0 %4449
    %4452 = vset.pattern.permute.xlu0 1
    %4453 = vperm.xlu0 %4452, %v3280
    %v4454 = vpop.permute.xlu0 %4453
    %4456 = vset.pattern.permute.xlu0 1
    %4457 = vperm.xlu0 %4456, %v3281
    %v4458 = vpop.permute.xlu0 %4457
    %4460 = vset.pattern.permute.xlu0 1
    %4461 = vperm.xlu0 %4460, %v3282
    %v4462 = vpop.permute.xlu0 %4461
    %4464 = vset.pattern.permute.xlu0 1
    %4465 = vperm.xlu0 %4464, %v3283
    %v4466 = vpop.permute.xlu0 %4465
    %4468 = vset.pattern.permute.xlu0 1
    %4469 = vperm.xlu0 %4468, %v3284
    %v4470 = vpop.permute.xlu0 %4469
    %4472 = vset.pattern.permute.xlu0 1
    %4473 = vperm.xlu0 %4472, %v3285
    %v4474 = vpop.permute.xlu0 %4473
    %4476 = vset.pattern.permute.xlu0 1
    %4477 = vperm.xlu0 %4476, %v3286
    %v4478 = vpop.permute.xlu0 %4477
    %4480 = vset.pattern.permute.xlu0 1
    %4481 = vperm.xlu0 %4480, %v3287
    %v4482 = vpop.permute.xlu0 %4481
    %4484 = vset.pattern.permute.xlu0 1
    %4485 = vperm.xlu0 %4484, %v3288
    %v4486 = vpop.permute.xlu0 %4485
    %4488 = vset.pattern.permute.xlu0 1
    %4489 = vperm.xlu0 %4488, %v3289
    %v4490 = vpop.permute.xlu0 %4489
    %4492 = vset.pattern.permute.xlu0 1
    %4493 = vperm.xlu0 %4492, %v3290
    %v4494 = vpop.permute.xlu0 %4493
    %4496 = vset.pattern.permute.xlu0 1
    %4497 = vperm.xlu0 %4496, %v3291
    %v4498 = vpop.permute.xlu0 %4497
    %4500 = vset.pattern.permute.xlu0 1
    %4501 = vperm.xlu0 %4500, %v3292
    %v4502 = vpop.permute.xlu0 %4501
    %4504 = vset.pattern.permute.xlu0 1
    %4505 = vperm.xlu0 %4504, %v3293
    %v4506 = vpop.permute.xlu0 %4505
    %4508 = vset.pattern.permute.xlu0 1
    %4509 = vperm.xlu0 %4508, %v3294
    %v4510 = vpop.permute.xlu0 %4509
    %4512 = vset.pattern.permute.xlu0 1
    %4513 = vperm.xlu0 %4512, %v3295
    %v4514 = vpop.permute.xlu0 %4513
    %4516 = vset.pattern.permute.xlu0 1
    %4517 = vperm.xlu0 %4516, %v3296
    %v4518 = vpop.permute.xlu0 %4517
    %4520 = vset.pattern.permute.xlu0 1
    %4521 = vperm.xlu0 %4520, %v3297
    %v4522 = vpop.permute.xlu0 %4521
    %4524 = vset.pattern.permute.xlu0 1
    %4525 = vperm.xlu0 %4524, %v3298
    %v4526 = vpop.permute.xlu0 %4525
    %4528 = vset.pattern.permute.xlu0 1
    %4529 = vperm.xlu0 %4528, %v3299
    %v4530 = vpop.permute.xlu0 %4529
    %4532 = vset.pattern.permute.xlu0 1
    %4533 = vperm.xlu0 %4532, %v3300
    %v4534 = vpop.permute.xlu0 %4533
    %4536 = vset.pattern.permute.xlu0 1
    %4537 = vperm.xlu0 %4536, %v3301
    %v4538 = vpop.permute.xlu0 %4537
    %4540 = vset.pattern.permute.xlu0 1
    %4541 = vperm.xlu0 %4540, %v3302
    %v4542 = vpop.permute.xlu0 %4541
    %4544 = vset.pattern.permute.xlu0 1
    %4545 = vperm.xlu0 %4544, %v3303
    %v4546 = vpop.permute.xlu0 %4545
    %4548 = vset.pattern.permute.xlu0 1
    %4549 = vperm.xlu0 %4548, %v3304
    %v4550 = vpop.permute.xlu0 %4549
    %4552 = vset.pattern.permute.xlu0 1
    %4553 = vperm.xlu0 %4552, %v3305
    %v4554 = vpop.permute.xlu0 %4553
    %4556 = vset.pattern.permute.xlu0 1
    %4557 = vperm.xlu0 %4556, %v3306
    %v4558 = vpop.permute.xlu0 %4557
    %4560 = vset.pattern.permute.xlu0 1
    %4561 = vperm.xlu0 %4560, %v3307
    %v4562 = vpop.permute.xlu0 %4561
    %4564 = vset.pattern.permute.xlu0 1
    %4565 = vperm.xlu0 %4564, %v3308
    %v4566 = vpop.permute.xlu0 %4565
    %4568 = vset.pattern.permute.xlu0 1
    %4569 = vperm.xlu0 %4568, %v3309
    %v4570 = vpop.permute.xlu0 %4569
    %4572 = vset.pattern.permute.xlu0 1
    %4573 = vperm.xlu0 %4572, %v3310
    %v4574 = vpop.permute.xlu0 %4573
    %4576 = vset.pattern.permute.xlu0 1
    %4577 = vperm.xlu0 %4576, %v3311
    %v4578 = vpop.permute.xlu0 %4577
    %4580 = vset.pattern.permute.xlu0 1
    %4581 = vperm.xlu0 %4580, %v3312
    %v4582 = vpop.permute.xlu0 %4581
    %4584 = vset.pattern.permute.xlu0 1
    %4585 = vperm.xlu0 %4584, %v3313
    %v4586 = vpop.permute.xlu0 %4585
    %4588 = vset.pattern.permute.xlu0 1
    %4589 = vperm.xlu0 %4588, %v3314
    %v4590 = vpop.permute.xlu0 %4589
    %4592 = vset.pattern.permute.xlu0 1
    %4593 = vperm.xlu0 %4592, %v3315
    %v4594 = vpop.permute.xlu0 %4593
    %4596 = vset.pattern.permute.xlu0 1
    %4597 = vperm.xlu0 %4596, %v3316
    %v4598 = vpop.permute.xlu0 %4597
    %4600 = vset.pattern.permute.xlu0 1
    %4601 = vperm.xlu0 %4600, %v3317
    %v4602 = vpop.permute.xlu0 %4601
    %4604 = vset.pattern.permute.xlu0 1
    %4605 = vperm.xlu0 %4604, %v3318
    %v4606 = vpop.permute.xlu0 %4605
    %4608 = vset.pattern.permute.xlu0 1
    %4609 = vperm.xlu0 %4608, %v3319
    %v4610 = vpop.permute.xlu0 %4609
    %4612 = vset.pattern.permute.xlu0 1
    %4613 = vperm.xlu0 %4612, %v3320
    %v4614 = vpop.permute.xlu0 %4613
    %v4616 = vmul.f32 %v4362, %v21
    %v4617 = vmul.f32 %v4366, %v22
    %v4618 = vmul.f32 %v4370, %v23
    %v4619 = vmul.f32 %v4374, %v24
    %v4620 = vmul.f32 %v4378, %v25
    %v4621 = vmul.f32 %v4382, %v26
    %v4622 = vmul.f32 %v4386, %v27
    %v4623 = vmul.f32 %v4390, %v28
    %v4624 = vmul.f32 %v4394, %v29
    %v4625 = vmul.f32 %v4398, %v30
    %v4626 = vmul.f32 %v4402, %v31
    %v4627 = vmul.f32 %v4406, %v32
    %v4628 = vmul.f32 %v4410, %v33
    %v4629 = vmul.f32 %v4414, %v34
    %v4630 = vmul.f32 %v4418, %v35
    %v4631 = vmul.f32 %v4422, %v36
    %v4632 = vmul.f32 %v4426, %v37
    %v4633 = vmul.f32 %v4430, %v38
    %v4634 = vmul.f32 %v4434, %v39
    %v4635 = vmul.f32 %v4438, %v40
    %v4636 = vmul.f32 %v4442, %v41
    %v4637 = vmul.f32 %v4446, %v42
    %v4638 = vmul.f32 %v4450, %v43
    %v4639 = vmul.f32 %v4454, %v44
    %v4640 = vmul.f32 %v4458, %v45
    %v4641 = vmul.f32 %v4462, %v46
    %v4642 = vmul.f32 %v4466, %v47
    %v4643 = vmul.f32 %v4470, %v48
    %v4644 = vmul.f32 %v4474, %v49
    %v4645 = vmul.f32 %v4478, %v50
    %v4646 = vmul.f32 %v4482, %v51
    %v4647 = vmul.f32 %v4486, %v52
    %v4648 = vmul.f32 %v4490, %v53
    %v4649 = vmul.f32 %v4494, %v54
    %v4650 = vmul.f32 %v4498, %v55
    %v4651 = vmul.f32 %v4502, %v56
    %v4652 = vmul.f32 %v4506, %v57
    %v4653 = vmul.f32 %v4510, %v58
    %v4654 = vmul.f32 %v4514, %v59
    %v4655 = vmul.f32 %v4518, %v60
    %v4656 = vmul.f32 %v4522, %v61
    %v4657 = vmul.f32 %v4526, %v62
    %v4658 = vmul.f32 %v4530, %v63
    %v4659 = vmul.f32 %v4534, %v64
    %v4660 = vmul.f32 %v4538, %v65
    %v4661 = vmul.f32 %v4542, %v66
    %v4662 = vmul.f32 %v4546, %v67
    %v4663 = vmul.f32 %v4550, %v68
    %v4664 = vmul.f32 %v4554, %v69
    %v4665 = vmul.f32 %v4558, %v70
    %v4666 = vmul.f32 %v4562, %v71
    %v4667 = vmul.f32 %v4566, %v72
    %v4668 = vmul.f32 %v4570, %v73
    %v4669 = vmul.f32 %v4574, %v74
    %v4670 = vmul.f32 %v4578, %v75
    %v4671 = vmul.f32 %v4582, %v76
    %v4672 = vmul.f32 %v4586, %v77
    %v4673 = vmul.f32 %v4590, %v78
    %v4674 = vmul.f32 %v4594, %v79
    %v4675 = vmul.f32 %v4598, %v80
    %v4676 = vmul.f32 %v4602, %v81
    %v4677 = vmul.f32 %v4606, %v82
    %v4678 = vmul.f32 %v4610, %v83
    %v4679 = vmul.f32 %v4614, %v84
    %v4680 = vsel %vm133, %v4616, 0.0
    %v4681 = vrot.slane %v4680, 4
    %v4682 = vadd.f32 %v4680, %v4681
    %v4683 = vrot.slane %v4682, 2
    %v4684 = vadd.f32 %v4682, %v4683
    %v4685 = vrot.slane %v4684, 1
    %v4686 = vadd.f32 %v4684, %v4685
    %v4687 = vsel %vm133, %v4617, 0.0
    %v4688 = vrot.slane %v4687, 4
    %v4689 = vadd.f32 %v4687, %v4688
    %v4690 = vrot.slane %v4689, 2
    %v4691 = vadd.f32 %v4689, %v4690
    %v4692 = vrot.slane %v4691, 1
    %v4693 = vadd.f32 %v4691, %v4692
    %v4694 = vsel %vm133, %v4618, 0.0
    %v4695 = vrot.slane %v4694, 4
    %v4696 = vadd.f32 %v4694, %v4695
    %v4697 = vrot.slane %v4696, 2
    %v4698 = vadd.f32 %v4696, %v4697
    %v4699 = vrot.slane %v4698, 1
    %v4700 = vadd.f32 %v4698, %v4699
    %v4701 = vsel %vm133, %v4619, 0.0
    %v4702 = vrot.slane %v4701, 4
    %v4703 = vadd.f32 %v4701, %v4702
    %v4704 = vrot.slane %v4703, 2
    %v4705 = vadd.f32 %v4703, %v4704
    %v4706 = vrot.slane %v4705, 1
    %v4707 = vadd.f32 %v4705, %v4706
    %v4708 = vsel %vm133, %v4620, 0.0
    %v4709 = vrot.slane %v4708, 4
    %v4710 = vadd.f32 %v4708, %v4709
    %v4711 = vrot.slane %v4710, 2
    %v4712 = vadd.f32 %v4710, %v4711
    %v4713 = vrot.slane %v4712, 1
    %v4714 = vadd.f32 %v4712, %v4713
    %v4715 = vsel %vm133, %v4621, 0.0
    %v4716 = vrot.slane %v4715, 4
    %v4717 = vadd.f32 %v4715, %v4716
    %v4718 = vrot.slane %v4717, 2
    %v4719 = vadd.f32 %v4717, %v4718
    %v4720 = vrot.slane %v4719, 1
    %v4721 = vadd.f32 %v4719, %v4720
    %v4722 = vsel %vm133, %v4622, 0.0
    %v4723 = vrot.slane %v4722, 4
    %v4724 = vadd.f32 %v4722, %v4723
    %v4725 = vrot.slane %v4724, 2
    %v4726 = vadd.f32 %v4724, %v4725
    %v4727 = vrot.slane %v4726, 1
    %v4728 = vadd.f32 %v4726, %v4727
    %v4729 = vsel %vm133, %v4623, 0.0
    %v4730 = vrot.slane %v4729, 4
    %v4731 = vadd.f32 %v4729, %v4730
    %v4732 = vrot.slane %v4731, 2
    %v4733 = vadd.f32 %v4731, %v4732
    %v4734 = vrot.slane %v4733, 1
    %v4735 = vadd.f32 %v4733, %v4734
    %v4736 = vsel %vm133, %v4624, 0.0
    %v4737 = vrot.slane %v4736, 4
    %v4738 = vadd.f32 %v4736, %v4737
    %v4739 = vrot.slane %v4738, 2
    %v4740 = vadd.f32 %v4738, %v4739
    %v4741 = vrot.slane %v4740, 1
    %v4742 = vadd.f32 %v4740, %v4741
    %v4743 = vsel %vm133, %v4625, 0.0
    %v4744 = vrot.slane %v4743, 4
    %v4745 = vadd.f32 %v4743, %v4744
    %v4746 = vrot.slane %v4745, 2
    %v4747 = vadd.f32 %v4745, %v4746
    %v4748 = vrot.slane %v4747, 1
    %v4749 = vadd.f32 %v4747, %v4748
    %v4750 = vsel %vm133, %v4626, 0.0
    %v4751 = vrot.slane %v4750, 4
    %v4752 = vadd.f32 %v4750, %v4751
    %v4753 = vrot.slane %v4752, 2
    %v4754 = vadd.f32 %v4752, %v4753
    %v4755 = vrot.slane %v4754, 1
    %v4756 = vadd.f32 %v4754, %v4755
    %v4757 = vsel %vm133, %v4627, 0.0
    %v4758 = vrot.slane %v4757, 4
    %v4759 = vadd.f32 %v4757, %v4758
    %v4760 = vrot.slane %v4759, 2
    %v4761 = vadd.f32 %v4759, %v4760
    %v4762 = vrot.slane %v4761, 1
    %v4763 = vadd.f32 %v4761, %v4762
    %v4764 = vsel %vm133, %v4628, 0.0
    %v4765 = vrot.slane %v4764, 4
    %v4766 = vadd.f32 %v4764, %v4765
    %v4767 = vrot.slane %v4766, 2
    %v4768 = vadd.f32 %v4766, %v4767
    %v4769 = vrot.slane %v4768, 1
    %v4770 = vadd.f32 %v4768, %v4769
    %v4771 = vsel %vm133, %v4629, 0.0
    %v4772 = vrot.slane %v4771, 4
    %v4773 = vadd.f32 %v4771, %v4772
    %v4774 = vrot.slane %v4773, 2
    %v4775 = vadd.f32 %v4773, %v4774
    %v4776 = vrot.slane %v4775, 1
    %v4777 = vadd.f32 %v4775, %v4776
    %v4778 = vsel %vm133, %v4630, 0.0
    %v4779 = vrot.slane %v4778, 4
    %v4780 = vadd.f32 %v4778, %v4779
    %v4781 = vrot.slane %v4780, 2
    %v4782 = vadd.f32 %v4780, %v4781
    %v4783 = vrot.slane %v4782, 1
    %v4784 = vadd.f32 %v4782, %v4783
    %v4785 = vsel %vm133, %v4631, 0.0
    %v4786 = vrot.slane %v4785, 4
    %v4787 = vadd.f32 %v4785, %v4786
    %v4788 = vrot.slane %v4787, 2
    %v4789 = vadd.f32 %v4787, %v4788
    %v4790 = vrot.slane %v4789, 1
    %v4791 = vadd.f32 %v4789, %v4790
    %v4792 = vsel %vm133, %v4632, 0.0
    %v4793 = vrot.slane %v4792, 4
    %v4794 = vadd.f32 %v4792, %v4793
    %v4795 = vrot.slane %v4794, 2
    %v4796 = vadd.f32 %v4794, %v4795
    %v4797 = vrot.slane %v4796, 1
    %v4798 = vadd.f32 %v4796, %v4797
    %v4799 = vsel %vm133, %v4633, 0.0
    %v4800 = vrot.slane %v4799, 4
    %v4801 = vadd.f32 %v4799, %v4800
    %v4802 = vrot.slane %v4801, 2
    %v4803 = vadd.f32 %v4801, %v4802
    %v4804 = vrot.slane %v4803, 1
    %v4805 = vadd.f32 %v4803, %v4804
    %v4806 = vsel %vm133, %v4634, 0.0
    %v4807 = vrot.slane %v4806, 4
    %v4808 = vadd.f32 %v4806, %v4807
    %v4809 = vrot.slane %v4808, 2
    %v4810 = vadd.f32 %v4808, %v4809
    %v4811 = vrot.slane %v4810, 1
    %v4812 = vadd.f32 %v4810, %v4811
    %v4813 = vsel %vm133, %v4635, 0.0
    %v4814 = vrot.slane %v4813, 4
    %v4815 = vadd.f32 %v4813, %v4814
    %v4816 = vrot.slane %v4815, 2
    %v4817 = vadd.f32 %v4815, %v4816
    %v4818 = vrot.slane %v4817, 1
    %v4819 = vadd.f32 %v4817, %v4818
    %v4820 = vsel %vm133, %v4636, 0.0
    %v4821 = vrot.slane %v4820, 4
    %v4822 = vadd.f32 %v4820, %v4821
    %v4823 = vrot.slane %v4822, 2
    %v4824 = vadd.f32 %v4822, %v4823
    %v4825 = vrot.slane %v4824, 1
    %v4826 = vadd.f32 %v4824, %v4825
    %v4827 = vsel %vm133, %v4637, 0.0
    %v4828 = vrot.slane %v4827, 4
    %v4829 = vadd.f32 %v4827, %v4828
    %v4830 = vrot.slane %v4829, 2
    %v4831 = vadd.f32 %v4829, %v4830
    %v4832 = vrot.slane %v4831, 1
    %v4833 = vadd.f32 %v4831, %v4832
    %v4834 = vsel %vm133, %v4638, 0.0
    %v4835 = vrot.slane %v4834, 4
    %v4836 = vadd.f32 %v4834, %v4835
    %v4837 = vrot.slane %v4836, 2
    %v4838 = vadd.f32 %v4836, %v4837
    %v4839 = vrot.slane %v4838, 1
    %v4840 = vadd.f32 %v4838, %v4839
    %v4841 = vsel %vm133, %v4639, 0.0
    %v4842 = vrot.slane %v4841, 4
    %v4843 = vadd.f32 %v4841, %v4842
    %v4844 = vrot.slane %v4843, 2
    %v4845 = vadd.f32 %v4843, %v4844
    %v4846 = vrot.slane %v4845, 1
    %v4847 = vadd.f32 %v4845, %v4846
    %v4848 = vsel %vm133, %v4640, 0.0
    %v4849 = vrot.slane %v4848, 4
    %v4850 = vadd.f32 %v4848, %v4849
    %v4851 = vrot.slane %v4850, 2
    %v4852 = vadd.f32 %v4850, %v4851
    %v4853 = vrot.slane %v4852, 1
    %v4854 = vadd.f32 %v4852, %v4853
    %v4855 = vsel %vm133, %v4641, 0.0
    %v4856 = vrot.slane %v4855, 4
    %v4857 = vadd.f32 %v4855, %v4856
    %v4858 = vrot.slane %v4857, 2
    %v4859 = vadd.f32 %v4857, %v4858
    %v4860 = vrot.slane %v4859, 1
    %v4861 = vadd.f32 %v4859, %v4860
    %v4862 = vsel %vm133, %v4642, 0.0
    %v4863 = vrot.slane %v4862, 4
    %v4864 = vadd.f32 %v4862, %v4863
    %v4865 = vrot.slane %v4864, 2
    %v4866 = vadd.f32 %v4864, %v4865
    %v4867 = vrot.slane %v4866, 1
    %v4868 = vadd.f32 %v4866, %v4867
    %v4869 = vsel %vm133, %v4643, 0.0
    %v4870 = vrot.slane %v4869, 4
    %v4871 = vadd.f32 %v4869, %v4870
    %v4872 = vrot.slane %v4871, 2
    %v4873 = vadd.f32 %v4871, %v4872
    %v4874 = vrot.slane %v4873, 1
    %v4875 = vadd.f32 %v4873, %v4874
    %v4876 = vsel %vm133, %v4644, 0.0
    %v4877 = vrot.slane %v4876, 4
    %v4878 = vadd.f32 %v4876, %v4877
    %v4879 = vrot.slane %v4878, 2
    %v4880 = vadd.f32 %v4878, %v4879
    %v4881 = vrot.slane %v4880, 1
    %v4882 = vadd.f32 %v4880, %v4881
    %v4883 = vsel %vm133, %v4645, 0.0
    %v4884 = vrot.slane %v4883, 4
    %v4885 = vadd.f32 %v4883, %v4884
    %v4886 = vrot.slane %v4885, 2
    %v4887 = vadd.f32 %v4885, %v4886
    %v4888 = vrot.slane %v4887, 1
    %v4889 = vadd.f32 %v4887, %v4888
    %v4890 = vsel %vm133, %v4646, 0.0
    %v4891 = vrot.slane %v4890, 4
    %v4892 = vadd.f32 %v4890, %v4891
    %v4893 = vrot.slane %v4892, 2
    %v4894 = vadd.f32 %v4892, %v4893
    %v4895 = vrot.slane %v4894, 1
    %v4896 = vadd.f32 %v4894, %v4895
    %v4897 = vsel %vm133, %v4647, 0.0
    %v4898 = vrot.slane %v4897, 4
    %v4899 = vadd.f32 %v4897, %v4898
    %v4900 = vrot.slane %v4899, 2
    %v4901 = vadd.f32 %v4899, %v4900
    %v4902 = vrot.slane %v4901, 1
    %v4903 = vadd.f32 %v4901, %v4902
    %v4904 = vsel %vm133, %v4648, 0.0
    %v4905 = vrot.slane %v4904, 4
    %v4906 = vadd.f32 %v4904, %v4905
    %v4907 = vrot.slane %v4906, 2
    %v4908 = vadd.f32 %v4906, %v4907
    %v4909 = vrot.slane %v4908, 1
    %v4910 = vadd.f32 %v4908, %v4909
    %v4911 = vsel %vm133, %v4649, 0.0
    %v4912 = vrot.slane %v4911, 4
    %v4913 = vadd.f32 %v4911, %v4912
    %v4914 = vrot.slane %v4913, 2
    %v4915 = vadd.f32 %v4913, %v4914
    %v4916 = vrot.slane %v4915, 1
    %v4917 = vadd.f32 %v4915, %v4916
    %v4918 = vsel %vm133, %v4650, 0.0
    %v4919 = vrot.slane %v4918, 4
    %v4920 = vadd.f32 %v4918, %v4919
    %v4921 = vrot.slane %v4920, 2
    %v4922 = vadd.f32 %v4920, %v4921
    %v4923 = vrot.slane %v4922, 1
    %v4924 = vadd.f32 %v4922, %v4923
    %v4925 = vsel %vm133, %v4651, 0.0
    %v4926 = vrot.slane %v4925, 4
    %v4927 = vadd.f32 %v4925, %v4926
    %v4928 = vrot.slane %v4927, 2
    %v4929 = vadd.f32 %v4927, %v4928
    %v4930 = vrot.slane %v4929, 1
    %v4931 = vadd.f32 %v4929, %v4930
    %v4932 = vsel %vm133, %v4652, 0.0
    %v4933 = vrot.slane %v4932, 4
    %v4934 = vadd.f32 %v4932, %v4933
    %v4935 = vrot.slane %v4934, 2
    %v4936 = vadd.f32 %v4934, %v4935
    %v4937 = vrot.slane %v4936, 1
    %v4938 = vadd.f32 %v4936, %v4937
    %v4939 = vsel %vm133, %v4653, 0.0
    %v4940 = vrot.slane %v4939, 4
    %v4941 = vadd.f32 %v4939, %v4940
    %v4942 = vrot.slane %v4941, 2
    %v4943 = vadd.f32 %v4941, %v4942
    %v4944 = vrot.slane %v4943, 1
    %v4945 = vadd.f32 %v4943, %v4944
    %v4946 = vsel %vm133, %v4654, 0.0
    %v4947 = vrot.slane %v4946, 4
    %v4948 = vadd.f32 %v4946, %v4947
    %v4949 = vrot.slane %v4948, 2
    %v4950 = vadd.f32 %v4948, %v4949
    %v4951 = vrot.slane %v4950, 1
    %v4952 = vadd.f32 %v4950, %v4951
    %v4953 = vsel %vm133, %v4655, 0.0
    %v4954 = vrot.slane %v4953, 4
    %v4955 = vadd.f32 %v4953, %v4954
    %v4956 = vrot.slane %v4955, 2
    %v4957 = vadd.f32 %v4955, %v4956
    %v4958 = vrot.slane %v4957, 1
    %v4959 = vadd.f32 %v4957, %v4958
    %v4960 = vsel %vm133, %v4656, 0.0
    %v4961 = vrot.slane %v4960, 4
    %v4962 = vadd.f32 %v4960, %v4961
    %v4963 = vrot.slane %v4962, 2
    %v4964 = vadd.f32 %v4962, %v4963
    %v4965 = vrot.slane %v4964, 1
    %v4966 = vadd.f32 %v4964, %v4965
    %v4967 = vsel %vm133, %v4657, 0.0
    %v4968 = vrot.slane %v4967, 4
    %v4969 = vadd.f32 %v4967, %v4968
    %v4970 = vrot.slane %v4969, 2
    %v4971 = vadd.f32 %v4969, %v4970
    %v4972 = vrot.slane %v4971, 1
    %v4973 = vadd.f32 %v4971, %v4972
    %v4974 = vsel %vm133, %v4658, 0.0
    %v4975 = vrot.slane %v4974, 4
    %v4976 = vadd.f32 %v4974, %v4975
    %v4977 = vrot.slane %v4976, 2
    %v4978 = vadd.f32 %v4976, %v4977
    %v4979 = vrot.slane %v4978, 1
    %v4980 = vadd.f32 %v4978, %v4979
    %v4981 = vsel %vm133, %v4659, 0.0
    %v4982 = vrot.slane %v4981, 4
    %v4983 = vadd.f32 %v4981, %v4982
    %v4984 = vrot.slane %v4983, 2
    %v4985 = vadd.f32 %v4983, %v4984
    %v4986 = vrot.slane %v4985, 1
    %v4987 = vadd.f32 %v4985, %v4986
    %v4988 = vsel %vm133, %v4660, 0.0
    %v4989 = vrot.slane %v4988, 4
    %v4990 = vadd.f32 %v4988, %v4989
    %v4991 = vrot.slane %v4990, 2
    %v4992 = vadd.f32 %v4990, %v4991
    %v4993 = vrot.slane %v4992, 1
    %v4994 = vadd.f32 %v4992, %v4993
    %v4995 = vsel %vm133, %v4661, 0.0
    %v4996 = vrot.slane %v4995, 4
    %v4997 = vadd.f32 %v4995, %v4996
    %v4998 = vrot.slane %v4997, 2
    %v4999 = vadd.f32 %v4997, %v4998
    %v5000 = vrot.slane %v4999, 1
    %v5001 = vadd.f32 %v4999, %v5000
    %v5002 = vsel %vm133, %v4662, 0.0
    %v5003 = vrot.slane %v5002, 4
    %v5004 = vadd.f32 %v5002, %v5003
    %v5005 = vrot.slane %v5004, 2
    %v5006 = vadd.f32 %v5004, %v5005
    %v5007 = vrot.slane %v5006, 1
    %v5008 = vadd.f32 %v5006, %v5007
    %v5009 = vsel %vm133, %v4663, 0.0
    %v5010 = vrot.slane %v5009, 4
    %v5011 = vadd.f32 %v5009, %v5010
    %v5012 = vrot.slane %v5011, 2
    %v5013 = vadd.f32 %v5011, %v5012
    %v5014 = vrot.slane %v5013, 1
    %v5015 = vadd.f32 %v5013, %v5014
    %v5016 = vsel %vm133, %v4664, 0.0
    %v5017 = vrot.slane %v5016, 4
    %v5018 = vadd.f32 %v5016, %v5017
    %v5019 = vrot.slane %v5018, 2
    %v5020 = vadd.f32 %v5018, %v5019
    %v5021 = vrot.slane %v5020, 1
    %v5022 = vadd.f32 %v5020, %v5021
    %v5023 = vsel %vm133, %v4665, 0.0
    %v5024 = vrot.slane %v5023, 4
    %v5025 = vadd.f32 %v5023, %v5024
    %v5026 = vrot.slane %v5025, 2
    %v5027 = vadd.f32 %v5025, %v5026
    %v5028 = vrot.slane %v5027, 1
    %v5029 = vadd.f32 %v5027, %v5028
    %v5030 = vsel %vm133, %v4666, 0.0
    %v5031 = vrot.slane %v5030, 4
    %v5032 = vadd.f32 %v5030, %v5031
    %v5033 = vrot.slane %v5032, 2
    %v5034 = vadd.f32 %v5032, %v5033
    %v5035 = vrot.slane %v5034, 1
    %v5036 = vadd.f32 %v5034, %v5035
    %v5037 = vsel %vm133, %v4667, 0.0
    %v5038 = vrot.slane %v5037, 4
    %v5039 = vadd.f32 %v5037, %v5038
    %v5040 = vrot.slane %v5039, 2
    %v5041 = vadd.f32 %v5039, %v5040
    %v5042 = vrot.slane %v5041, 1
    %v5043 = vadd.f32 %v5041, %v5042
    %v5044 = vsel %vm133, %v4668, 0.0
    %v5045 = vrot.slane %v5044, 4
    %v5046 = vadd.f32 %v5044, %v5045
    %v5047 = vrot.slane %v5046, 2
    %v5048 = vadd.f32 %v5046, %v5047
    %v5049 = vrot.slane %v5048, 1
    %v5050 = vadd.f32 %v5048, %v5049
    %v5051 = vsel %vm133, %v4669, 0.0
    %v5052 = vrot.slane %v5051, 4
    %v5053 = vadd.f32 %v5051, %v5052
    %v5054 = vrot.slane %v5053, 2
    %v5055 = vadd.f32 %v5053, %v5054
    %v5056 = vrot.slane %v5055, 1
    %v5057 = vadd.f32 %v5055, %v5056
    %v5058 = vsel %vm133, %v4670, 0.0
    %v5059 = vrot.slane %v5058, 4
    %v5060 = vadd.f32 %v5058, %v5059
    %v5061 = vrot.slane %v5060, 2
    %v5062 = vadd.f32 %v5060, %v5061
    %v5063 = vrot.slane %v5062, 1
    %v5064 = vadd.f32 %v5062, %v5063
    %v5065 = vsel %vm133, %v4671, 0.0
    %v5066 = vrot.slane %v5065, 4
    %v5067 = vadd.f32 %v5065, %v5066
    %v5068 = vrot.slane %v5067, 2
    %v5069 = vadd.f32 %v5067, %v5068
    %v5070 = vrot.slane %v5069, 1
    %v5071 = vadd.f32 %v5069, %v5070
    %v5072 = vsel %vm133, %v4672, 0.0
    %v5073 = vrot.slane %v5072, 4
    %v5074 = vadd.f32 %v5072, %v5073
    %v5075 = vrot.slane %v5074, 2
    %v5076 = vadd.f32 %v5074, %v5075
    %v5077 = vrot.slane %v5076, 1
    %v5078 = vadd.f32 %v5076, %v5077
    %v5079 = vsel %vm133, %v4673, 0.0
    %v5080 = vrot.slane %v5079, 4
    %v5081 = vadd.f32 %v5079, %v5080
    %v5082 = vrot.slane %v5081, 2
    %v5083 = vadd.f32 %v5081, %v5082
    %v5084 = vrot.slane %v5083, 1
    %v5085 = vadd.f32 %v5083, %v5084
    %v5086 = vsel %vm133, %v4674, 0.0
    %v5087 = vrot.slane %v5086, 4
    %v5088 = vadd.f32 %v5086, %v5087
    %v5089 = vrot.slane %v5088, 2
    %v5090 = vadd.f32 %v5088, %v5089
    %v5091 = vrot.slane %v5090, 1
    %v5092 = vadd.f32 %v5090, %v5091
    %v5093 = vsel %vm133, %v4675, 0.0
    %v5094 = vrot.slane %v5093, 4
    %v5095 = vadd.f32 %v5093, %v5094
    %v5096 = vrot.slane %v5095, 2
    %v5097 = vadd.f32 %v5095, %v5096
    %v5098 = vrot.slane %v5097, 1
    %v5099 = vadd.f32 %v5097, %v5098
    %v5100 = vsel %vm133, %v4676, 0.0
    %v5101 = vrot.slane %v5100, 4
    %v5102 = vadd.f32 %v5100, %v5101
    %v5103 = vrot.slane %v5102, 2
    %v5104 = vadd.f32 %v5102, %v5103
    %v5105 = vrot.slane %v5104, 1
    %v5106 = vadd.f32 %v5104, %v5105
    %v5107 = vsel %vm133, %v4677, 0.0
    %v5108 = vrot.slane %v5107, 4
    %v5109 = vadd.f32 %v5107, %v5108
    %v5110 = vrot.slane %v5109, 2
    %v5111 = vadd.f32 %v5109, %v5110
    %v5112 = vrot.slane %v5111, 1
    %v5113 = vadd.f32 %v5111, %v5112
    %v5114 = vsel %vm133, %v4678, 0.0
    %v5115 = vrot.slane %v5114, 4
    %v5116 = vadd.f32 %v5114, %v5115
    %v5117 = vrot.slane %v5116, 2
    %v5118 = vadd.f32 %v5116, %v5117
    %v5119 = vrot.slane %v5118, 1
    %v5120 = vadd.f32 %v5118, %v5119
    %v5121 = vsel %vm133, %v4679, 0.0
    %v5122 = vrot.slane %v5121, 4
    %v5123 = vadd.f32 %v5121, %v5122
    %v5124 = vrot.slane %v5123, 2
    %v5125 = vadd.f32 %v5123, %v5124
    %v5126 = vrot.slane %v5125, 1
    %v5127 = vadd.f32 %v5125, %v5126
    %v5192 = vsel %vm4281, %v4693, %v4686
    %v5193 = vsel %vm4283, %v4700, %v5192
    %v5194 = vsel %vm4285, %v4707, %v5193
    %v5195 = vsel %vm4287, %v4714, %v5194
    %v5196 = vsel %vm4289, %v4721, %v5195
    %v5197 = vsel %vm4291, %v4728, %v5196
    %v5198 = vsel %vm4293, %v4735, %v5197
    %v5199 = vsel %vm4281, %v4749, %v4742
    %v5200 = vsel %vm4283, %v4756, %v5199
    %v5201 = vsel %vm4285, %v4763, %v5200
    %v5202 = vsel %vm4287, %v4770, %v5201
    %v5203 = vsel %vm4289, %v4777, %v5202
    %v5204 = vsel %vm4291, %v4784, %v5203
    %v5205 = vsel %vm4293, %v4791, %v5204
    %v5206 = vsel %vm4281, %v4805, %v4798
    %v5207 = vsel %vm4283, %v4812, %v5206
    %v5208 = vsel %vm4285, %v4819, %v5207
    %v5209 = vsel %vm4287, %v4826, %v5208
    %v5210 = vsel %vm4289, %v4833, %v5209
    %v5211 = vsel %vm4291, %v4840, %v5210
    %v5212 = vsel %vm4293, %v4847, %v5211
    %v5213 = vsel %vm4281, %v4861, %v4854
    %v5214 = vsel %vm4283, %v4868, %v5213
    %v5215 = vsel %vm4285, %v4875, %v5214
    %v5216 = vsel %vm4287, %v4882, %v5215
    %v5217 = vsel %vm4289, %v4889, %v5216
    %v5218 = vsel %vm4291, %v4896, %v5217
    %v5219 = vsel %vm4293, %v4903, %v5218
    %v5220 = vsel %vm4281, %v4917, %v4910
    %v5221 = vsel %vm4283, %v4924, %v5220
    %v5222 = vsel %vm4285, %v4931, %v5221
    %v5223 = vsel %vm4287, %v4938, %v5222
    %v5224 = vsel %vm4289, %v4945, %v5223
    %v5225 = vsel %vm4291, %v4952, %v5224
    %v5226 = vsel %vm4293, %v4959, %v5225
    %v5227 = vsel %vm4281, %v4973, %v4966
    %v5228 = vsel %vm4283, %v4980, %v5227
    %v5229 = vsel %vm4285, %v4987, %v5228
    %v5230 = vsel %vm4287, %v4994, %v5229
    %v5231 = vsel %vm4289, %v5001, %v5230
    %v5232 = vsel %vm4291, %v5008, %v5231
    %v5233 = vsel %vm4293, %v5015, %v5232
    %v5234 = vsel %vm4281, %v5029, %v5022
    %v5235 = vsel %vm4283, %v5036, %v5234
    %v5236 = vsel %vm4285, %v5043, %v5235
    %v5237 = vsel %vm4287, %v5050, %v5236
    %v5238 = vsel %vm4289, %v5057, %v5237
    %v5239 = vsel %vm4291, %v5064, %v5238
    %v5240 = vsel %vm4293, %v5071, %v5239
    %v5241 = vsel %vm4281, %v5085, %v5078
    %v5242 = vsel %vm4283, %v5092, %v5241
    %v5243 = vsel %vm4285, %v5099, %v5242
    %v5244 = vsel %vm4287, %v5106, %v5243
    %v5245 = vsel %vm4289, %v5113, %v5244
    %v5246 = vsel %vm4291, %v5120, %v5245
    %v5247 = vsel %vm4293, %v5127, %v5246
    %5248 = vrot.lane.b32.xlu0 %v5198, 32
    %v5249 = vpop.permute.xlu0 %5248
    %5250 = vrot.lane.b32.xlu0 %v5205, 32
    %v5251 = vpop.permute.xlu0 %5250
    %5252 = vrot.lane.b32.xlu0 %v5212, 32
    %v5253 = vpop.permute.xlu0 %5252
    %5254 = vrot.lane.b32.xlu0 %v5219, 32
    %v5255 = vpop.permute.xlu0 %5254
    %5256 = vrot.lane.b32.xlu0 %v5226, 32
    %v5257 = vpop.permute.xlu0 %5256
    %5258 = vrot.lane.b32.xlu0 %v5233, 32
    %v5259 = vpop.permute.xlu0 %5258
    %5260 = vrot.lane.b32.xlu0 %v5240, 32
    %v5261 = vpop.permute.xlu0 %5260
    %5262 = vrot.lane.b32.xlu0 %v5247, 32
    %v5263 = vpop.permute.xlu0 %5262
    %vm5272 = vcmask 523520
    %5273 = vst.msk [vmem:[#allocation2] sm:$0xff] %vm5272, %v5249
    %5274 = vst.msk [vmem:[#allocation2 + $0x8] sm:$0xff] %vm5272, %v5251
    %5275 = vst.msk [vmem:[#allocation2 + $0x10] sm:$0xff] %vm5272, %v5253
    %5276 = vst.msk [vmem:[#allocation2 + $0x18] sm:$0xff] %vm5272, %v5255
    %5277 = vst.msk [vmem:[#allocation2 + $0x20] sm:$0xff] %vm5272, %v5257
    %5278 = vst.msk [vmem:[#allocation2 + $0x28] sm:$0xff] %vm5272, %v5259
    %5279 = vst.msk [vmem:[#allocation2 + $0x30] sm:$0xff] %vm5272, %v5261
    %5280 = vst.msk [vmem:[#allocation2 + $0x38] sm:$0xff] %vm5272, %v5263
    %5281 = vset.pattern.permute.xlu0 2
    %5282 = vperm.xlu0 %5281, %v3257
    %v5283 = vpop.permute.xlu0 %5282
    %5285 = vset.pattern.permute.xlu0 2
    %5286 = vperm.xlu0 %5285, %v3258
    %v5287 = vpop.permute.xlu0 %5286
    %5289 = vset.pattern.permute.xlu0 2
    %5290 = vperm.xlu0 %5289, %v3259
    %v5291 = vpop.permute.xlu0 %5290
    %5293 = vset.pattern.permute.xlu0 2
    %5294 = vperm.xlu0 %5293, %v3260
    %v5295 = vpop.permute.xlu0 %5294
    %5297 = vset.pattern.permute.xlu0 2
    %5298 = vperm.xlu0 %5297, %v3261
    %v5299 = vpop.permute.xlu0 %5298
    %5301 = vset.pattern.permute.xlu0 2
    %5302 = vperm.xlu0 %5301, %v3262
    %v5303 = vpop.permute.xlu0 %5302
    %5305 = vset.pattern.permute.xlu0 2
    %5306 = vperm.xlu0 %5305, %v3263
    %v5307 = vpop.permute.xlu0 %5306
    %5309 = vset.pattern.permute.xlu0 2
    %5310 = vperm.xlu0 %5309, %v3264
    %v5311 = vpop.permute.xlu0 %5310
    %5313 = vset.pattern.permute.xlu0 2
    %5314 = vperm.xlu0 %5313, %v3265
    %v5315 = vpop.permute.xlu0 %5314
    %5317 = vset.pattern.permute.xlu0 2
    %5318 = vperm.xlu0 %5317, %v3266
    %v5319 = vpop.permute.xlu0 %5318
    %5321 = vset.pattern.permute.xlu0 2
    %5322 = vperm.xlu0 %5321, %v3267
    %v5323 = vpop.permute.xlu0 %5322
    %5325 = vset.pattern.permute.xlu0 2
    %5326 = vperm.xlu0 %5325, %v3268
    %v5327 = vpop.permute.xlu0 %5326
    %5329 = vset.pattern.permute.xlu0 2
    %5330 = vperm.xlu0 %5329, %v3269
    %v5331 = vpop.permute.xlu0 %5330
    %5333 = vset.pattern.permute.xlu0 2
    %5334 = vperm.xlu0 %5333, %v3270
    %v5335 = vpop.permute.xlu0 %5334
    %5337 = vset.pattern.permute.xlu0 2
    %5338 = vperm.xlu0 %5337, %v3271
    %v5339 = vpop.permute.xlu0 %5338
    %5341 = vset.pattern.permute.xlu0 2
    %5342 = vperm.xlu0 %5341, %v3272
    %v5343 = vpop.permute.xlu0 %5342
    %5345 = vset.pattern.permute.xlu0 2
    %5346 = vperm.xlu0 %5345, %v3273
    %v5347 = vpop.permute.xlu0 %5346
    %5349 = vset.pattern.permute.xlu0 2
    %5350 = vperm.xlu0 %5349, %v3274
    %v5351 = vpop.permute.xlu0 %5350
    %5353 = vset.pattern.permute.xlu0 2
    %5354 = vperm.xlu0 %5353, %v3275
    %v5355 = vpop.permute.xlu0 %5354
    %5357 = vset.pattern.permute.xlu0 2
    %5358 = vperm.xlu0 %5357, %v3276
    %v5359 = vpop.permute.xlu0 %5358
    %5361 = vset.pattern.permute.xlu0 2
    %5362 = vperm.xlu0 %5361, %v3277
    %v5363 = vpop.permute.xlu0 %5362
    %5365 = vset.pattern.permute.xlu0 2
    %5366 = vperm.xlu0 %5365, %v3278
    %v5367 = vpop.permute.xlu0 %5366
    %5369 = vset.pattern.permute.xlu0 2
    %5370 = vperm.xlu0 %5369, %v3279
    %v5371 = vpop.permute.xlu0 %5370
    %5373 = vset.pattern.permute.xlu0 2
    %5374 = vperm.xlu0 %5373, %v3280
    %v5375 = vpop.permute.xlu0 %5374
    %5377 = vset.pattern.permute.xlu0 2
    %5378 = vperm.xlu0 %5377, %v3281
    %v5379 = vpop.permute.xlu0 %5378
    %5381 = vset.pattern.permute.xlu0 2
    %5382 = vperm.xlu0 %5381, %v3282
    %v5383 = vpop.permute.xlu0 %5382
    %5385 = vset.pattern.permute.xlu0 2
    %5386 = vperm.xlu0 %5385, %v3283
    %v5387 = vpop.permute.xlu0 %5386
    %5389 = vset.pattern.permute.xlu0 2
    %5390 = vperm.xlu0 %5389, %v3284
    %v5391 = vpop.permute.xlu0 %5390
    %5393 = vset.pattern.permute.xlu0 2
    %5394 = vperm.xlu0 %5393, %v3285
    %v5395 = vpop.permute.xlu0 %5394
    %5397 = vset.pattern.permute.xlu0 2
    %5398 = vperm.xlu0 %5397, %v3286
    %v5399 = vpop.permute.xlu0 %5398
    %5401 = vset.pattern.permute.xlu0 2
    %5402 = vperm.xlu0 %5401, %v3287
    %v5403 = vpop.permute.xlu0 %5402
    %5405 = vset.pattern.permute.xlu0 2
    %5406 = vperm.xlu0 %5405, %v3288
    %v5407 = vpop.permute.xlu0 %5406
    %5409 = vset.pattern.permute.xlu0 2
    %5410 = vperm.xlu0 %5409, %v3289
    %v5411 = vpop.permute.xlu0 %5410
    %5413 = vset.pattern.permute.xlu0 2
    %5414 = vperm.xlu0 %5413, %v3290
    %v5415 = vpop.permute.xlu0 %5414
    %5417 = vset.pattern.permute.xlu0 2
    %5418 = vperm.xlu0 %5417, %v3291
    %v5419 = vpop.permute.xlu0 %5418
    %5421 = vset.pattern.permute.xlu0 2
    %5422 = vperm.xlu0 %5421, %v3292
    %v5423 = vpop.permute.xlu0 %5422
    %5425 = vset.pattern.permute.xlu0 2
    %5426 = vperm.xlu0 %5425, %v3293
    %v5427 = vpop.permute.xlu0 %5426
    %5429 = vset.pattern.permute.xlu0 2
    %5430 = vperm.xlu0 %5429, %v3294
    %v5431 = vpop.permute.xlu0 %5430
    %5433 = vset.pattern.permute.xlu0 2
    %5434 = vperm.xlu0 %5433, %v3295
    %v5435 = vpop.permute.xlu0 %5434
    %5437 = vset.pattern.permute.xlu0 2
    %5438 = vperm.xlu0 %5437, %v3296
    %v5439 = vpop.permute.xlu0 %5438
    %5441 = vset.pattern.permute.xlu0 2
    %5442 = vperm.xlu0 %5441, %v3297
    %v5443 = vpop.permute.xlu0 %5442
    %5445 = vset.pattern.permute.xlu0 2
    %5446 = vperm.xlu0 %5445, %v3298
    %v5447 = vpop.permute.xlu0 %5446
    %5449 = vset.pattern.permute.xlu0 2
    %5450 = vperm.xlu0 %5449, %v3299
    %v5451 = vpop.permute.xlu0 %5450
    %5453 = vset.pattern.permute.xlu0 2
    %5454 = vperm.xlu0 %5453, %v3300
    %v5455 = vpop.permute.xlu0 %5454
    %5457 = vset.pattern.permute.xlu0 2
    %5458 = vperm.xlu0 %5457, %v3301
    %v5459 = vpop.permute.xlu0 %5458
    %5461 = vset.pattern.permute.xlu0 2
    %5462 = vperm.xlu0 %5461, %v3302
    %v5463 = vpop.permute.xlu0 %5462
    %5465 = vset.pattern.permute.xlu0 2
    %5466 = vperm.xlu0 %5465, %v3303
    %v5467 = vpop.permute.xlu0 %5466
    %5469 = vset.pattern.permute.xlu0 2
    %5470 = vperm.xlu0 %5469, %v3304
    %v5471 = vpop.permute.xlu0 %5470
    %5473 = vset.pattern.permute.xlu0 2
    %5474 = vperm.xlu0 %5473, %v3305
    %v5475 = vpop.permute.xlu0 %5474
    %5477 = vset.pattern.permute.xlu0 2
    %5478 = vperm.xlu0 %5477, %v3306
    %v5479 = vpop.permute.xlu0 %5478
    %5481 = vset.pattern.permute.xlu0 2
    %5482 = vperm.xlu0 %5481, %v3307
    %v5483 = vpop.permute.xlu0 %5482
    %5485 = vset.pattern.permute.xlu0 2
    %5486 = vperm.xlu0 %5485, %v3308
    %v5487 = vpop.permute.xlu0 %5486
    %5489 = vset.pattern.permute.xlu0 2
    %5490 = vperm.xlu0 %5489, %v3309
    %v5491 = vpop.permute.xlu0 %5490
    %5493 = vset.pattern.permute.xlu0 2
    %5494 = vperm.xlu0 %5493, %v3310
    %v5495 = vpop.permute.xlu0 %5494
    %5497 = vset.pattern.permute.xlu0 2
    %5498 = vperm.xlu0 %5497, %v3311
    %v5499 = vpop.permute.xlu0 %5498
    %5501 = vset.pattern.permute.xlu0 2
    %5502 = vperm.xlu0 %5501, %v3312
    %v5503 = vpop.permute.xlu0 %5502
    %5505 = vset.pattern.permute.xlu0 2
    %5506 = vperm.xlu0 %5505, %v3313
    %v5507 = vpop.permute.xlu0 %5506
    %5509 = vset.pattern.permute.xlu0 2
    %5510 = vperm.xlu0 %5509, %v3314
    %v5511 = vpop.permute.xlu0 %5510
    %5513 = vset.pattern.permute.xlu0 2
    %5514 = vperm.xlu0 %5513, %v3315
    %v5515 = vpop.permute.xlu0 %5514
    %5517 = vset.pattern.permute.xlu0 2
    %5518 = vperm.xlu0 %5517, %v3316
    %v5519 = vpop.permute.xlu0 %5518
    %5521 = vset.pattern.permute.xlu0 2
    %5522 = vperm.xlu0 %5521, %v3317
    %v5523 = vpop.permute.xlu0 %5522
    %5525 = vset.pattern.permute.xlu0 2
    %5526 = vperm.xlu0 %5525, %v3318
    %v5527 = vpop.permute.xlu0 %5526
    %5529 = vset.pattern.permute.xlu0 2
    %5530 = vperm.xlu0 %5529, %v3319
    %v5531 = vpop.permute.xlu0 %5530
    %5533 = vset.pattern.permute.xlu0 2
    %5534 = vperm.xlu0 %5533, %v3320
    %v5535 = vpop.permute.xlu0 %5534
    %v5537 = vmul.f32 %v5283, %v21
    %v5538 = vmul.f32 %v5287, %v22
    %v5539 = vmul.f32 %v5291, %v23
    %v5540 = vmul.f32 %v5295, %v24
    %v5541 = vmul.f32 %v5299, %v25
    %v5542 = vmul.f32 %v5303, %v26
    %v5543 = vmul.f32 %v5307, %v27
    %v5544 = vmul.f32 %v5311, %v28
    %v5545 = vmul.f32 %v5315, %v29
    %v5546 = vmul.f32 %v5319, %v30
    %v5547 = vmul.f32 %v5323, %v31
    %v5548 = vmul.f32 %v5327, %v32
    %v5549 = vmul.f32 %v5331, %v33
    %v5550 = vmul.f32 %v5335, %v34
    %v5551 = vmul.f32 %v5339, %v35
    %v5552 = vmul.f32 %v5343, %v36
    %v5553 = vmul.f32 %v5347, %v37
    %v5554 = vmul.f32 %v5351, %v38
    %v5555 = vmul.f32 %v5355, %v39
    %v5556 = vmul.f32 %v5359, %v40
    %v5557 = vmul.f32 %v5363, %v41
    %v5558 = vmul.f32 %v5367, %v42
    %v5559 = vmul.f32 %v5371, %v43
    %v5560 = vmul.f32 %v5375, %v44
    %v5561 = vmul.f32 %v5379, %v45
    %v5562 = vmul.f32 %v5383, %v46
    %v5563 = vmul.f32 %v5387, %v47
    %v5564 = vmul.f32 %v5391, %v48
    %v5565 = vmul.f32 %v5395, %v49
    %v5566 = vmul.f32 %v5399, %v50
    %v5567 = vmul.f32 %v5403, %v51
    %v5568 = vmul.f32 %v5407, %v52
    %v5569 = vmul.f32 %v5411, %v53
    %v5570 = vmul.f32 %v5415, %v54
    %v5571 = vmul.f32 %v5419, %v55
    %v5572 = vmul.f32 %v5423, %v56
    %v5573 = vmul.f32 %v5427, %v57
    %v5574 = vmul.f32 %v5431, %v58
    %v5575 = vmul.f32 %v5435, %v59
    %v5576 = vmul.f32 %v5439, %v60
    %v5577 = vmul.f32 %v5443, %v61
    %v5578 = vmul.f32 %v5447, %v62
    %v5579 = vmul.f32 %v5451, %v63
    %v5580 = vmul.f32 %v5455, %v64
    %v5581 = vmul.f32 %v5459, %v65
    %v5582 = vmul.f32 %v5463, %v66
    %v5583 = vmul.f32 %v5467, %v67
    %v5584 = vmul.f32 %v5471, %v68
    %v5585 = vmul.f32 %v5475, %v69
    %v5586 = vmul.f32 %v5479, %v70
    %v5587 = vmul.f32 %v5483, %v71
    %v5588 = vmul.f32 %v5487, %v72
    %v5589 = vmul.f32 %v5491, %v73
    %v5590 = vmul.f32 %v5495, %v74
    %v5591 = vmul.f32 %v5499, %v75
    %v5592 = vmul.f32 %v5503, %v76
    %v5593 = vmul.f32 %v5507, %v77
    %v5594 = vmul.f32 %v5511, %v78
    %v5595 = vmul.f32 %v5515, %v79
    %v5596 = vmul.f32 %v5519, %v80
    %v5597 = vmul.f32 %v5523, %v81
    %v5598 = vmul.f32 %v5527, %v82
    %v5599 = vmul.f32 %v5531, %v83
    %v5600 = vmul.f32 %v5535, %v84
    %v5601 = vsel %vm133, %v5537, 0.0
    %v5602 = vrot.slane %v5601, 4
    %v5603 = vadd.f32 %v5601, %v5602
    %v5604 = vrot.slane %v5603, 2
    %v5605 = vadd.f32 %v5603, %v5604
    %v5606 = vrot.slane %v5605, 1
    %v5607 = vadd.f32 %v5605, %v5606
    %v5608 = vsel %vm133, %v5538, 0.0
    %v5609 = vrot.slane %v5608, 4
    %v5610 = vadd.f32 %v5608, %v5609
    %v5611 = vrot.slane %v5610, 2
    %v5612 = vadd.f32 %v5610, %v5611
    %v5613 = vrot.slane %v5612, 1
    %v5614 = vadd.f32 %v5612, %v5613
    %v5615 = vsel %vm133, %v5539, 0.0
    %v5616 = vrot.slane %v5615, 4
    %v5617 = vadd.f32 %v5615, %v5616
    %v5618 = vrot.slane %v5617, 2
    %v5619 = vadd.f32 %v5617, %v5618
    %v5620 = vrot.slane %v5619, 1
    %v5621 = vadd.f32 %v5619, %v5620
    %v5622 = vsel %vm133, %v5540, 0.0
    %v5623 = vrot.slane %v5622, 4
    %v5624 = vadd.f32 %v5622, %v5623
    %v5625 = vrot.slane %v5624, 2
    %v5626 = vadd.f32 %v5624, %v5625
    %v5627 = vrot.slane %v5626, 1
    %v5628 = vadd.f32 %v5626, %v5627
    %v5629 = vsel %vm133, %v5541, 0.0
    %v5630 = vrot.slane %v5629, 4
    %v5631 = vadd.f32 %v5629, %v5630
    %v5632 = vrot.slane %v5631, 2
    %v5633 = vadd.f32 %v5631, %v5632
    %v5634 = vrot.slane %v5633, 1
    %v5635 = vadd.f32 %v5633, %v5634
    %v5636 = vsel %vm133, %v5542, 0.0
    %v5637 = vrot.slane %v5636, 4
    %v5638 = vadd.f32 %v5636, %v5637
    %v5639 = vrot.slane %v5638, 2
    %v5640 = vadd.f32 %v5638, %v5639
    %v5641 = vrot.slane %v5640, 1
    %v5642 = vadd.f32 %v5640, %v5641
    %v5643 = vsel %vm133, %v5543, 0.0
    %v5644 = vrot.slane %v5643, 4
    %v5645 = vadd.f32 %v5643, %v5644
    %v5646 = vrot.slane %v5645, 2
    %v5647 = vadd.f32 %v5645, %v5646
    %v5648 = vrot.slane %v5647, 1
    %v5649 = vadd.f32 %v5647, %v5648
    %v5650 = vsel %vm133, %v5544, 0.0
    %v5651 = vrot.slane %v5650, 4
    %v5652 = vadd.f32 %v5650, %v5651
    %v5653 = vrot.slane %v5652, 2
    %v5654 = vadd.f32 %v5652, %v5653
    %v5655 = vrot.slane %v5654, 1
    %v5656 = vadd.f32 %v5654, %v5655
    %v5657 = vsel %vm133, %v5545, 0.0
    %v5658 = vrot.slane %v5657, 4
    %v5659 = vadd.f32 %v5657, %v5658
    %v5660 = vrot.slane %v5659, 2
    %v5661 = vadd.f32 %v5659, %v5660
    %v5662 = vrot.slane %v5661, 1
    %v5663 = vadd.f32 %v5661, %v5662
    %v5664 = vsel %vm133, %v5546, 0.0
    %v5665 = vrot.slane %v5664, 4
    %v5666 = vadd.f32 %v5664, %v5665
    %v5667 = vrot.slane %v5666, 2
    %v5668 = vadd.f32 %v5666, %v5667
    %v5669 = vrot.slane %v5668, 1
    %v5670 = vadd.f32 %v5668, %v5669
    %v5671 = vsel %vm133, %v5547, 0.0
    %v5672 = vrot.slane %v5671, 4
    %v5673 = vadd.f32 %v5671, %v5672
    %v5674 = vrot.slane %v5673, 2
    %v5675 = vadd.f32 %v5673, %v5674
    %v5676 = vrot.slane %v5675, 1
    %v5677 = vadd.f32 %v5675, %v5676
    %v5678 = vsel %vm133, %v5548, 0.0
    %v5679 = vrot.slane %v5678, 4
    %v5680 = vadd.f32 %v5678, %v5679
    %v5681 = vrot.slane %v5680, 2
    %v5682 = vadd.f32 %v5680, %v5681
    %v5683 = vrot.slane %v5682, 1
    %v5684 = vadd.f32 %v5682, %v5683
    %v5685 = vsel %vm133, %v5549, 0.0
    %v5686 = vrot.slane %v5685, 4
    %v5687 = vadd.f32 %v5685, %v5686
    %v5688 = vrot.slane %v5687, 2
    %v5689 = vadd.f32 %v5687, %v5688
    %v5690 = vrot.slane %v5689, 1
    %v5691 = vadd.f32 %v5689, %v5690
    %v5692 = vsel %vm133, %v5550, 0.0
    %v5693 = vrot.slane %v5692, 4
    %v5694 = vadd.f32 %v5692, %v5693
    %v5695 = vrot.slane %v5694, 2
    %v5696 = vadd.f32 %v5694, %v5695
    %v5697 = vrot.slane %v5696, 1
    %v5698 = vadd.f32 %v5696, %v5697
    %v5699 = vsel %vm133, %v5551, 0.0
    %v5700 = vrot.slane %v5699, 4
    %v5701 = vadd.f32 %v5699, %v5700
    %v5702 = vrot.slane %v5701, 2
    %v5703 = vadd.f32 %v5701, %v5702
    %v5704 = vrot.slane %v5703, 1
    %v5705 = vadd.f32 %v5703, %v5704
    %v5706 = vsel %vm133, %v5552, 0.0
    %v5707 = vrot.slane %v5706, 4
    %v5708 = vadd.f32 %v5706, %v5707
    %v5709 = vrot.slane %v5708, 2
    %v5710 = vadd.f32 %v5708, %v5709
    %v5711 = vrot.slane %v5710, 1
    %v5712 = vadd.f32 %v5710, %v5711
    %v5713 = vsel %vm133, %v5553, 0.0
    %v5714 = vrot.slane %v5713, 4
    %v5715 = vadd.f32 %v5713, %v5714
    %v5716 = vrot.slane %v5715, 2
    %v5717 = vadd.f32 %v5715, %v5716
    %v5718 = vrot.slane %v5717, 1
    %v5719 = vadd.f32 %v5717, %v5718
    %v5720 = vsel %vm133, %v5554, 0.0
    %v5721 = vrot.slane %v5720, 4
    %v5722 = vadd.f32 %v5720, %v5721
    %v5723 = vrot.slane %v5722, 2
    %v5724 = vadd.f32 %v5722, %v5723
    %v5725 = vrot.slane %v5724, 1
    %v5726 = vadd.f32 %v5724, %v5725
    %v5727 = vsel %vm133, %v5555, 0.0
    %v5728 = vrot.slane %v5727, 4
    %v5729 = vadd.f32 %v5727, %v5728
    %v5730 = vrot.slane %v5729, 2
    %v5731 = vadd.f32 %v5729, %v5730
    %v5732 = vrot.slane %v5731, 1
    %v5733 = vadd.f32 %v5731, %v5732
    %v5734 = vsel %vm133, %v5556, 0.0
    %v5735 = vrot.slane %v5734, 4
    %v5736 = vadd.f32 %v5734, %v5735
    %v5737 = vrot.slane %v5736, 2
    %v5738 = vadd.f32 %v5736, %v5737
    %v5739 = vrot.slane %v5738, 1
    %v5740 = vadd.f32 %v5738, %v5739
    %v5741 = vsel %vm133, %v5557, 0.0
    %v5742 = vrot.slane %v5741, 4
    %v5743 = vadd.f32 %v5741, %v5742
    %v5744 = vrot.slane %v5743, 2
    %v5745 = vadd.f32 %v5743, %v5744
    %v5746 = vrot.slane %v5745, 1
    %v5747 = vadd.f32 %v5745, %v5746
    %v5748 = vsel %vm133, %v5558, 0.0
    %v5749 = vrot.slane %v5748, 4
    %v5750 = vadd.f32 %v5748, %v5749
    %v5751 = vrot.slane %v5750, 2
    %v5752 = vadd.f32 %v5750, %v5751
    %v5753 = vrot.slane %v5752, 1
    %v5754 = vadd.f32 %v5752, %v5753
    %v5755 = vsel %vm133, %v5559, 0.0
    %v5756 = vrot.slane %v5755, 4
    %v5757 = vadd.f32 %v5755, %v5756
    %v5758 = vrot.slane %v5757, 2
    %v5759 = vadd.f32 %v5757, %v5758
    %v5760 = vrot.slane %v5759, 1
    %v5761 = vadd.f32 %v5759, %v5760
    %v5762 = vsel %vm133, %v5560, 0.0
    %v5763 = vrot.slane %v5762, 4
    %v5764 = vadd.f32 %v5762, %v5763
    %v5765 = vrot.slane %v5764, 2
    %v5766 = vadd.f32 %v5764, %v5765
    %v5767 = vrot.slane %v5766, 1
    %v5768 = vadd.f32 %v5766, %v5767
    %v5769 = vsel %vm133, %v5561, 0.0
    %v5770 = vrot.slane %v5769, 4
    %v5771 = vadd.f32 %v5769, %v5770
    %v5772 = vrot.slane %v5771, 2
    %v5773 = vadd.f32 %v5771, %v5772
    %v5774 = vrot.slane %v5773, 1
    %v5775 = vadd.f32 %v5773, %v5774
    %v5776 = vsel %vm133, %v5562, 0.0
    %v5777 = vrot.slane %v5776, 4
    %v5778 = vadd.f32 %v5776, %v5777
    %v5779 = vrot.slane %v5778, 2
    %v5780 = vadd.f32 %v5778, %v5779
    %v5781 = vrot.slane %v5780, 1
    %v5782 = vadd.f32 %v5780, %v5781
    %v5783 = vsel %vm133, %v5563, 0.0
    %v5784 = vrot.slane %v5783, 4
    %v5785 = vadd.f32 %v5783, %v5784
    %v5786 = vrot.slane %v5785, 2
    %v5787 = vadd.f32 %v5785, %v5786
    %v5788 = vrot.slane %v5787, 1
    %v5789 = vadd.f32 %v5787, %v5788
    %v5790 = vsel %vm133, %v5564, 0.0
    %v5791 = vrot.slane %v5790, 4
    %v5792 = vadd.f32 %v5790, %v5791
    %v5793 = vrot.slane %v5792, 2
    %v5794 = vadd.f32 %v5792, %v5793
    %v5795 = vrot.slane %v5794, 1
    %v5796 = vadd.f32 %v5794, %v5795
    %v5797 = vsel %vm133, %v5565, 0.0
    %v5798 = vrot.slane %v5797, 4
    %v5799 = vadd.f32 %v5797, %v5798
    %v5800 = vrot.slane %v5799, 2
    %v5801 = vadd.f32 %v5799, %v5800
    %v5802 = vrot.slane %v5801, 1
    %v5803 = vadd.f32 %v5801, %v5802
    %v5804 = vsel %vm133, %v5566, 0.0
    %v5805 = vrot.slane %v5804, 4
    %v5806 = vadd.f32 %v5804, %v5805
    %v5807 = vrot.slane %v5806, 2
    %v5808 = vadd.f32 %v5806, %v5807
    %v5809 = vrot.slane %v5808, 1
    %v5810 = vadd.f32 %v5808, %v5809
    %v5811 = vsel %vm133, %v5567, 0.0
    %v5812 = vrot.slane %v5811, 4
    %v5813 = vadd.f32 %v5811, %v5812
    %v5814 = vrot.slane %v5813, 2
    %v5815 = vadd.f32 %v5813, %v5814
    %v5816 = vrot.slane %v5815, 1
    %v5817 = vadd.f32 %v5815, %v5816
    %v5818 = vsel %vm133, %v5568, 0.0
    %v5819 = vrot.slane %v5818, 4
    %v5820 = vadd.f32 %v5818, %v5819
    %v5821 = vrot.slane %v5820, 2
    %v5822 = vadd.f32 %v5820, %v5821
    %v5823 = vrot.slane %v5822, 1
    %v5824 = vadd.f32 %v5822, %v5823
    %v5825 = vsel %vm133, %v5569, 0.0
    %v5826 = vrot.slane %v5825, 4
    %v5827 = vadd.f32 %v5825, %v5826
    %v5828 = vrot.slane %v5827, 2
    %v5829 = vadd.f32 %v5827, %v5828
    %v5830 = vrot.slane %v5829, 1
    %v5831 = vadd.f32 %v5829, %v5830
    %v5832 = vsel %vm133, %v5570, 0.0
    %v5833 = vrot.slane %v5832, 4
    %v5834 = vadd.f32 %v5832, %v5833
    %v5835 = vrot.slane %v5834, 2
    %v5836 = vadd.f32 %v5834, %v5835
    %v5837 = vrot.slane %v5836, 1
    %v5838 = vadd.f32 %v5836, %v5837
    %v5839 = vsel %vm133, %v5571, 0.0
    %v5840 = vrot.slane %v5839, 4
    %v5841 = vadd.f32 %v5839, %v5840
    %v5842 = vrot.slane %v5841, 2
    %v5843 = vadd.f32 %v5841, %v5842
    %v5844 = vrot.slane %v5843, 1
    %v5845 = vadd.f32 %v5843, %v5844
    %v5846 = vsel %vm133, %v5572, 0.0
    %v5847 = vrot.slane %v5846, 4
    %v5848 = vadd.f32 %v5846, %v5847
    %v5849 = vrot.slane %v5848, 2
    %v5850 = vadd.f32 %v5848, %v5849
    %v5851 = vrot.slane %v5850, 1
    %v5852 = vadd.f32 %v5850, %v5851
    %v5853 = vsel %vm133, %v5573, 0.0
    %v5854 = vrot.slane %v5853, 4
    %v5855 = vadd.f32 %v5853, %v5854
    %v5856 = vrot.slane %v5855, 2
    %v5857 = vadd.f32 %v5855, %v5856
    %v5858 = vrot.slane %v5857, 1
    %v5859 = vadd.f32 %v5857, %v5858
    %v5860 = vsel %vm133, %v5574, 0.0
    %v5861 = vrot.slane %v5860, 4
    %v5862 = vadd.f32 %v5860, %v5861
    %v5863 = vrot.slane %v5862, 2
    %v5864 = vadd.f32 %v5862, %v5863
    %v5865 = vrot.slane %v5864, 1
    %v5866 = vadd.f32 %v5864, %v5865
    %v5867 = vsel %vm133, %v5575, 0.0
    %v5868 = vrot.slane %v5867, 4
    %v5869 = vadd.f32 %v5867, %v5868
    %v5870 = vrot.slane %v5869, 2
    %v5871 = vadd.f32 %v5869, %v5870
    %v5872 = vrot.slane %v5871, 1
    %v5873 = vadd.f32 %v5871, %v5872
    %v5874 = vsel %vm133, %v5576, 0.0
    %v5875 = vrot.slane %v5874, 4
    %v5876 = vadd.f32 %v5874, %v5875
    %v5877 = vrot.slane %v5876, 2
    %v5878 = vadd.f32 %v5876, %v5877
    %v5879 = vrot.slane %v5878, 1
    %v5880 = vadd.f32 %v5878, %v5879
    %v5881 = vsel %vm133, %v5577, 0.0
    %v5882 = vrot.slane %v5881, 4
    %v5883 = vadd.f32 %v5881, %v5882
    %v5884 = vrot.slane %v5883, 2
    %v5885 = vadd.f32 %v5883, %v5884
    %v5886 = vrot.slane %v5885, 1
    %v5887 = vadd.f32 %v5885, %v5886
    %v5888 = vsel %vm133, %v5578, 0.0
    %v5889 = vrot.slane %v5888, 4
    %v5890 = vadd.f32 %v5888, %v5889
    %v5891 = vrot.slane %v5890, 2
    %v5892 = vadd.f32 %v5890, %v5891
    %v5893 = vrot.slane %v5892, 1
    %v5894 = vadd.f32 %v5892, %v5893
    %v5895 = vsel %vm133, %v5579, 0.0
    %v5896 = vrot.slane %v5895, 4
    %v5897 = vadd.f32 %v5895, %v5896
    %v5898 = vrot.slane %v5897, 2
    %v5899 = vadd.f32 %v5897, %v5898
    %v5900 = vrot.slane %v5899, 1
    %v5901 = vadd.f32 %v5899, %v5900
    %v5902 = vsel %vm133, %v5580, 0.0
    %v5903 = vrot.slane %v5902, 4
    %v5904 = vadd.f32 %v5902, %v5903
    %v5905 = vrot.slane %v5904, 2
    %v5906 = vadd.f32 %v5904, %v5905
    %v5907 = vrot.slane %v5906, 1
    %v5908 = vadd.f32 %v5906, %v5907
    %v5909 = vsel %vm133, %v5581, 0.0
    %v5910 = vrot.slane %v5909, 4
    %v5911 = vadd.f32 %v5909, %v5910
    %v5912 = vrot.slane %v5911, 2
    %v5913 = vadd.f32 %v5911, %v5912
    %v5914 = vrot.slane %v5913, 1
    %v5915 = vadd.f32 %v5913, %v5914
    %v5916 = vsel %vm133, %v5582, 0.0
    %v5917 = vrot.slane %v5916, 4
    %v5918 = vadd.f32 %v5916, %v5917
    %v5919 = vrot.slane %v5918, 2
    %v5920 = vadd.f32 %v5918, %v5919
    %v5921 = vrot.slane %v5920, 1
    %v5922 = vadd.f32 %v5920, %v5921
    %v5923 = vsel %vm133, %v5583, 0.0
    %v5924 = vrot.slane %v5923, 4
    %v5925 = vadd.f32 %v5923, %v5924
    %v5926 = vrot.slane %v5925, 2
    %v5927 = vadd.f32 %v5925, %v5926
    %v5928 = vrot.slane %v5927, 1
    %v5929 = vadd.f32 %v5927, %v5928
    %v5930 = vsel %vm133, %v5584, 0.0
    %v5931 = vrot.slane %v5930, 4
    %v5932 = vadd.f32 %v5930, %v5931
    %v5933 = vrot.slane %v5932, 2
    %v5934 = vadd.f32 %v5932, %v5933
    %v5935 = vrot.slane %v5934, 1
    %v5936 = vadd.f32 %v5934, %v5935
    %v5937 = vsel %vm133, %v5585, 0.0
    %v5938 = vrot.slane %v5937, 4
    %v5939 = vadd.f32 %v5937, %v5938
    %v5940 = vrot.slane %v5939, 2
    %v5941 = vadd.f32 %v5939, %v5940
    %v5942 = vrot.slane %v5941, 1
    %v5943 = vadd.f32 %v5941, %v5942
    %v5944 = vsel %vm133, %v5586, 0.0
    %v5945 = vrot.slane %v5944, 4
    %v5946 = vadd.f32 %v5944, %v5945
    %v5947 = vrot.slane %v5946, 2
    %v5948 = vadd.f32 %v5946, %v5947
    %v5949 = vrot.slane %v5948, 1
    %v5950 = vadd.f32 %v5948, %v5949
    %v5951 = vsel %vm133, %v5587, 0.0
    %v5952 = vrot.slane %v5951, 4
    %v5953 = vadd.f32 %v5951, %v5952
    %v5954 = vrot.slane %v5953, 2
    %v5955 = vadd.f32 %v5953, %v5954
    %v5956 = vrot.slane %v5955, 1
    %v5957 = vadd.f32 %v5955, %v5956
    %v5958 = vsel %vm133, %v5588, 0.0
    %v5959 = vrot.slane %v5958, 4
    %v5960 = vadd.f32 %v5958, %v5959
    %v5961 = vrot.slane %v5960, 2
    %v5962 = vadd.f32 %v5960, %v5961
    %v5963 = vrot.slane %v5962, 1
    %v5964 = vadd.f32 %v5962, %v5963
    %v5965 = vsel %vm133, %v5589, 0.0
    %v5966 = vrot.slane %v5965, 4
    %v5967 = vadd.f32 %v5965, %v5966
    %v5968 = vrot.slane %v5967, 2
    %v5969 = vadd.f32 %v5967, %v5968
    %v5970 = vrot.slane %v5969, 1
    %v5971 = vadd.f32 %v5969, %v5970
    %v5972 = vsel %vm133, %v5590, 0.0
    %v5973 = vrot.slane %v5972, 4
    %v5974 = vadd.f32 %v5972, %v5973
    %v5975 = vrot.slane %v5974, 2
    %v5976 = vadd.f32 %v5974, %v5975
    %v5977 = vrot.slane %v5976, 1
    %v5978 = vadd.f32 %v5976, %v5977
    %v5979 = vsel %vm133, %v5591, 0.0
    %v5980 = vrot.slane %v5979, 4
    %v5981 = vadd.f32 %v5979, %v5980
    %v5982 = vrot.slane %v5981, 2
    %v5983 = vadd.f32 %v5981, %v5982
    %v5984 = vrot.slane %v5983, 1
    %v5985 = vadd.f32 %v5983, %v5984
    %v5986 = vsel %vm133, %v5592, 0.0
    %v5987 = vrot.slane %v5986, 4
    %v5988 = vadd.f32 %v5986, %v5987
    %v5989 = vrot.slane %v5988, 2
    %v5990 = vadd.f32 %v5988, %v5989
    %v5991 = vrot.slane %v5990, 1
    %v5992 = vadd.f32 %v5990, %v5991
    %v5993 = vsel %vm133, %v5593, 0.0
    %v5994 = vrot.slane %v5993, 4
    %v5995 = vadd.f32 %v5993, %v5994
    %v5996 = vrot.slane %v5995, 2
    %v5997 = vadd.f32 %v5995, %v5996
    %v5998 = vrot.slane %v5997, 1
    %v5999 = vadd.f32 %v5997, %v5998
    %v6000 = vsel %vm133, %v5594, 0.0
    %v6001 = vrot.slane %v6000, 4
    %v6002 = vadd.f32 %v6000, %v6001
    %v6003 = vrot.slane %v6002, 2
    %v6004 = vadd.f32 %v6002, %v6003
    %v6005 = vrot.slane %v6004, 1
    %v6006 = vadd.f32 %v6004, %v6005
    %v6007 = vsel %vm133, %v5595, 0.0
    %v6008 = vrot.slane %v6007, 4
    %v6009 = vadd.f32 %v6007, %v6008
    %v6010 = vrot.slane %v6009, 2
    %v6011 = vadd.f32 %v6009, %v6010
    %v6012 = vrot.slane %v6011, 1
    %v6013 = vadd.f32 %v6011, %v6012
    %v6014 = vsel %vm133, %v5596, 0.0
    %v6015 = vrot.slane %v6014, 4
    %v6016 = vadd.f32 %v6014, %v6015
    %v6017 = vrot.slane %v6016, 2
    %v6018 = vadd.f32 %v6016, %v6017
    %v6019 = vrot.slane %v6018, 1
    %v6020 = vadd.f32 %v6018, %v6019
    %v6021 = vsel %vm133, %v5597, 0.0
    %v6022 = vrot.slane %v6021, 4
    %v6023 = vadd.f32 %v6021, %v6022
    %v6024 = vrot.slane %v6023, 2
    %v6025 = vadd.f32 %v6023, %v6024
    %v6026 = vrot.slane %v6025, 1
    %v6027 = vadd.f32 %v6025, %v6026
    %v6028 = vsel %vm133, %v5598, 0.0
    %v6029 = vrot.slane %v6028, 4
    %v6030 = vadd.f32 %v6028, %v6029
    %v6031 = vrot.slane %v6030, 2
    %v6032 = vadd.f32 %v6030, %v6031
    %v6033 = vrot.slane %v6032, 1
    %v6034 = vadd.f32 %v6032, %v6033
    %v6035 = vsel %vm133, %v5599, 0.0
    %v6036 = vrot.slane %v6035, 4
    %v6037 = vadd.f32 %v6035, %v6036
    %v6038 = vrot.slane %v6037, 2
    %v6039 = vadd.f32 %v6037, %v6038
    %v6040 = vrot.slane %v6039, 1
    %v6041 = vadd.f32 %v6039, %v6040
    %v6042 = vsel %vm133, %v5600, 0.0
    %v6043 = vrot.slane %v6042, 4
    %v6044 = vadd.f32 %v6042, %v6043
    %v6045 = vrot.slane %v6044, 2
    %v6046 = vadd.f32 %v6044, %v6045
    %v6047 = vrot.slane %v6046, 1
    %v6048 = vadd.f32 %v6046, %v6047
    %v6113 = vsel %vm4281, %v5614, %v5607
    %v6114 = vsel %vm4283, %v5621, %v6113
    %v6115 = vsel %vm4285, %v5628, %v6114
    %v6116 = vsel %vm4287, %v5635, %v6115
    %v6117 = vsel %vm4289, %v5642, %v6116
    %v6118 = vsel %vm4291, %v5649, %v6117
    %v6119 = vsel %vm4293, %v5656, %v6118
    %v6120 = vsel %vm4281, %v5670, %v5663
    %v6121 = vsel %vm4283, %v5677, %v6120
    %v6122 = vsel %vm4285, %v5684, %v6121
    %v6123 = vsel %vm4287, %v5691, %v6122
    %v6124 = vsel %vm4289, %v5698, %v6123
    %v6125 = vsel %vm4291, %v5705, %v6124
    %v6126 = vsel %vm4293, %v5712, %v6125
    %v6127 = vsel %vm4281, %v5726, %v5719
    %v6128 = vsel %vm4283, %v5733, %v6127
    %v6129 = vsel %vm4285, %v5740, %v6128
    %v6130 = vsel %vm4287, %v5747, %v6129
    %v6131 = vsel %vm4289, %v5754, %v6130
    %v6132 = vsel %vm4291, %v5761, %v6131
    %v6133 = vsel %vm4293, %v5768, %v6132
    %v6134 = vsel %vm4281, %v5782, %v5775
    %v6135 = vsel %vm4283, %v5789, %v6134
    %v6136 = vsel %vm4285, %v5796, %v6135
    %v6137 = vsel %vm4287, %v5803, %v6136
    %v6138 = vsel %vm4289, %v5810, %v6137
    %v6139 = vsel %vm4291, %v5817, %v6138
    %v6140 = vsel %vm4293, %v5824, %v6139
    %v6141 = vsel %vm4281, %v5838, %v5831
    %v6142 = vsel %vm4283, %v5845, %v6141
    %v6143 = vsel %vm4285, %v5852, %v6142
    %v6144 = vsel %vm4287, %v5859, %v6143
    %v6145 = vsel %vm4289, %v5866, %v6144
    %v6146 = vsel %vm4291, %v5873, %v6145
    %v6147 = vsel %vm4293, %v5880, %v6146
    %v6148 = vsel %vm4281, %v5894, %v5887
    %v6149 = vsel %vm4283, %v5901, %v6148
    %v6150 = vsel %vm4285, %v5908, %v6149
    %v6151 = vsel %vm4287, %v5915, %v6150
    %v6152 = vsel %vm4289, %v5922, %v6151
    %v6153 = vsel %vm4291, %v5929, %v6152
    %v6154 = vsel %vm4293, %v5936, %v6153
    %v6155 = vsel %vm4281, %v5950, %v5943
    %v6156 = vsel %vm4283, %v5957, %v6155
    %v6157 = vsel %vm4285, %v5964, %v6156
    %v6158 = vsel %vm4287, %v5971, %v6157
    %v6159 = vsel %vm4289, %v5978, %v6158
    %v6160 = vsel %vm4291, %v5985, %v6159
    %v6161 = vsel %vm4293, %v5992, %v6160
    %v6162 = vsel %vm4281, %v6006, %v5999
    %v6163 = vsel %vm4283, %v6013, %v6162
    %v6164 = vsel %vm4285, %v6020, %v6163
    %v6165 = vsel %vm4287, %v6027, %v6164
    %v6166 = vsel %vm4289, %v6034, %v6165
    %v6167 = vsel %vm4291, %v6041, %v6166
    %v6168 = vsel %vm4293, %v6048, %v6167
    %6169 = vrot.lane.b32.xlu0 %v6119, 64
    %v6170 = vpop.permute.xlu0 %6169
    %6171 = vrot.lane.b32.xlu0 %v6126, 64
    %v6172 = vpop.permute.xlu0 %6171
    %6173 = vrot.lane.b32.xlu0 %v6133, 64
    %v6174 = vpop.permute.xlu0 %6173
    %6175 = vrot.lane.b32.xlu0 %v6140, 64
    %v6176 = vpop.permute.xlu0 %6175
    %6177 = vrot.lane.b32.xlu0 %v6147, 64
    %v6178 = vpop.permute.xlu0 %6177
    %6179 = vrot.lane.b32.xlu0 %v6154, 64
    %v6180 = vpop.permute.xlu0 %6179
    %6181 = vrot.lane.b32.xlu0 %v6161, 64
    %v6182 = vpop.permute.xlu0 %6181
    %6183 = vrot.lane.b32.xlu0 %v6168, 64
    %v6184 = vpop.permute.xlu0 %6183
    %vm6193 = vcmask 785920
    %6194 = vst.msk [vmem:[#allocation2] sm:$0xff] %vm6193, %v6170
    %6195 = vst.msk [vmem:[#allocation2 + $0x8] sm:$0xff] %vm6193, %v6172
    %6196 = vst.msk [vmem:[#allocation2 + $0x10] sm:$0xff] %vm6193, %v6174
    %6197 = vst.msk [vmem:[#allocation2 + $0x18] sm:$0xff] %vm6193, %v6176
    %6198 = vst.msk [vmem:[#allocation2 + $0x20] sm:$0xff] %vm6193, %v6178
    %6199 = vst.msk [vmem:[#allocation2 + $0x28] sm:$0xff] %vm6193, %v6180
    %6200 = vst.msk [vmem:[#allocation2 + $0x30] sm:$0xff] %vm6193, %v6182
    %6201 = vst.msk [vmem:[#allocation2 + $0x38] sm:$0xff] %vm6193, %v6184
    %6202 = vset.pattern.permute.xlu0 3
    %6203 = vperm.xlu0 %6202, %v3257
    %v6204 = vpop.permute.xlu0 %6203
    %6206 = vset.pattern.permute.xlu0 3
    %6207 = vperm.xlu0 %6206, %v3258
    %v6208 = vpop.permute.xlu0 %6207
    %6210 = vset.pattern.permute.xlu0 3
    %6211 = vperm.xlu0 %6210, %v3259
    %v6212 = vpop.permute.xlu0 %6211
    %6214 = vset.pattern.permute.xlu0 3
    %6215 = vperm.xlu0 %6214, %v3260
    %v6216 = vpop.permute.xlu0 %6215
    %6218 = vset.pattern.permute.xlu0 3
    %6219 = vperm.xlu0 %6218, %v3261
    %v6220 = vpop.permute.xlu0 %6219
    %6222 = vset.pattern.permute.xlu0 3
    %6223 = vperm.xlu0 %6222, %v3262
    %v6224 = vpop.permute.xlu0 %6223
    %6226 = vset.pattern.permute.xlu0 3
    %6227 = vperm.xlu0 %6226, %v3263
    %v6228 = vpop.permute.xlu0 %6227
    %6230 = vset.pattern.permute.xlu0 3
    %6231 = vperm.xlu0 %6230, %v3264
    %v6232 = vpop.permute.xlu0 %6231
    %6234 = vset.pattern.permute.xlu0 3
    %6235 = vperm.xlu0 %6234, %v3265
    %v6236 = vpop.permute.xlu0 %6235
    %6238 = vset.pattern.permute.xlu0 3
    %6239 = vperm.xlu0 %6238, %v3266
    %v6240 = vpop.permute.xlu0 %6239
    %6242 = vset.pattern.permute.xlu0 3
    %6243 = vperm.xlu0 %6242, %v3267
    %v6244 = vpop.permute.xlu0 %6243
    %6246 = vset.pattern.permute.xlu0 3
    %6247 = vperm.xlu0 %6246, %v3268
    %v6248 = vpop.permute.xlu0 %6247
    %6250 = vset.pattern.permute.xlu0 3
    %6251 = vperm.xlu0 %6250, %v3269
    %v6252 = vpop.permute.xlu0 %6251
    %6254 = vset.pattern.permute.xlu0 3
    %6255 = vperm.xlu0 %6254, %v3270
    %v6256 = vpop.permute.xlu0 %6255
    %6258 = vset.pattern.permute.xlu0 3
    %6259 = vperm.xlu0 %6258, %v3271
    %v6260 = vpop.permute.xlu0 %6259
    %6262 = vset.pattern.permute.xlu0 3
    %6263 = vperm.xlu0 %6262, %v3272
    %v6264 = vpop.permute.xlu0 %6263
    %6266 = vset.pattern.permute.xlu0 3
    %6267 = vperm.xlu0 %6266, %v3273
    %v6268 = vpop.permute.xlu0 %6267
    %6270 = vset.pattern.permute.xlu0 3
    %6271 = vperm.xlu0 %6270, %v3274
    %v6272 = vpop.permute.xlu0 %6271
    %6274 = vset.pattern.permute.xlu0 3
    %6275 = vperm.xlu0 %6274, %v3275
    %v6276 = vpop.permute.xlu0 %6275
    %6278 = vset.pattern.permute.xlu0 3
    %6279 = vperm.xlu0 %6278, %v3276
    %v6280 = vpop.permute.xlu0 %6279
    %6282 = vset.pattern.permute.xlu0 3
    %6283 = vperm.xlu0 %6282, %v3277
    %v6284 = vpop.permute.xlu0 %6283
    %6286 = vset.pattern.permute.xlu0 3
    %6287 = vperm.xlu0 %6286, %v3278
    %v6288 = vpop.permute.xlu0 %6287
    %6290 = vset.pattern.permute.xlu0 3
    %6291 = vperm.xlu0 %6290, %v3279
    %v6292 = vpop.permute.xlu0 %6291
    %6294 = vset.pattern.permute.xlu0 3
    %6295 = vperm.xlu0 %6294, %v3280
    %v6296 = vpop.permute.xlu0 %6295
    %6298 = vset.pattern.permute.xlu0 3
    %6299 = vperm.xlu0 %6298, %v3281
    %v6300 = vpop.permute.xlu0 %6299
    %6302 = vset.pattern.permute.xlu0 3
    %6303 = vperm.xlu0 %6302, %v3282
    %v6304 = vpop.permute.xlu0 %6303
    %6306 = vset.pattern.permute.xlu0 3
    %6307 = vperm.xlu0 %6306, %v3283
    %v6308 = vpop.permute.xlu0 %6307
    %6310 = vset.pattern.permute.xlu0 3
    %6311 = vperm.xlu0 %6310, %v3284
    %v6312 = vpop.permute.xlu0 %6311
    %6314 = vset.pattern.permute.xlu0 3
    %6315 = vperm.xlu0 %6314, %v3285
    %v6316 = vpop.permute.xlu0 %6315
    %6318 = vset.pattern.permute.xlu0 3
    %6319 = vperm.xlu0 %6318, %v3286
    %v6320 = vpop.permute.xlu0 %6319
    %6322 = vset.pattern.permute.xlu0 3
    %6323 = vperm.xlu0 %6322, %v3287
    %v6324 = vpop.permute.xlu0 %6323
    %6326 = vset.pattern.permute.xlu0 3
    %6327 = vperm.xlu0 %6326, %v3288
    %v6328 = vpop.permute.xlu0 %6327
    %6330 = vset.pattern.permute.xlu0 3
    %6331 = vperm.xlu0 %6330, %v3289
    %v6332 = vpop.permute.xlu0 %6331
    %6334 = vset.pattern.permute.xlu0 3
    %6335 = vperm.xlu0 %6334, %v3290
    %v6336 = vpop.permute.xlu0 %6335
    %6338 = vset.pattern.permute.xlu0 3
    %6339 = vperm.xlu0 %6338, %v3291
    %v6340 = vpop.permute.xlu0 %6339
    %6342 = vset.pattern.permute.xlu0 3
    %6343 = vperm.xlu0 %6342, %v3292
    %v6344 = vpop.permute.xlu0 %6343
    %6346 = vset.pattern.permute.xlu0 3
    %6347 = vperm.xlu0 %6346, %v3293
    %v6348 = vpop.permute.xlu0 %6347
    %6350 = vset.pattern.permute.xlu0 3
    %6351 = vperm.xlu0 %6350, %v3294
    %v6352 = vpop.permute.xlu0 %6351
    %6354 = vset.pattern.permute.xlu0 3
    %6355 = vperm.xlu0 %6354, %v3295
    %v6356 = vpop.permute.xlu0 %6355
    %6358 = vset.pattern.permute.xlu0 3
    %6359 = vperm.xlu0 %6358, %v3296
    %v6360 = vpop.permute.xlu0 %6359
    %6362 = vset.pattern.permute.xlu0 3
    %6363 = vperm.xlu0 %6362, %v3297
    %v6364 = vpop.permute.xlu0 %6363
    %6366 = vset.pattern.permute.xlu0 3
    %6367 = vperm.xlu0 %6366, %v3298
    %v6368 = vpop.permute.xlu0 %6367
    %6370 = vset.pattern.permute.xlu0 3
    %6371 = vperm.xlu0 %6370, %v3299
    %v6372 = vpop.permute.xlu0 %6371
    %6374 = vset.pattern.permute.xlu0 3
    %6375 = vperm.xlu0 %6374, %v3300
    %v6376 = vpop.permute.xlu0 %6375
    %6378 = vset.pattern.permute.xlu0 3
    %6379 = vperm.xlu0 %6378, %v3301
    %v6380 = vpop.permute.xlu0 %6379
    %6382 = vset.pattern.permute.xlu0 3
    %6383 = vperm.xlu0 %6382, %v3302
    %v6384 = vpop.permute.xlu0 %6383
    %6386 = vset.pattern.permute.xlu0 3
    %6387 = vperm.xlu0 %6386, %v3303
    %v6388 = vpop.permute.xlu0 %6387
    %6390 = vset.pattern.permute.xlu0 3
    %6391 = vperm.xlu0 %6390, %v3304
    %v6392 = vpop.permute.xlu0 %6391
    %6394 = vset.pattern.permute.xlu0 3
    %6395 = vperm.xlu0 %6394, %v3305
    %v6396 = vpop.permute.xlu0 %6395
    %6398 = vset.pattern.permute.xlu0 3
    %6399 = vperm.xlu0 %6398, %v3306
    %v6400 = vpop.permute.xlu0 %6399
    %6402 = vset.pattern.permute.xlu0 3
    %6403 = vperm.xlu0 %6402, %v3307
    %v6404 = vpop.permute.xlu0 %6403
    %6406 = vset.pattern.permute.xlu0 3
    %6407 = vperm.xlu0 %6406, %v3308
    %v6408 = vpop.permute.xlu0 %6407
    %6410 = vset.pattern.permute.xlu0 3
    %6411 = vperm.xlu0 %6410, %v3309
    %v6412 = vpop.permute.xlu0 %6411
    %6414 = vset.pattern.permute.xlu0 3
    %6415 = vperm.xlu0 %6414, %v3310
    %v6416 = vpop.permute.xlu0 %6415
    %6418 = vset.pattern.permute.xlu0 3
    %6419 = vperm.xlu0 %6418, %v3311
    %v6420 = vpop.permute.xlu0 %6419
    %6422 = vset.pattern.permute.xlu0 3
    %6423 = vperm.xlu0 %6422, %v3312
    %v6424 = vpop.permute.xlu0 %6423
    %6426 = vset.pattern.permute.xlu0 3
    %6427 = vperm.xlu0 %6426, %v3313
    %v6428 = vpop.permute.xlu0 %6427
    %6430 = vset.pattern.permute.xlu0 3
    %6431 = vperm.xlu0 %6430, %v3314
    %v6432 = vpop.permute.xlu0 %6431
    %6434 = vset.pattern.permute.xlu0 3
    %6435 = vperm.xlu0 %6434, %v3315
    %v6436 = vpop.permute.xlu0 %6435
    %6438 = vset.pattern.permute.xlu0 3
    %6439 = vperm.xlu0 %6438, %v3316
    %v6440 = vpop.permute.xlu0 %6439
    %6442 = vset.pattern.permute.xlu0 3
    %6443 = vperm.xlu0 %6442, %v3317
    %v6444 = vpop.permute.xlu0 %6443
    %6446 = vset.pattern.permute.xlu0 3
    %6447 = vperm.xlu0 %6446, %v3318
    %v6448 = vpop.permute.xlu0 %6447
    %6450 = vset.pattern.permute.xlu0 3
    %6451 = vperm.xlu0 %6450, %v3319
    %v6452 = vpop.permute.xlu0 %6451
    %6454 = vset.pattern.permute.xlu0 3
    %6455 = vperm.xlu0 %6454, %v3320
    %v6456 = vpop.permute.xlu0 %6455
    %v6458 = vmul.f32 %v6204, %v21
    %v6459 = vmul.f32 %v6208, %v22
    %v6460 = vmul.f32 %v6212, %v23
    %v6461 = vmul.f32 %v6216, %v24
    %v6462 = vmul.f32 %v6220, %v25
    %v6463 = vmul.f32 %v6224, %v26
    %v6464 = vmul.f32 %v6228, %v27
    %v6465 = vmul.f32 %v6232, %v28
    %v6466 = vmul.f32 %v6236, %v29
    %v6467 = vmul.f32 %v6240, %v30
    %v6468 = vmul.f32 %v6244, %v31
    %v6469 = vmul.f32 %v6248, %v32
    %v6470 = vmul.f32 %v6252, %v33
    %v6471 = vmul.f32 %v6256, %v34
    %v6472 = vmul.f32 %v6260, %v35
    %v6473 = vmul.f32 %v6264, %v36
    %v6474 = vmul.f32 %v6268, %v37
    %v6475 = vmul.f32 %v6272, %v38
    %v6476 = vmul.f32 %v6276, %v39
    %v6477 = vmul.f32 %v6280, %v40
    %v6478 = vmul.f32 %v6284, %v41
    %v6479 = vmul.f32 %v6288, %v42
    %v6480 = vmul.f32 %v6292, %v43
    %v6481 = vmul.f32 %v6296, %v44
    %v6482 = vmul.f32 %v6300, %v45
    %v6483 = vmul.f32 %v6304, %v46
    %v6484 = vmul.f32 %v6308, %v47
    %v6485 = vmul.f32 %v6312, %v48
    %v6486 = vmul.f32 %v6316, %v49
    %v6487 = vmul.f32 %v6320, %v50
    %v6488 = vmul.f32 %v6324, %v51
    %v6489 = vmul.f32 %v6328, %v52
    %v6490 = vmul.f32 %v6332, %v53
    %v6491 = vmul.f32 %v6336, %v54
    %v6492 = vmul.f32 %v6340, %v55
    %v6493 = vmul.f32 %v6344, %v56
    %v6494 = vmul.f32 %v6348, %v57
    %v6495 = vmul.f32 %v6352, %v58
    %v6496 = vmul.f32 %v6356, %v59
    %v6497 = vmul.f32 %v6360, %v60
    %v6498 = vmul.f32 %v6364, %v61
    %v6499 = vmul.f32 %v6368, %v62
    %v6500 = vmul.f32 %v6372, %v63
    %v6501 = vmul.f32 %v6376, %v64
    %v6502 = vmul.f32 %v6380, %v65
    %v6503 = vmul.f32 %v6384, %v66
    %v6504 = vmul.f32 %v6388, %v67
    %v6505 = vmul.f32 %v6392, %v68
    %v6506 = vmul.f32 %v6396, %v69
    %v6507 = vmul.f32 %v6400, %v70
    %v6508 = vmul.f32 %v6404, %v71
    %v6509 = vmul.f32 %v6408, %v72
    %v6510 = vmul.f32 %v6412, %v73
    %v6511 = vmul.f32 %v6416, %v74
    %v6512 = vmul.f32 %v6420, %v75
    %v6513 = vmul.f32 %v6424, %v76
    %v6514 = vmul.f32 %v6428, %v77
    %v6515 = vmul.f32 %v6432, %v78
    %v6516 = vmul.f32 %v6436, %v79
    %v6517 = vmul.f32 %v6440, %v80
    %v6518 = vmul.f32 %v6444, %v81
    %v6519 = vmul.f32 %v6448, %v82
    %v6520 = vmul.f32 %v6452, %v83
    %v6521 = vmul.f32 %v6456, %v84
    %v6522 = vsel %vm133, %v6458, 0.0
    %v6523 = vrot.slane %v6522, 4
    %v6524 = vadd.f32 %v6522, %v6523
    %v6525 = vrot.slane %v6524, 2
    %v6526 = vadd.f32 %v6524, %v6525
    %v6527 = vrot.slane %v6526, 1
    %v6528 = vadd.f32 %v6526, %v6527
    %v6529 = vsel %vm133, %v6459, 0.0
    %v6530 = vrot.slane %v6529, 4
    %v6531 = vadd.f32 %v6529, %v6530
    %v6532 = vrot.slane %v6531, 2
    %v6533 = vadd.f32 %v6531, %v6532
    %v6534 = vrot.slane %v6533, 1
    %v6535 = vadd.f32 %v6533, %v6534
    %v6536 = vsel %vm133, %v6460, 0.0
    %v6537 = vrot.slane %v6536, 4
    %v6538 = vadd.f32 %v6536, %v6537
    %v6539 = vrot.slane %v6538, 2
    %v6540 = vadd.f32 %v6538, %v6539
    %v6541 = vrot.slane %v6540, 1
    %v6542 = vadd.f32 %v6540, %v6541
    %v6543 = vsel %vm133, %v6461, 0.0
    %v6544 = vrot.slane %v6543, 4
    %v6545 = vadd.f32 %v6543, %v6544
    %v6546 = vrot.slane %v6545, 2
    %v6547 = vadd.f32 %v6545, %v6546
    %v6548 = vrot.slane %v6547, 1
    %v6549 = vadd.f32 %v6547, %v6548
    %v6550 = vsel %vm133, %v6462, 0.0
    %v6551 = vrot.slane %v6550, 4
    %v6552 = vadd.f32 %v6550, %v6551
    %v6553 = vrot.slane %v6552, 2
    %v6554 = vadd.f32 %v6552, %v6553
    %v6555 = vrot.slane %v6554, 1
    %v6556 = vadd.f32 %v6554, %v6555
    %v6557 = vsel %vm133, %v6463, 0.0
    %v6558 = vrot.slane %v6557, 4
    %v6559 = vadd.f32 %v6557, %v6558
    %v6560 = vrot.slane %v6559, 2
    %v6561 = vadd.f32 %v6559, %v6560
    %v6562 = vrot.slane %v6561, 1
    %v6563 = vadd.f32 %v6561, %v6562
    %v6564 = vsel %vm133, %v6464, 0.0
    %v6565 = vrot.slane %v6564, 4
    %v6566 = vadd.f32 %v6564, %v6565
    %v6567 = vrot.slane %v6566, 2
    %v6568 = vadd.f32 %v6566, %v6567
    %v6569 = vrot.slane %v6568, 1
    %v6570 = vadd.f32 %v6568, %v6569
    %v6571 = vsel %vm133, %v6465, 0.0
    %v6572 = vrot.slane %v6571, 4
    %v6573 = vadd.f32 %v6571, %v6572
    %v6574 = vrot.slane %v6573, 2
    %v6575 = vadd.f32 %v6573, %v6574
    %v6576 = vrot.slane %v6575, 1
    %v6577 = vadd.f32 %v6575, %v6576
    %v6578 = vsel %vm133, %v6466, 0.0
    %v6579 = vrot.slane %v6578, 4
    %v6580 = vadd.f32 %v6578, %v6579
    %v6581 = vrot.slane %v6580, 2
    %v6582 = vadd.f32 %v6580, %v6581
    %v6583 = vrot.slane %v6582, 1
    %v6584 = vadd.f32 %v6582, %v6583
    %v6585 = vsel %vm133, %v6467, 0.0
    %v6586 = vrot.slane %v6585, 4
    %v6587 = vadd.f32 %v6585, %v6586
    %v6588 = vrot.slane %v6587, 2
    %v6589 = vadd.f32 %v6587, %v6588
    %v6590 = vrot.slane %v6589, 1
    %v6591 = vadd.f32 %v6589, %v6590
    %v6592 = vsel %vm133, %v6468, 0.0
    %v6593 = vrot.slane %v6592, 4
    %v6594 = vadd.f32 %v6592, %v6593
    %v6595 = vrot.slane %v6594, 2
    %v6596 = vadd.f32 %v6594, %v6595
    %v6597 = vrot.slane %v6596, 1
    %v6598 = vadd.f32 %v6596, %v6597
    %v6599 = vsel %vm133, %v6469, 0.0
    %v6600 = vrot.slane %v6599, 4
    %v6601 = vadd.f32 %v6599, %v6600
    %v6602 = vrot.slane %v6601, 2
    %v6603 = vadd.f32 %v6601, %v6602
    %v6604 = vrot.slane %v6603, 1
    %v6605 = vadd.f32 %v6603, %v6604
    %v6606 = vsel %vm133, %v6470, 0.0
    %v6607 = vrot.slane %v6606, 4
    %v6608 = vadd.f32 %v6606, %v6607
    %v6609 = vrot.slane %v6608, 2
    %v6610 = vadd.f32 %v6608, %v6609
    %v6611 = vrot.slane %v6610, 1
    %v6612 = vadd.f32 %v6610, %v6611
    %v6613 = vsel %vm133, %v6471, 0.0
    %v6614 = vrot.slane %v6613, 4
    %v6615 = vadd.f32 %v6613, %v6614
    %v6616 = vrot.slane %v6615, 2
    %v6617 = vadd.f32 %v6615, %v6616
    %v6618 = vrot.slane %v6617, 1
    %v6619 = vadd.f32 %v6617, %v6618
    %v6620 = vsel %vm133, %v6472, 0.0
    %v6621 = vrot.slane %v6620, 4
    %v6622 = vadd.f32 %v6620, %v6621
    %v6623 = vrot.slane %v6622, 2
    %v6624 = vadd.f32 %v6622, %v6623
    %v6625 = vrot.slane %v6624, 1
    %v6626 = vadd.f32 %v6624, %v6625
    %v6627 = vsel %vm133, %v6473, 0.0
    %v6628 = vrot.slane %v6627, 4
    %v6629 = vadd.f32 %v6627, %v6628
    %v6630 = vrot.slane %v6629, 2
    %v6631 = vadd.f32 %v6629, %v6630
    %v6632 = vrot.slane %v6631, 1
    %v6633 = vadd.f32 %v6631, %v6632
    %v6634 = vsel %vm133, %v6474, 0.0
    %v6635 = vrot.slane %v6634, 4
    %v6636 = vadd.f32 %v6634, %v6635
    %v6637 = vrot.slane %v6636, 2
    %v6638 = vadd.f32 %v6636, %v6637
    %v6639 = vrot.slane %v6638, 1
    %v6640 = vadd.f32 %v6638, %v6639
    %v6641 = vsel %vm133, %v6475, 0.0
    %v6642 = vrot.slane %v6641, 4
    %v6643 = vadd.f32 %v6641, %v6642
    %v6644 = vrot.slane %v6643, 2
    %v6645 = vadd.f32 %v6643, %v6644
    %v6646 = vrot.slane %v6645, 1
    %v6647 = vadd.f32 %v6645, %v6646
    %v6648 = vsel %vm133, %v6476, 0.0
    %v6649 = vrot.slane %v6648, 4
    %v6650 = vadd.f32 %v6648, %v6649
    %v6651 = vrot.slane %v6650, 2
    %v6652 = vadd.f32 %v6650, %v6651
    %v6653 = vrot.slane %v6652, 1
    %v6654 = vadd.f32 %v6652, %v6653
    %v6655 = vsel %vm133, %v6477, 0.0
    %v6656 = vrot.slane %v6655, 4
    %v6657 = vadd.f32 %v6655, %v6656
    %v6658 = vrot.slane %v6657, 2
    %v6659 = vadd.f32 %v6657, %v6658
    %v6660 = vrot.slane %v6659, 1
    %v6661 = vadd.f32 %v6659, %v6660
    %v6662 = vsel %vm133, %v6478, 0.0
    %v6663 = vrot.slane %v6662, 4
    %v6664 = vadd.f32 %v6662, %v6663
    %v6665 = vrot.slane %v6664, 2
    %v6666 = vadd.f32 %v6664, %v6665
    %v6667 = vrot.slane %v6666, 1
    %v6668 = vadd.f32 %v6666, %v6667
    %v6669 = vsel %vm133, %v6479, 0.0
    %v6670 = vrot.slane %v6669, 4
    %v6671 = vadd.f32 %v6669, %v6670
    %v6672 = vrot.slane %v6671, 2
    %v6673 = vadd.f32 %v6671, %v6672
    %v6674 = vrot.slane %v6673, 1
    %v6675 = vadd.f32 %v6673, %v6674
    %v6676 = vsel %vm133, %v6480, 0.0
    %v6677 = vrot.slane %v6676, 4
    %v6678 = vadd.f32 %v6676, %v6677
    %v6679 = vrot.slane %v6678, 2
    %v6680 = vadd.f32 %v6678, %v6679
    %v6681 = vrot.slane %v6680, 1
    %v6682 = vadd.f32 %v6680, %v6681
    %v6683 = vsel %vm133, %v6481, 0.0
    %v6684 = vrot.slane %v6683, 4
    %v6685 = vadd.f32 %v6683, %v6684
    %v6686 = vrot.slane %v6685, 2
    %v6687 = vadd.f32 %v6685, %v6686
    %v6688 = vrot.slane %v6687, 1
    %v6689 = vadd.f32 %v6687, %v6688
    %v6690 = vsel %vm133, %v6482, 0.0
    %v6691 = vrot.slane %v6690, 4
    %v6692 = vadd.f32 %v6690, %v6691
    %v6693 = vrot.slane %v6692, 2
    %v6694 = vadd.f32 %v6692, %v6693
    %v6695 = vrot.slane %v6694, 1
    %v6696 = vadd.f32 %v6694, %v6695
    %v6697 = vsel %vm133, %v6483, 0.0
    %v6698 = vrot.slane %v6697, 4
    %v6699 = vadd.f32 %v6697, %v6698
    %v6700 = vrot.slane %v6699, 2
    %v6701 = vadd.f32 %v6699, %v6700
    %v6702 = vrot.slane %v6701, 1
    %v6703 = vadd.f32 %v6701, %v6702
    %v6704 = vsel %vm133, %v6484, 0.0
    %v6705 = vrot.slane %v6704, 4
    %v6706 = vadd.f32 %v6704, %v6705
    %v6707 = vrot.slane %v6706, 2
    %v6708 = vadd.f32 %v6706, %v6707
    %v6709 = vrot.slane %v6708, 1
    %v6710 = vadd.f32 %v6708, %v6709
    %v6711 = vsel %vm133, %v6485, 0.0
    %v6712 = vrot.slane %v6711, 4
    %v6713 = vadd.f32 %v6711, %v6712
    %v6714 = vrot.slane %v6713, 2
    %v6715 = vadd.f32 %v6713, %v6714
    %v6716 = vrot.slane %v6715, 1
    %v6717 = vadd.f32 %v6715, %v6716
    %v6718 = vsel %vm133, %v6486, 0.0
    %v6719 = vrot.slane %v6718, 4
    %v6720 = vadd.f32 %v6718, %v6719
    %v6721 = vrot.slane %v6720, 2
    %v6722 = vadd.f32 %v6720, %v6721
    %v6723 = vrot.slane %v6722, 1
    %v6724 = vadd.f32 %v6722, %v6723
    %v6725 = vsel %vm133, %v6487, 0.0
    %v6726 = vrot.slane %v6725, 4
    %v6727 = vadd.f32 %v6725, %v6726
    %v6728 = vrot.slane %v6727, 2
    %v6729 = vadd.f32 %v6727, %v6728
    %v6730 = vrot.slane %v6729, 1
    %v6731 = vadd.f32 %v6729, %v6730
    %v6732 = vsel %vm133, %v6488, 0.0
    %v6733 = vrot.slane %v6732, 4
    %v6734 = vadd.f32 %v6732, %v6733
    %v6735 = vrot.slane %v6734, 2
    %v6736 = vadd.f32 %v6734, %v6735
    %v6737 = vrot.slane %v6736, 1
    %v6738 = vadd.f32 %v6736, %v6737
    %v6739 = vsel %vm133, %v6489, 0.0
    %v6740 = vrot.slane %v6739, 4
    %v6741 = vadd.f32 %v6739, %v6740
    %v6742 = vrot.slane %v6741, 2
    %v6743 = vadd.f32 %v6741, %v6742
    %v6744 = vrot.slane %v6743, 1
    %v6745 = vadd.f32 %v6743, %v6744
    %v6746 = vsel %vm133, %v6490, 0.0
    %v6747 = vrot.slane %v6746, 4
    %v6748 = vadd.f32 %v6746, %v6747
    %v6749 = vrot.slane %v6748, 2
    %v6750 = vadd.f32 %v6748, %v6749
    %v6751 = vrot.slane %v6750, 1
    %v6752 = vadd.f32 %v6750, %v6751
    %v6753 = vsel %vm133, %v6491, 0.0
    %v6754 = vrot.slane %v6753, 4
    %v6755 = vadd.f32 %v6753, %v6754
    %v6756 = vrot.slane %v6755, 2
    %v6757 = vadd.f32 %v6755, %v6756
    %v6758 = vrot.slane %v6757, 1
    %v6759 = vadd.f32 %v6757, %v6758
    %v6760 = vsel %vm133, %v6492, 0.0
    %v6761 = vrot.slane %v6760, 4
    %v6762 = vadd.f32 %v6760, %v6761
    %v6763 = vrot.slane %v6762, 2
    %v6764 = vadd.f32 %v6762, %v6763
    %v6765 = vrot.slane %v6764, 1
    %v6766 = vadd.f32 %v6764, %v6765
    %v6767 = vsel %vm133, %v6493, 0.0
    %v6768 = vrot.slane %v6767, 4
    %v6769 = vadd.f32 %v6767, %v6768
    %v6770 = vrot.slane %v6769, 2
    %v6771 = vadd.f32 %v6769, %v6770
    %v6772 = vrot.slane %v6771, 1
    %v6773 = vadd.f32 %v6771, %v6772
    %v6774 = vsel %vm133, %v6494, 0.0
    %v6775 = vrot.slane %v6774, 4
    %v6776 = vadd.f32 %v6774, %v6775
    %v6777 = vrot.slane %v6776, 2
    %v6778 = vadd.f32 %v6776, %v6777
    %v6779 = vrot.slane %v6778, 1
    %v6780 = vadd.f32 %v6778, %v6779
    %v6781 = vsel %vm133, %v6495, 0.0
    %v6782 = vrot.slane %v6781, 4
    %v6783 = vadd.f32 %v6781, %v6782
    %v6784 = vrot.slane %v6783, 2
    %v6785 = vadd.f32 %v6783, %v6784
    %v6786 = vrot.slane %v6785, 1
    %v6787 = vadd.f32 %v6785, %v6786
    %v6788 = vsel %vm133, %v6496, 0.0
    %v6789 = vrot.slane %v6788, 4
    %v6790 = vadd.f32 %v6788, %v6789
    %v6791 = vrot.slane %v6790, 2
    %v6792 = vadd.f32 %v6790, %v6791
    %v6793 = vrot.slane %v6792, 1
    %v6794 = vadd.f32 %v6792, %v6793
    %v6795 = vsel %vm133, %v6497, 0.0
    %v6796 = vrot.slane %v6795, 4
    %v6797 = vadd.f32 %v6795, %v6796
    %v6798 = vrot.slane %v6797, 2
    %v6799 = vadd.f32 %v6797, %v6798
    %v6800 = vrot.slane %v6799, 1
    %v6801 = vadd.f32 %v6799, %v6800
    %v6802 = vsel %vm133, %v6498, 0.0
    %v6803 = vrot.slane %v6802, 4
    %v6804 = vadd.f32 %v6802, %v6803
    %v6805 = vrot.slane %v6804, 2
    %v6806 = vadd.f32 %v6804, %v6805
    %v6807 = vrot.slane %v6806, 1
    %v6808 = vadd.f32 %v6806, %v6807
    %v6809 = vsel %vm133, %v6499, 0.0
    %v6810 = vrot.slane %v6809, 4
    %v6811 = vadd.f32 %v6809, %v6810
    %v6812 = vrot.slane %v6811, 2
    %v6813 = vadd.f32 %v6811, %v6812
    %v6814 = vrot.slane %v6813, 1
    %v6815 = vadd.f32 %v6813, %v6814
    %v6816 = vsel %vm133, %v6500, 0.0
    %v6817 = vrot.slane %v6816, 4
    %v6818 = vadd.f32 %v6816, %v6817
    %v6819 = vrot.slane %v6818, 2
    %v6820 = vadd.f32 %v6818, %v6819
    %v6821 = vrot.slane %v6820, 1
    %v6822 = vadd.f32 %v6820, %v6821
    %v6823 = vsel %vm133, %v6501, 0.0
    %v6824 = vrot.slane %v6823, 4
    %v6825 = vadd.f32 %v6823, %v6824
    %v6826 = vrot.slane %v6825, 2
    %v6827 = vadd.f32 %v6825, %v6826
    %v6828 = vrot.slane %v6827, 1
    %v6829 = vadd.f32 %v6827, %v6828
    %v6830 = vsel %vm133, %v6502, 0.0
    %v6831 = vrot.slane %v6830, 4
    %v6832 = vadd.f32 %v6830, %v6831
    %v6833 = vrot.slane %v6832, 2
    %v6834 = vadd.f32 %v6832, %v6833
    %v6835 = vrot.slane %v6834, 1
    %v6836 = vadd.f32 %v6834, %v6835
    %v6837 = vsel %vm133, %v6503, 0.0
    %v6838 = vrot.slane %v6837, 4
    %v6839 = vadd.f32 %v6837, %v6838
    %v6840 = vrot.slane %v6839, 2
    %v6841 = vadd.f32 %v6839, %v6840
    %v6842 = vrot.slane %v6841, 1
    %v6843 = vadd.f32 %v6841, %v6842
    %v6844 = vsel %vm133, %v6504, 0.0
    %v6845 = vrot.slane %v6844, 4
    %v6846 = vadd.f32 %v6844, %v6845
    %v6847 = vrot.slane %v6846, 2
    %v6848 = vadd.f32 %v6846, %v6847
    %v6849 = vrot.slane %v6848, 1
    %v6850 = vadd.f32 %v6848, %v6849
    %v6851 = vsel %vm133, %v6505, 0.0
    %v6852 = vrot.slane %v6851, 4
    %v6853 = vadd.f32 %v6851, %v6852
    %v6854 = vrot.slane %v6853, 2
    %v6855 = vadd.f32 %v6853, %v6854
    %v6856 = vrot.slane %v6855, 1
    %v6857 = vadd.f32 %v6855, %v6856
    %v6858 = vsel %vm133, %v6506, 0.0
    %v6859 = vrot.slane %v6858, 4
    %v6860 = vadd.f32 %v6858, %v6859
    %v6861 = vrot.slane %v6860, 2
    %v6862 = vadd.f32 %v6860, %v6861
    %v6863 = vrot.slane %v6862, 1
    %v6864 = vadd.f32 %v6862, %v6863
    %v6865 = vsel %vm133, %v6507, 0.0
    %v6866 = vrot.slane %v6865, 4
    %v6867 = vadd.f32 %v6865, %v6866
    %v6868 = vrot.slane %v6867, 2
    %v6869 = vadd.f32 %v6867, %v6868
    %v6870 = vrot.slane %v6869, 1
    %v6871 = vadd.f32 %v6869, %v6870
    %v6872 = vsel %vm133, %v6508, 0.0
    %v6873 = vrot.slane %v6872, 4
    %v6874 = vadd.f32 %v6872, %v6873
    %v6875 = vrot.slane %v6874, 2
    %v6876 = vadd.f32 %v6874, %v6875
    %v6877 = vrot.slane %v6876, 1
    %v6878 = vadd.f32 %v6876, %v6877
    %v6879 = vsel %vm133, %v6509, 0.0
    %v6880 = vrot.slane %v6879, 4
    %v6881 = vadd.f32 %v6879, %v6880
    %v6882 = vrot.slane %v6881, 2
    %v6883 = vadd.f32 %v6881, %v6882
    %v6884 = vrot.slane %v6883, 1
    %v6885 = vadd.f32 %v6883, %v6884
    %v6886 = vsel %vm133, %v6510, 0.0
    %v6887 = vrot.slane %v6886, 4
    %v6888 = vadd.f32 %v6886, %v6887
    %v6889 = vrot.slane %v6888, 2
    %v6890 = vadd.f32 %v6888, %v6889
    %v6891 = vrot.slane %v6890, 1
    %v6892 = vadd.f32 %v6890, %v6891
    %v6893 = vsel %vm133, %v6511, 0.0
    %v6894 = vrot.slane %v6893, 4
    %v6895 = vadd.f32 %v6893, %v6894
    %v6896 = vrot.slane %v6895, 2
    %v6897 = vadd.f32 %v6895, %v6896
    %v6898 = vrot.slane %v6897, 1
    %v6899 = vadd.f32 %v6897, %v6898
    %v6900 = vsel %vm133, %v6512, 0.0
    %v6901 = vrot.slane %v6900, 4
    %v6902 = vadd.f32 %v6900, %v6901
    %v6903 = vrot.slane %v6902, 2
    %v6904 = vadd.f32 %v6902, %v6903
    %v6905 = vrot.slane %v6904, 1
    %v6906 = vadd.f32 %v6904, %v6905
    %v6907 = vsel %vm133, %v6513, 0.0
    %v6908 = vrot.slane %v6907, 4
    %v6909 = vadd.f32 %v6907, %v6908
    %v6910 = vrot.slane %v6909, 2
    %v6911 = vadd.f32 %v6909, %v6910
    %v6912 = vrot.slane %v6911, 1
    %v6913 = vadd.f32 %v6911, %v6912
    %v6914 = vsel %vm133, %v6514, 0.0
    %v6915 = vrot.slane %v6914, 4
    %v6916 = vadd.f32 %v6914, %v6915
    %v6917 = vrot.slane %v6916, 2
    %v6918 = vadd.f32 %v6916, %v6917
    %v6919 = vrot.slane %v6918, 1
    %v6920 = vadd.f32 %v6918, %v6919
    %v6921 = vsel %vm133, %v6515, 0.0
    %v6922 = vrot.slane %v6921, 4
    %v6923 = vadd.f32 %v6921, %v6922
    %v6924 = vrot.slane %v6923, 2
    %v6925 = vadd.f32 %v6923, %v6924
    %v6926 = vrot.slane %v6925, 1
    %v6927 = vadd.f32 %v6925, %v6926
    %v6928 = vsel %vm133, %v6516, 0.0
    %v6929 = vrot.slane %v6928, 4
    %v6930 = vadd.f32 %v6928, %v6929
    %v6931 = vrot.slane %v6930, 2
    %v6932 = vadd.f32 %v6930, %v6931
    %v6933 = vrot.slane %v6932, 1
    %v6934 = vadd.f32 %v6932, %v6933
    %v6935 = vsel %vm133, %v6517, 0.0
    %v6936 = vrot.slane %v6935, 4
    %v6937 = vadd.f32 %v6935, %v6936
    %v6938 = vrot.slane %v6937, 2
    %v6939 = vadd.f32 %v6937, %v6938
    %v6940 = vrot.slane %v6939, 1
    %v6941 = vadd.f32 %v6939, %v6940
    %v6942 = vsel %vm133, %v6518, 0.0
    %v6943 = vrot.slane %v6942, 4
    %v6944 = vadd.f32 %v6942, %v6943
    %v6945 = vrot.slane %v6944, 2
    %v6946 = vadd.f32 %v6944, %v6945
    %v6947 = vrot.slane %v6946, 1
    %v6948 = vadd.f32 %v6946, %v6947
    %v6949 = vsel %vm133, %v6519, 0.0
    %v6950 = vrot.slane %v6949, 4
    %v6951 = vadd.f32 %v6949, %v6950
    %v6952 = vrot.slane %v6951, 2
    %v6953 = vadd.f32 %v6951, %v6952
    %v6954 = vrot.slane %v6953, 1
    %v6955 = vadd.f32 %v6953, %v6954
    %v6956 = vsel %vm133, %v6520, 0.0
    %v6957 = vrot.slane %v6956, 4
    %v6958 = vadd.f32 %v6956, %v6957
    %v6959 = vrot.slane %v6958, 2
    %v6960 = vadd.f32 %v6958, %v6959
    %v6961 = vrot.slane %v6960, 1
    %v6962 = vadd.f32 %v6960, %v6961
    %v6963 = vsel %vm133, %v6521, 0.0
    %v6964 = vrot.slane %v6963, 4
    %v6965 = vadd.f32 %v6963, %v6964
    %v6966 = vrot.slane %v6965, 2
    %v6967 = vadd.f32 %v6965, %v6966
    %v6968 = vrot.slane %v6967, 1
    %v6969 = vadd.f32 %v6967, %v6968
    %v7034 = vsel %vm4281, %v6535, %v6528
    %v7035 = vsel %vm4283, %v6542, %v7034
    %v7036 = vsel %vm4285, %v6549, %v7035
    %v7037 = vsel %vm4287, %v6556, %v7036
    %v7038 = vsel %vm4289, %v6563, %v7037
    %v7039 = vsel %vm4291, %v6570, %v7038
    %v7040 = vsel %vm4293, %v6577, %v7039
    %v7041 = vsel %vm4281, %v6591, %v6584
    %v7042 = vsel %vm4283, %v6598, %v7041
    %v7043 = vsel %vm4285, %v6605, %v7042
    %v7044 = vsel %vm4287, %v6612, %v7043
    %v7045 = vsel %vm4289, %v6619, %v7044
    %v7046 = vsel %vm4291, %v6626, %v7045
    %v7047 = vsel %vm4293, %v6633, %v7046
    %v7048 = vsel %vm4281, %v6647, %v6640
    %v7049 = vsel %vm4283, %v6654, %v7048
    %v7050 = vsel %vm4285, %v6661, %v7049
    %v7051 = vsel %vm4287, %v6668, %v7050
    %v7052 = vsel %vm4289, %v6675, %v7051
    %v7053 = vsel %vm4291, %v6682, %v7052
    %v7054 = vsel %vm4293, %v6689, %v7053
    %v7055 = vsel %vm4281, %v6703, %v6696
    %v7056 = vsel %vm4283, %v6710, %v7055
    %v7057 = vsel %vm4285, %v6717, %v7056
    %v7058 = vsel %vm4287, %v6724, %v7057
    %v7059 = vsel %vm4289, %v6731, %v7058
    %v7060 = vsel %vm4291, %v6738, %v7059
    %v7061 = vsel %vm4293, %v6745, %v7060
    %v7062 = vsel %vm4281, %v6759, %v6752
    %v7063 = vsel %vm4283, %v6766, %v7062
    %v7064 = vsel %vm4285, %v6773, %v7063
    %v7065 = vsel %vm4287, %v6780, %v7064
    %v7066 = vsel %vm4289, %v6787, %v7065
    %v7067 = vsel %vm4291, %v6794, %v7066
    %v7068 = vsel %vm4293, %v6801, %v7067
    %v7069 = vsel %vm4281, %v6815, %v6808
    %v7070 = vsel %vm4283, %v6822, %v7069
    %v7071 = vsel %vm4285, %v6829, %v7070
    %v7072 = vsel %vm4287, %v6836, %v7071
    %v7073 = vsel %vm4289, %v6843, %v7072
    %v7074 = vsel %vm4291, %v6850, %v7073
    %v7075 = vsel %vm4293, %v6857, %v7074
    %v7076 = vsel %vm4281, %v6871, %v6864
    %v7077 = vsel %vm4283, %v6878, %v7076
    %v7078 = vsel %vm4285, %v6885, %v7077
    %v7079 = vsel %vm4287, %v6892, %v7078
    %v7080 = vsel %vm4289, %v6899, %v7079
    %v7081 = vsel %vm4291, %v6906, %v7080
    %v7082 = vsel %vm4293, %v6913, %v7081
    %v7083 = vsel %vm4281, %v6927, %v6920
    %v7084 = vsel %vm4283, %v6934, %v7083
    %v7085 = vsel %vm4285, %v6941, %v7084
    %v7086 = vsel %vm4287, %v6948, %v7085
    %v7087 = vsel %vm4289, %v6955, %v7086
    %v7088 = vsel %vm4291, %v6962, %v7087
    %v7089 = vsel %vm4293, %v6969, %v7088
    %7090 = vrot.lane.b32.xlu0 %v7040, 96
    %v7091 = vpop.permute.xlu0 %7090
    %7092 = vrot.lane.b32.xlu0 %v7047, 96
    %v7093 = vpop.permute.xlu0 %7092
    %7094 = vrot.lane.b32.xlu0 %v7054, 96
    %v7095 = vpop.permute.xlu0 %7094
    %7096 = vrot.lane.b32.xlu0 %v7061, 96
    %v7097 = vpop.permute.xlu0 %7096
    %7098 = vrot.lane.b32.xlu0 %v7068, 96
    %v7099 = vpop.permute.xlu0 %7098
    %7100 = vrot.lane.b32.xlu0 %v7075, 96
    %v7101 = vpop.permute.xlu0 %7100
    %7102 = vrot.lane.b32.xlu0 %v7082, 96
    %v7103 = vpop.permute.xlu0 %7102
    %7104 = vrot.lane.b32.xlu0 %v7089, 96
    %v7105 = vpop.permute.xlu0 %7104
    %vm7114 = vcmask 1048320
    %7115 = vst.msk [vmem:[#allocation2] sm:$0xff] %vm7114, %v7091
    %7116 = vst.msk [vmem:[#allocation2 + $0x8] sm:$0xff] %vm7114, %v7093
    %7117 = vst.msk [vmem:[#allocation2 + $0x10] sm:$0xff] %vm7114, %v7095
    %7118 = vst.msk [vmem:[#allocation2 + $0x18] sm:$0xff] %vm7114, %v7097
    %7119 = vst.msk [vmem:[#allocation2 + $0x20] sm:$0xff] %vm7114, %v7099
    %7120 = vst.msk [vmem:[#allocation2 + $0x28] sm:$0xff] %vm7114, %v7101
    %7121 = vst.msk [vmem:[#allocation2 + $0x30] sm:$0xff] %vm7114, %v7103
    %7122 = vst.msk [vmem:[#allocation2 + $0x38] sm:$0xff] %vm7114, %v7105
    // Predicated region
    $region18: #{tpu_custom_call.1} parent=1 // pred_check
      _
    $region19: #{tpu_custom_call.1} parent=1 // pred_check_branch
      %7124 = sbr.rel (0) target = $region21
    $region20: #{tpu_custom_call.1} parent=1 // pred_region
      %s7126 = ssub.s32 1024, 1024
      %7127 = vsyncadd [#allocation3], %s7126
      %s7128 = sshll.u32 [#allocation2], 4
      %s7129 = int_to_ptr.vmem [resolvable:$true] %s7128
      %7134 = dma.vmem_to_hbm [thread:$0]  %s7129, 1024, %s4, [#allocation3], 128, 128, 8
    $region21: #{tpu_custom_call.1} parent=1 // pred_fallthru
      _
    // Predicated region
    $region22: #{tpu_custom_call.1} parent=1 // pred_check
      _
    $region23: #{tpu_custom_call.1} parent=1 // pred_check_branch
      %7136 = sbr.rel (0) target = $region25
    $region24: #{tpu_custom_call.1} parent=1 // pred_region
      _
    $region25: #{tpu_custom_call.1} parent=1 // pred_fallthru
      _
    // Predicated region
    $region26: #{tpu_custom_call.1} parent=1 // pred_check
      _
    $region27: #{tpu_custom_call.1} parent=1 // pred_check_branch
      %7138 = sbr.rel (0) target = $region29
    $region28: #{tpu_custom_call.1} parent=1 // pred_region
      %7139 = dma.done [#allocation3], 1024
    $region29: #{tpu_custom_call.1} parent=1 // pred_fallthru
      _
    // Predicated region
    $region30: #{tpu_custom_call.1} parent=1 // pred_check
      _
    $region31: #{tpu_custom_call.1} parent=1 // pred_check_branch
      %7141 = sbr.rel (0) target = $region33
    $region32: #{tpu_custom_call.1} parent=1 // pred_region
      _
    $region33: #{tpu_custom_call.1} parent=1 // pred_fallthru
      _
    %7142 = vsyncpa [#allocation3], 1

</llo_original>
